<compile_context>
chip_gen: v5e
topology: v5e:2x2
jax: 0.10.0
libtpu: 0.0.40
codegen_flags: <defaults>
</compile_context>

<pallas_src>
import functools
import math

import jax
import jax.numpy as jnp
from jax.experimental import pallas as pl
from jax.experimental.pallas import tpu as pltpu


_VMEM_LIMIT = 48 * 1024 * 1024   # safe on v7x (64 MiB VMEM), generous on v5e/v6e


# ----------------------------------------------------------------------------
# In-kernel helpers
# ----------------------------------------------------------------------------
def _erf(x):
    # Abramowitz & Stegun 7.1.26 polynomial erf (max abs err ~1.5e-7); built
    # only from exp/div/mul so it lowers cleanly in Mosaic. Matches PyTorch's
    # exact (erf-based) F.gelu to ~float32 precision.
    a1, a2, a3, a4, a5 = 0.254829592, -0.284496736, 1.421413741, -1.453152027, 1.061405429
    p = 0.3275911
    sgn = jnp.where(x >= 0.0, 1.0, -1.0)
    ax = jnp.abs(x)
    t = 1.0 / (1.0 + p * ax)
    poly = ((((a5 * t + a4) * t + a3) * t + a2) * t + a1) * t
    return sgn * (1.0 - poly * jnp.exp(-ax * ax))


def _gelu_exact(x):
    return 0.5 * x * (1.0 + _erf(x * (1.0 / math.sqrt(2.0))))


def _round_up(x, m):
    return (x + m - 1) // m * m


def _pick_tile(dim, cap, align):
    """Pick a tile size for `dim`: full-extent if it fits, else the largest
    aligned divisor <= cap (no padding), else fall back to pad-to-cap."""
    if dim <= cap:
        return dim, dim                      # full-extent block, no padding
    t = cap - cap % align
    while t >= align:
        if dim % t == 0:
            return t, dim                    # exact divisor, no padding
        t -= align
    return cap, _round_up(dim, cap)          # unavoidable padding


# ----------------------------------------------------------------------------
# Pallas kernels
# ----------------------------------------------------------------------------
def _linear_kernel(*refs, act, has_res, has_ln, single_k, eps):
    """Tiled (LN?) -> x @ w + b -> (GELU?) -> (+residual?) with f32 accumulation.

    bf16 operands on the MXU, f32 accumulator / epilogue math. When has_ln, the
    LayerNormed + bf16-cast input tile is computed once per M-tile (at j==0)
    into a VMEM scratch and reused for all N tiles.
    """
    x_ref, w_ref, b_ref = refs[0], refs[1], refs[2]
    idx = 3
    if has_ln:
        g_ref, bb_ref = refs[idx], refs[idx + 1]
        idx += 2
    if has_res:
        r_ref = refs[idx]
        idx += 1
    o_ref = refs[idx]
    idx += 1
    if not single_k:
        acc_ref = refs[idx]
        idx += 1
    if has_ln:
        lnx_ref = refs[idx]
        idx += 1

    j = pl.program_id(1)
    k = pl.program_id(2)

    if has_ln:
        # LN prologue hoisted: compute once per i-tile (j==0; nk==1 when has_ln).
        @pl.when(j == 0)
        def _():
            xf = x_ref[...].astype(jnp.float32)
            mu = jnp.mean(xf, axis=-1, keepdims=True)
            var = jnp.mean(jnp.square(xf - mu), axis=-1, keepdims=True)
            xn = (xf - mu) * jax.lax.rsqrt(var + eps)
            xn = xn * g_ref[...] + bb_ref[...]
            lnx_ref[...] = xn.astype(jnp.bfloat16)

        x_in = lnx_ref[...]
    else:
        x_in = x_ref[...]

    def epilogue(y):
        y = y + b_ref[...]
        if act == "gelu":
            y = _gelu_exact(y)
        if has_res:
            y = y + r_ref[...].astype(jnp.float32)
        o_ref[...] = y.astype(o_ref.dtype)

    if single_k:
        epilogue(jnp.dot(x_in, w_ref[...], preferred_element_type=jnp.float32))
    else:
        @pl.when(k == 0)
        def _():
            acc_ref[...] = jnp.zeros_like(acc_ref)

        acc_ref[...] += jnp.dot(x_in, w_ref[...], preferred_element_type=jnp.float32)

        @pl.when(k == pl.num_programs(2) - 1)
        def _():
            epilogue(acc_ref[...])


def _attn_kernel(qkv_ref, wo_ref, bo_ref, res_ref, o_ref, acc_ref, *, num_heads, scale):
    """Fused MHSA + output projection + residual for one batch element.

    acc (S,E) f32 is initialised with residual + out-proj bias, then each head
    contributes (softmax(q k^T) v) @ w_out[hDh:(h+1)Dh, :].  No transposes, no
    head concatenate, softmax reciprocal applied to the (S,Dh) PV result.
    """
    E = wo_ref.shape[0]
    Dh = E // num_heads

    acc_ref[...] = res_ref[...].astype(jnp.float32) + bo_ref[...]

    # Single bf16 block load of packed qkv (S, 3E); per-head slices are taken
    # in-register.  TODO(synk): for very long sequences, tile over q-row blocks
    # and slice q/k/v per head directly off the ref instead.
    xall = qkv_ref[...]
    for h in range(num_heads):                      # static unroll over heads
        sl = slice(h * Dh, (h + 1) * Dh)
        # Fold 1/sqrt(Dh) into q (O(S*Dh) work instead of O(S*S)).
        q = (xall[:, sl].astype(jnp.float32) * scale).astype(jnp.bfloat16)
        k = xall[:, E + h * Dh:E + (h + 1) * Dh]
        v = xall[:, 2 * E + h * Dh:2 * E + (h + 1) * Dh]

        # Transpose-free q @ k^T: contract the last dim of both operands.
        s = jax.lax.dot_general(q, k, (((1,), (1,)), ((), ())),
                                preferred_element_type=jnp.float32)     # (S, S)
        m = jnp.max(s, axis=-1, keepdims=True)
        p = jnp.exp(s - m)
        l = jnp.sum(p, axis=-1, keepdims=True)
        pv = jnp.dot(p.astype(jnp.bfloat16), v,
                     preferred_element_type=jnp.float32)                # (S, Dh)
        pv = pv * pl.reciprocal(l, approx=True)     # normalize the small matrix
        acc_ref[...] += jnp.dot(pv.astype(jnp.bfloat16), wo_ref[sl, :],
                                preferred_element_type=jnp.float32)     # (S, E)

    o_ref[...] = acc_ref[...].astype(o_ref.dtype)


def _head_kernel(x_ref, g_ref, bn_ref, w1_ref, b1_ref, w2_ref, b2_ref,
                 wo_ref, bo_ref, o_ref, *, eps):
    """Fused classification head: LN -> linear+GELU -> linear+GELU -> linear."""
    x = x_ref[...].astype(jnp.float32)
    mu = jnp.mean(x, axis=-1, keepdims=True)
    var = jnp.mean(jnp.square(x - mu), axis=-1, keepdims=True)
    x = (x - mu) * jax.lax.rsqrt(var + eps)
    x = x * g_ref[...] + bn_ref[...]

    h = jnp.dot(x.astype(jnp.bfloat16), w1_ref[...],
                preferred_element_type=jnp.float32) + b1_ref[...]
    h = _gelu_exact(h)
    h = jnp.dot(h.astype(jnp.bfloat16), w2_ref[...],
                preferred_element_type=jnp.float32) + b2_ref[...]
    h = _gelu_exact(h)
    y = jnp.dot(h.astype(jnp.bfloat16), wo_ref[...],
                preferred_element_type=jnp.float32) + bo_ref[...]
    o_ref[...] = y.astype(o_ref.dtype)


# ----------------------------------------------------------------------------
# Pallas wrappers
# ----------------------------------------------------------------------------
def linear(x, w, b, *, act=None, residual=None, ln=None, eps=1e-5,
           out_dtype=jnp.bfloat16, tm=1024, tn=512, tk=512):
    """y = [LN(x)] @ w + b, optional GELU, optional +residual.

    x: (M,K) bf16, w: (K,N) bf16, b: (N,) f32, residual: (M,N) bf16.
    """
    M, K = x.shape
    N = w.shape[1]
    has_ln = ln is not None
    has_res = residual is not None

    tm_e, Mp = _pick_tile(M, tm, 16)
    tn_e, Np = _pick_tile(N, tn, 128)
    if has_ln:
        tk_e, Kp = K, K          # LN prologue needs the full feature axis.
    else:
        tk_e, Kp = _pick_tile(K, tk, 128)

    # Padding only hits the rare fallback path; typical ViT shapes take the
    # divisor/full-extent path and avoid the pad + slice HBM round trip.
    xp = x if (Mp == M and Kp == K) else jnp.pad(x, ((0, Mp - M), (0, Kp - K)))
    wp = w if (Kp == K and Np == N) else jnp.pad(w, ((0, Kp - K), (0, Np - N)))
    bp = b.reshape(1, N)
    if Np != N:
        bp = jnp.pad(bp, ((0, 0), (0, Np - N)))

    nm, nn, nk = Mp // tm_e, Np // tn_e, Kp // tk_e
    single_k = nk == 1
    if has_ln:
        assert nk == 1 and Kp == K

    in_specs = [
        pl.BlockSpec((tm_e, tk_e), lambda i, j, k: (i, k)),
        pl.BlockSpec((tk_e, tn_e), lambda i, j, k: (k, j)),
        pl.BlockSpec((1, tn_e), lambda i, j, k: (0, j)),
    ]
    args = [xp, wp, bp]
    if has_ln:
        g, bb = ln
        in_specs += [pl.BlockSpec((1, K), lambda i, j, k: (0, 0)),
                     pl.BlockSpec((1, K), lambda i, j, k: (0, 0))]
        args += [g.reshape(1, K), bb.reshape(1, K)]
    if has_res:
        rp = residual
        if Mp != M or Np != N:
            rp = jnp.pad(rp, ((0, Mp - M), (0, Np - N)))
        in_specs.append(pl.BlockSpec((tm_e, tn_e), lambda i, j, k: (i, j)))
        args.append(rp)

    scratch = []
    if not single_k:
        scratch.append(pltpu.VMEM((tm_e, tn_e), jnp.float32))
    if has_ln:
        scratch.append(pltpu.VMEM((tm_e, K), jnp.bfloat16))

    # When the LN scratch is reused across j, keep j sequential per core so the
    # j==0 init is always seen; otherwise both M/N axes are megacore-parallel.
    sem = (("parallel", "arbitrary", "arbitrary") if has_ln
           else ("parallel", "parallel", "arbitrary"))

    flops = 2 * Mp * Np * Kp
    trans = Mp * Np if act == "gelu" else 0
    bytes_acc = (2 * (Mp * Kp + Kp * Np + Mp * Np) + 4 * Np
                 + (2 * Mp * Np if has_res else 0) + (8 * Kp if has_ln else 0))

    out = pl.pallas_call(
        functools.partial(_linear_kernel, act=act, has_res=has_res,
                          has_ln=has_ln, single_k=single_k, eps=eps),
        out_shape=jax.ShapeDtypeStruct((Mp, Np), out_dtype),
        grid=(nm, nn, nk),
        in_specs=in_specs,
        out_specs=pl.BlockSpec((tm_e, tn_e), lambda i, j, k: (i, j)),
        scratch_shapes=scratch,
        compiler_params=pltpu.CompilerParams(
            dimension_semantics=sem,
            vmem_limit_bytes=_VMEM_LIMIT),
        cost_estimate=pl.CostEstimate(flops=flops, transcendentals=trans,
                                      bytes_accessed=bytes_acc),
    )(*args)

    if Mp != M or Np != N:
        out = out[:M, :N]
    return out


def attention_block(qkv, w_out, b_out, residual, *, num_heads):
    """Fused self-attention + out-projection + residual.

    qkv: (B,S,3E) bf16 packed [q;k;v]; w_out: (E,E) bf16; b_out: (E,) f32;
    residual: (B,S,E) bf16.  Returns (B,S,E) bf16.
    """
    B, S, E3 = qkv.shape
    E = E3 // 3
    Dh = E // num_heads
    scale = 1.0 / math.sqrt(Dh)

    flops = B * (4 * num_heads * S * S * Dh + 2 * S * E * E)
    trans = B * num_heads * S * S
    bytes_acc = 2 * (B * S * E3 + E * E + 2 * B * S * E) + 4 * E

    return pl.pallas_call(
        functools.partial(_attn_kernel, num_heads=num_heads, scale=scale),
        out_shape=jax.ShapeDtypeStruct((B, S, E), residual.dtype),
        grid=(B,),
        in_specs=[
            pl.BlockSpec((None, S, E3), lambda b: (b, 0, 0)),
            pl.BlockSpec((E, E), lambda b: (0, 0)),
            pl.BlockSpec((1, E), lambda b: (0, 0)),
            pl.BlockSpec((None, S, E), lambda b: (b, 0, 0)),
        ],
        out_specs=pl.BlockSpec((None, S, E), lambda b: (b, 0, 0)),
        scratch_shapes=[pltpu.VMEM((S, E), jnp.float32)],
        compiler_params=pltpu.CompilerParams(
            dimension_semantics=("parallel",),
            vmem_limit_bytes=_VMEM_LIMIT),
        cost_estimate=pl.CostEstimate(flops=flops, transcendentals=trans,
                                      bytes_accessed=bytes_acc),
    )(qkv, w_out, b_out.reshape(1, E), residual)


def mlp_head(x, p, *, eps=1e-5, tm=512):
    """Fused final LayerNorm + (linear->GELU)x2 + linear_out on the cls features."""
    M, E = x.shape
    num_classes = p["lo_w"].shape[1]
    H1 = p["l1_w"].shape[1]
    H2 = p["l2_w"].shape[1]

    # Lane-dense output: pad num_classes up to 128 so stores are unmasked.
    NC = _round_up(max(num_classes, 128), 128)
    lo_w = jnp.pad(p["lo_w"], ((0, 0), (0, NC - num_classes)))
    lo_b = jnp.pad(p["lo_b"], (0, NC - num_classes))

    tm_e, Mp = (M, M) if M <= tm else (tm, _round_up(M, tm))
    xp = x if Mp == M else jnp.pad(x, ((0, Mp - M), (0, 0)))
    nm = Mp // tm_e

    flops = 2 * Mp * (E * H1 + H1 * H2 + H2 * NC)
    trans = Mp * (H1 + H2)
    bytes_acc = (2 * (Mp * E + E * H1 + H1 * H2 + H2 * NC)
                 + 4 * (Mp * NC + 2 * E + H1 + H2 + NC))

    out = pl.pallas_call(
        functools.partial(_head_kernel, eps=eps),
        out_shape=jax.ShapeDtypeStruct((Mp, NC), jnp.float32),
        grid=(nm,),
        in_specs=[
            pl.BlockSpec((tm_e, E), lambda i: (i, 0)),
            pl.BlockSpec((1, E), lambda i: (0, 0)),
            pl.BlockSpec((1, E), lambda i: (0, 0)),
            pl.BlockSpec((E, H1), lambda i: (0, 0)),
            pl.BlockSpec((1, H1), lambda i: (0, 0)),
            pl.BlockSpec((H1, H2), lambda i: (0, 0)),
            pl.BlockSpec((1, H2), lambda i: (0, 0)),
            pl.BlockSpec((H2, NC), lambda i: (0, 0)),
            pl.BlockSpec((1, NC), lambda i: (0, 0)),
        ],
        out_specs=pl.BlockSpec((tm_e, NC), lambda i: (i, 0)),
        compiler_params=pltpu.CompilerParams(
            dimension_semantics=("parallel",),
            vmem_limit_bytes=_VMEM_LIMIT),
        cost_estimate=pl.CostEstimate(flops=flops, transcendentals=trans,
                                      bytes_accessed=bytes_acc),
    )(xp, p["norm_g"].reshape(1, E), p["norm_b"].reshape(1, E),
      p["l1_w"], p["l1_b"].reshape(1, H1),
      p["l2_w"], p["l2_b"].reshape(1, H2),
      lo_w, lo_b.reshape(1, NC))
    return out[:M, :num_classes]


# ----------------------------------------------------------------------------
# Model (glue in plain JAX, compute in kernels above)
# ----------------------------------------------------------------------------
def encoder_layer(x, lp, num_heads):
    # norm_first=True TransformerEncoderLayer; dropouts are identity in eval mode.
    B, S, E = x.shape
    x2 = x.reshape(B * S, E)
    # LN1 fused into the packed qkv projection.
    qkv = linear(x2, lp["w_in"], lp["b_in"],
                 ln=(lp["ln1_g"], lp["ln1_b"]))                       # (B*S, 3E)
    # Attention + out-projection + residual add, all in one kernel.
    y = attention_block(qkv.reshape(B, S, 3 * E), lp["w_out"], lp["b_out"], x,
                        num_heads=num_heads)                          # (B, S, E)
    y2 = y.reshape(B * S, E)
    # FFN: LN2 + GELU fused into the first linear, residual fused into the second.
    h = linear(y2, lp["ff_w1"], lp["ff_b1"],
               ln=(lp["ln2_g"], lp["ln2_b"]), act="gelu")
    y2 = linear(h, lp["ff_w2"], lp["ff_b2"], residual=y2)
    return y2.reshape(B, S, E)


def vision_transformer(x, p, *, num_heads):
    B, P, F = x.shape
    E = p["proj_w"].shape[1]
    xb = x.astype(jnp.bfloat16)                                       # bf16 stream
    # Patch projection.
    h = linear(xb.reshape(B * P, F), p["proj_w"], p["proj_b"]).reshape(B, P, E)
    # Prepend cls token.
    cls = jnp.broadcast_to(p["cls"].reshape(1, 1, E), (B, 1, E))
    h = jnp.concatenate([cls, h], axis=1)                             # (B, P+1, E)
    # Positional embedding: Embedding(arange(P+1)) == the full table.
    h = h + p["pos_emb"][None, :, :]
    # Transformer encoder.
    for lp in p["layers"]:
        h = encoder_layer(h, lp, num_heads)
    # Classification head on the cls token (fused LN + MLP).
    # TODO(synk): dropout1/dropout2 are identity at inference (eval mode); randomness omitted.
    cls_feat = h[:, 0, :]                                             # (B, E)
    return mlp_head(cls_feat, p)


# ----------------------------------------------------------------------------
# Deterministic parameter initialization (synthetic weights)
# ----------------------------------------------------------------------------
def init_params(key, in_features, num_patches, num_classes, proj_dim,
                num_heads, num_layers, mlp_size, dim_feedforward=2048):
    keys = list(jax.random.split(key, 8 + 8 * num_layers))
    it = iter(keys)

    def dense(fan_in, fan_out):
        # Weights stored bf16 (one-time cast) so kernels DMA half the bytes;
        # biases stay f32 (added to the f32 accumulator in-kernel).
        w = (jax.random.normal(next(it), (fan_in, fan_out), jnp.float32)
             * 0.02).astype(jnp.bfloat16)
        b = jnp.zeros((fan_out,), jnp.float32)
        return w, b

    E = proj_dim
    p = {}
    p["proj_w"], p["proj_b"] = dense(in_features, E)
    p["pos_emb"] = (jax.random.normal(next(it), (num_patches + 1, E), jnp.float32)
                    * 0.02).astype(jnp.bfloat16)
    p["cls"] = jax.random.uniform(next(it), (1, E), jnp.float32,
                                  minval=-1.0, maxval=1.0).astype(jnp.bfloat16)

    layers = []
    for _ in range(num_layers):
        lp = {}
        lp["w_in"], lp["b_in"] = dense(E, 3 * E)       # packed [q; k; v] projection
        lp["w_out"], lp["b_out"] = dense(E, E)
        lp["ln1_g"] = jnp.ones((E,), jnp.float32)
        lp["ln1_b"] = jnp.zeros((E,), jnp.float32)
        lp["ln2_g"] = jnp.ones((E,), jnp.float32)
        lp["ln2_b"] = jnp.zeros((E,), jnp.float32)
        lp["ff_w1"], lp["ff_b1"] = dense(E, dim_feedforward)
        lp["ff_w2"], lp["ff_b2"] = dense(dim_feedforward, E)
        layers.append(lp)
    p["layers"] = layers

    p["norm_g"] = jnp.ones((E,), jnp.float32)
    p["norm_b"] = jnp.zeros((E,), jnp.float32)
    p["l1_w"], p["l1_b"] = dense(E, mlp_size)
    p["l2_w"], p["l2_b"] = dense(mlp_size, mlp_size // 2)
    p["lo_w"], p["lo_b"] = dense(mlp_size // 2, num_classes)
    return p


# ----------------------------------------------------------------------------
if __name__ == "__main__":
    # Small but shape-consistent config.
    B = 2
    in_features = 48          # flattened patch features
    num_patches = 15          # sequence length = 16 with cls token
    num_classes = 10
    proj_dim = 64
    num_heads = 4
    num_layers = 2
    mlp_size = 128            # classification-head MLP width (constructor arg)

    key = jax.random.PRNGKey(0)
    kx, kp = jax.random.split(key)
    x = jax.random.normal(kx, (B, num_patches, in_features), jnp.float32)
    params = init_params(kp, in_features, num_patches, num_classes, proj_dim,
                         num_heads, num_layers, mlp_size)

    fwd = jax.jit(vision_transformer, static_argnames=("num_heads",))
    out = fwd(x, params, num_heads=num_heads)
    out = jax.block_until_ready(out)
    assert out.shape == (B, num_classes), out.shape
    assert bool(jnp.all(jnp.isfinite(out)))
    print("KERNEL_OK")
</pallas_src>

<mosaic_0001>
module attributes {stable_mosaic.version = 11 : i64} {
  func.func @_linear_kernel(%arg0: i32, %arg1: i32, %arg2: i32, %arg3: memref<30x48xbf16, #tpu.memory_space<vmem>>, %arg4: memref<48x64xbf16, #tpu.memory_space<vmem>>, %arg5: memref<1x64xf32, #tpu.memory_space<vmem>>, %arg6: memref<30x64xbf16, #tpu.memory_space<vmem>>) attributes {dimension_semantics = [#tpu.dimension_semantics<parallel>, #tpu.dimension_semantics<parallel>, #tpu.dimension_semantics<arbitrary>], iteration_bounds = array<i64: 1, 1, 1>, scalar_prefetch = 0 : i64, scratch_operands = 0 : i64, tpu.core_type = #tpu.core_type<tc>, window_params = [{transform_indices = @transform_0, window_bounds = array<i64: 30, 48>}, {transform_indices = @transform_1, window_bounds = array<i64: 48, 64>}, {transform_indices = @transform_2, window_bounds = array<i64: 1, 64>}, {transform_indices = @transform_3, window_bounds = array<i64: 30, 64>}]} {
    %c0 = arith.constant 0 : index
    %c0_0 = arith.constant 0 : index
    %0 = vector.load %arg3[%c0, %c0_0] : memref<30x48xbf16, #tpu.memory_space<vmem>>, vector<30x48xbf16>
    %c0_1 = arith.constant 0 : index
    %c0_2 = arith.constant 0 : index
    %1 = vector.load %arg4[%c0_1, %c0_2] : memref<48x64xbf16, #tpu.memory_space<vmem>>, vector<48x64xbf16>
    %cst = arith.constant dense<0.000000e+00> : vector<30x64xf32>
    %2 = tpu.matmul %0, %1, %cst {dimension_numbers = #tpu.dot_dimension_numbers<[1], [0], [0], [1], [0, 0, 1, 1], [], []>} : vector<30x48xbf16>, vector<48x64xbf16>, vector<30x64xf32> -> vector<30x64xf32>
    %c0_3 = arith.constant 0 : index
    %c0_4 = arith.constant 0 : index
    %3 = vector.load %arg5[%c0_3, %c0_4] : memref<1x64xf32, #tpu.memory_space<vmem>>, vector<1x64xf32>
    %4 = vector.broadcast %3 : vector<1x64xf32> to vector<30x64xf32>
    %5 = arith.addf %2, %4 : vector<30x64xf32>
    %6 = arith.truncf %5 : vector<30x64xf32> to vector<30x64xbf16>
    %c0_5 = arith.constant 0 : index
    %c0_6 = arith.constant 0 : index
    %7 = vector.load %arg6[%c0_5, %c0_6] : memref<30x64xbf16, #tpu.memory_space<vmem>>, vector<30x64xbf16>
    tpu.vector_store %arg6[%c0_5, %c0_6], %6 {strides = array<i32>} : memref<30x64xbf16, #tpu.memory_space<vmem>>, vector<30x64xbf16>,
    return
  }
  func.func @transform_0(%arg0: i32, %arg1: i32, %arg2: i32) -> (i32, i32) {
    %c0_i32 = arith.constant 0 : i32
    return %arg0, %arg2 : i32, i32
  }
  func.func @transform_1(%arg0: i32, %arg1: i32, %arg2: i32) -> (i32, i32) {
    %c0_i32 = arith.constant 0 : i32
    return %arg2, %arg1 : i32, i32
  }
  func.func @transform_2(%arg0: i32, %arg1: i32, %arg2: i32) -> (i32, i32) {
    %c0_i32 = arith.constant 0 : i32
    %c0_i32_0 = arith.constant 0 : i32
    return %c0_i32, %arg1 : i32, i32
  }
  func.func @transform_3(%arg0: i32, %arg1: i32, %arg2: i32) -> (i32, i32) {
    %c0_i32 = arith.constant 0 : i32
    return %arg0, %arg1 : i32, i32
  }
}

module attributes {stable_mosaic.version = 11 : i64} {
  func.func @_attn_kernel(%arg0: i32, %arg1: memref<1x16x192xbf16, #tpu.memory_space<vmem>>, %arg2: memref<64x64xbf16, #tpu.memory_space<vmem>>, %arg3: memref<1x64xf32, #tpu.memory_space<vmem>>, %arg4: memref<1x16x64xbf16, #tpu.memory_space<vmem>>, %arg5: memref<1x16x64xbf16, #tpu.memory_space<vmem>>, %arg6: memref<16x64xf32, #tpu.memory_space<vmem>>) attributes {dimension_semantics = [#tpu.dimension_semantics<parallel>], iteration_bounds = array<i64: 2>, scalar_prefetch = 0 : i64, scratch_operands = 1 : i64, tpu.core_type = #tpu.core_type<tc>, window_params = [{transform_indices = @transform_0, window_bounds = array<i64: 1, 16, 192>}, {pipeline_mode = #tpu.pipeline_mode<synchronous>, transform_indices = @transform_1, window_bounds = array<i64: 64, 64>}, {pipeline_mode = #tpu.pipeline_mode<synchronous>, transform_indices = @transform_2, window_bounds = array<i64: 1, 64>}, {transform_indices = @transform_3, window_bounds = array<i64: 1, 16, 64>}, {transform_indices = @transform_4, window_bounds = array<i64: 1, 16, 64>}]} {
    %c0 = arith.constant 0 : index
    %c0_0 = arith.constant 0 : index
    %c0_1 = arith.constant 0 : index
    %0 = vector.load %arg4[%c0, %c0_0, %c0_1] : memref<1x16x64xbf16, #tpu.memory_space<vmem>>, vector<1x16x64xbf16>
    %1 = vector.shape_cast %0 : vector<1x16x64xbf16> to vector<16x64xbf16>
    %2 = arith.extf %1 : vector<16x64xbf16> to vector<16x64xf32>
    %c0_2 = arith.constant 0 : index
    %c0_3 = arith.constant 0 : index
    %3 = vector.load %arg3[%c0_2, %c0_3] : memref<1x64xf32, #tpu.memory_space<vmem>>, vector<1x64xf32>
    %4 = vector.broadcast %3 : vector<1x64xf32> to vector<16x64xf32>
    %5 = arith.addf %2, %4 : vector<16x64xf32>
    %c0_4 = arith.constant 0 : index
    %c0_5 = arith.constant 0 : index
    %6 = vector.load %arg6[%c0_4, %c0_5] : memref<16x64xf32, #tpu.memory_space<vmem>>, vector<16x64xf32>
    tpu.vector_store %arg6[%c0_4, %c0_5], %5 {strides = array<i32>} : memref<16x64xf32, #tpu.memory_space<vmem>>, vector<16x64xf32>,
    %c0_6 = arith.constant 0 : index
    %c0_7 = arith.constant 0 : index
    %c0_8 = arith.constant 0 : index
    %7 = vector.load %arg1[%c0_6, %c0_7, %c0_8] : memref<1x16x192xbf16, #tpu.memory_space<vmem>>, vector<1x16x192xbf16>
    %8 = vector.shape_cast %7 : vector<1x16x192xbf16> to vector<16x192xbf16>
    %9 = vector.extract_strided_slice %8 {offsets = [0, 0], sizes = [16, 16], strides = [1, 1]} : vector<16x192xbf16> to vector<16x16xbf16>
    %10 = arith.extf %9 : vector<16x16xbf16> to vector<16x16xf32>
    %cst = arith.constant 2.500000e-01 : f32
    %11 = vector.broadcast %cst : f32 to vector<16x16xf32>
    %12 = arith.mulf %10, %11 : vector<16x16xf32>
    %13 = arith.truncf %12 : vector<16x16xf32> to vector<16x16xbf16>
    %14 = vector.extract_strided_slice %8 {offsets = [0, 64], sizes = [16, 16], strides = [1, 1]} : vector<16x192xbf16> to vector<16x16xbf16>
    %15 = vector.extract_strided_slice %8 {offsets = [0, 128], sizes = [16, 16], strides = [1, 1]} : vector<16x192xbf16> to vector<16x16xbf16>
    %cst_9 = arith.constant dense<0.000000e+00> : vector<16x16xf32>
    %16 = tpu.matmul %13, %14, %cst_9 {dimension_numbers = #tpu.dot_dimension_numbers<[1], [1], [0], [0], [0, 0, 1, 0], [], []>} : vector<16x16xbf16>, vector<16x16xbf16>, vector<16x16xf32> -> vector<16x16xf32>
    %cst_10 = arith.constant dense<0xFF800000> : vector<16xf32>
    %17 = vector.multi_reduction <maximumf>, %16, %cst_10 [1] : vector<16x16xf32> to vector<16xf32>
    %18 = vector.shape_cast %17 : vector<16xf32> to vector<16x1xf32>
    %19 = vector.broadcast %18 : vector<16x1xf32> to vector<16x16xf32>
    %20 = arith.subf %16, %19 : vector<16x16xf32>
    %21 = math.exp %20 : vector<16x16xf32>
    %cst_11 = arith.constant dense<0.000000e+00> : vector<16xf32>
    %22 = vector.multi_reduction <add>, %21, %cst_11 [1] : vector<16x16xf32> to vector<16xf32>
    %23 = vector.shape_cast %22 : vector<16xf32> to vector<16x1xf32>
    %24 = arith.truncf %21 : vector<16x16xf32> to vector<16x16xbf16>
    %cst_12 = arith.constant dense<0.000000e+00> : vector<16x16xf32>
    %25 = tpu.matmul %24, %15, %cst_12 {dimension_numbers = #tpu.dot_dimension_numbers<[1], [0], [0], [1], [0, 0, 1, 1], [], []>} : vector<16x16xbf16>, vector<16x16xbf16>, vector<16x16xf32> -> vector<16x16xf32>
    %26 = tpu.reciprocal %23 {approx = true} : vector<16x1xf32> -> vector<16x1xf32>
    %27 = vector.broadcast %26 : vector<16x1xf32> to vector<16x16xf32>
    %28 = arith.mulf %25, %27 : vector<16x16xf32>
    %c0_13 = arith.constant 0 : index
    %c0_14 = arith.constant 0 : index
    %29 = vector.load %arg6[%c0_13, %c0_14] : memref<16x64xf32, #tpu.memory_space<vmem>>, vector<16x64xf32>
    %30 = arith.truncf %28 : vector<16x16xf32> to vector<16x16xbf16>
    %c0_15 = arith.constant 0 : index
    %c0_16 = arith.constant 0 : index
    %31 = vector.load %arg2[%c0_15, %c0_16] : memref<64x64xbf16, #tpu.memory_space<vmem>>, vector<16x64xbf16>
    %cst_17 = arith.constant dense<0.000000e+00> : vector<16x64xf32>
    %32 = tpu.matmul %30, %31, %cst_17 {dimension_numbers = #tpu.dot_dimension_numbers<[1], [0], [0], [1], [0, 0, 1, 1], [], []>} : vector<16x16xbf16>, vector<16x64xbf16>, vector<16x64xf32> -> vector<16x64xf32>
    %33 = arith.addf %29, %32 : vector<16x64xf32>
    %c0_18 = arith.constant 0 : index
    %c0_19 = arith.constant 0 : index
    %34 = vector.load %arg6[%c0_18, %c0_19] : memref<16x64xf32, #tpu.memory_space<vmem>>, vector<16x64xf32>
    tpu.vector_store %arg6[%c0_18, %c0_19], %33 {strides = array<i32>} : memref<16x64xf32, #tpu.memory_space<vmem>>, vector<16x64xf32>,
    %35 = vector.extract_strided_slice %8 {offsets = [0, 16], sizes = [16, 16], strides = [1, 1]} : vector<16x192xbf16> to vector<16x16xbf16>
    %36 = arith.extf %35 : vector<16x16xbf16> to vector<16x16xf32>
    %cst_20 = arith.constant 2.500000e-01 : f32
    %37 = vector.broadcast %cst_20 : f32 to vector<16x16xf32>
    %38 = arith.mulf %36, %37 : vector<16x16xf32>
    %39 = arith.truncf %38 : vector<16x16xf32> to vector<16x16xbf16>
    %40 = vector.extract_strided_slice %8 {offsets = [0, 80], sizes = [16, 16], strides = [1, 1]} : vector<16x192xbf16> to vector<16x16xbf16>
    %41 = vector.extract_strided_slice %8 {offsets = [0, 144], sizes = [16, 16], strides = [1, 1]} : vector<16x192xbf16> to vector<16x16xbf16>
    %cst_21 = arith.constant dense<0.000000e+00> : vector<16x16xf32>
    %42 = tpu.matmul %39, %40, %cst_21 {dimension_numbers = #tpu.dot_dimension_numbers<[1], [1], [0], [0], [0, 0, 1, 0], [], []>} : vector<16x16xbf16>, vector<16x16xbf16>, vector<16x16xf32> -> vector<16x16xf32>
    %cst_22 = arith.constant dense<0xFF800000> : vector<16xf32>
    %43 = vector.multi_reduction <maximumf>, %42, %cst_22 [1] : vector<16x16xf32> to vector<16xf32>
    %44 = vector.shape_cast %43 : vector<16xf32> to vector<16x1xf32>
    %45 = vector.broadcast %44 : vector<16x1xf32> to vector<16x16xf32>
    %46 = arith.subf %42, %45 : vector<16x16xf32>
    %47 = math.exp %46 : vector<16x16xf32>
    %cst_23 = arith.constant dense<0.000000e+00> : vector<16xf32>
    %48 = vector.multi_reduction <add>, %47, %cst_23 [1] : vector<16x16xf32> to vector<16xf32>
    %49 = vector.shape_cast %48 : vector<16xf32> to vector<16x1xf32>
    %50 = arith.truncf %47 : vector<16x16xf32> to vector<16x16xbf16>
    %cst_24 = arith.constant dense<0.000000e+00> : vector<16x16xf32>
    %51 = tpu.matmul %50, %41, %cst_24 {dimension_numbers = #tpu.dot_dimension_numbers<[1], [0], [0], [1], [0, 0, 1, 1], [], []>} : vector<16x16xbf16>, vector<16x16xbf16>, vector<16x16xf32> -> vector<16x16xf32>
    %52 = tpu.reciprocal %49 {approx = true} : vector<16x1xf32> -> vector<16x1xf32>
    %53 = vector.broadcast %52 : vector<16x1xf32> to vector<16x16xf32>
    %54 = arith.mulf %51, %53 : vector<16x16xf32>
    %c0_25 = arith.constant 0 : index
    %c0_26 = arith.constant 0 : index
    %55 = vector.load %arg6[%c0_25, %c0_26] : memref<16x64xf32, #tpu.memory_space<vmem>>, vector<16x64xf32>
    %56 = arith.truncf %54 : vector<16x16xf32> to vector<16x16xbf16>
    %c16 = arith.constant 16 : index
    %c0_27 = arith.constant 0 : index
    %57 = vector.load %arg2[%c16, %c0_27] : memref<64x64xbf16, #tpu.memory_space<vmem>>, vector<16x64xbf16>
    %cst_28 = arith.constant dense<0.000000e+00> : vector<16x64xf32>
    %58 = tpu.matmul %56, %57, %cst_28 {dimension_numbers = #tpu.dot_dimension_numbers<[1], [0], [0], [1], [0, 0, 1, 1], [], []>} : vector<16x16xbf16>, vector<16x64xbf16>, vector<16x64xf32> -> vector<16x64xf32>
    %59 = arith.addf %55, %58 : vector<16x64xf32>
    %c0_29 = arith.constant 0 : index
    %c0_30 = arith.constant 0 : index
    %60 = vector.load %arg6[%c0_29, %c0_30] : memref<16x64xf32, #tpu.memory_space<vmem>>, vector<16x64xf32>
    tpu.vector_store %arg6[%c0_29, %c0_30], %59 {strides = array<i32>} : memref<16x64xf32, #tpu.memory_space<vmem>>, vector<16x64xf32>,
    %61 = vector.extract_strided_slice %8 {offsets = [0, 32], sizes = [16, 16], strides = [1, 1]} : vector<16x192xbf16> to vector<16x16xbf16>
    %62 = arith.extf %61 : vector<16x16xbf16> to vector<16x16xf32>
    %cst_31 = arith.constant 2.500000e-01 : f32
    %63 = vector.broadcast %cst_31 : f32 to vector<16x16xf32>
    %64 = arith.mulf %62, %63 : vector<16x16xf32>
    %65 = arith.truncf %64 : vector<16x16xf32> to vector<16x16xbf16>
    %66 = vector.extract_strided_slice %8 {offsets = [0, 96], sizes = [16, 16], strides = [1, 1]} : vector<16x192xbf16> to vector<16x16xbf16>
    %67 = vector.extract_strided_slice %8 {offsets = [0, 160], sizes = [16, 16], strides = [1, 1]} : vector<16x192xbf16> to vector<16x16xbf16>
    %cst_32 = arith.constant dense<0.000000e+00> : vector<16x16xf32>
    %68 = tpu.matmul %65, %66, %cst_32 {dimension_numbers = #tpu.dot_dimension_numbers<[1], [1], [0], [0], [0, 0, 1, 0], [], []>} : vector<16x16xbf16>, vector<16x16xbf16>, vector<16x16xf32> -> vector<16x16xf32>
    %cst_33 = arith.constant dense<0xFF800000> : vector<16xf32>
    %69 = vector.multi_reduction <maximumf>, %68, %cst_33 [1] : vector<16x16xf32> to vector<16xf32>
    %70 = vector.shape_cast %69 : vector<16xf32> to vector<16x1xf32>
    %71 = vector.broadcast %70 : vector<16x1xf32> to vector<16x16xf32>
    %72 = arith.subf %68, %71 : vector<16x16xf32>
    %73 = math.exp %72 : vector<16x16xf32>
    %cst_34 = arith.constant dense<0.000000e+00> : vector<16xf32>
    %74 = vector.multi_reduction <add>, %73, %cst_34 [1] : vector<16x16xf32> to vector<16xf32>
    %75 = vector.shape_cast %74 : vector<16xf32> to vector<16x1xf32>
    %76 = arith.truncf %73 : vector<16x16xf32> to vector<16x16xbf16>
    %cst_35 = arith.constant dense<0.000000e+00> : vector<16x16xf32>
    %77 = tpu.matmul %76, %67, %cst_35 {dimension_numbers = #tpu.dot_dimension_numbers<[1], [0], [0], [1], [0, 0, 1, 1], [], []>} : vector<16x16xbf16>, vector<16x16xbf16>, vector<16x16xf32> -> vector<16x16xf32>
    %78 = tpu.reciprocal %75 {approx = true} : vector<16x1xf32> -> vector<16x1xf32>
    %79 = vector.broadcast %78 : vector<16x1xf32> to vector<16x16xf32>
    %80 = arith.mulf %77, %79 : vector<16x16xf32>
    %c0_36 = arith.constant 0 : index
    %c0_37 = arith.constant 0 : index
    %81 = vector.load %arg6[%c0_36, %c0_37] : memref<16x64xf32, #tpu.memory_space<vmem>>, vector<16x64xf32>
    %82 = arith.truncf %80 : vector<16x16xf32> to vector<16x16xbf16>
    %c32 = arith.constant 32 : index
    %c0_38 = arith.constant 0 : index
    %83 = vector.load %arg2[%c32, %c0_38] : memref<64x64xbf16, #tpu.memory_space<vmem>>, vector<16x64xbf16>
    %cst_39 = arith.constant dense<0.000000e+00> : vector<16x64xf32>
    %84 = tpu.matmul %82, %83, %cst_39 {dimension_numbers = #tpu.dot_dimension_numbers<[1], [0], [0], [1], [0, 0, 1, 1], [], []>} : vector<16x16xbf16>, vector<16x64xbf16>, vector<16x64xf32> -> vector<16x64xf32>
    %85 = arith.addf %81, %84 : vector<16x64xf32>
    %c0_40 = arith.constant 0 : index
    %c0_41 = arith.constant 0 : index
    %86 = vector.load %arg6[%c0_40, %c0_41] : memref<16x64xf32, #tpu.memory_space<vmem>>, vector<16x64xf32>
    tpu.vector_store %arg6[%c0_40, %c0_41], %85 {strides = array<i32>} : memref<16x64xf32, #tpu.memory_space<vmem>>, vector<16x64xf32>,
    %87 = vector.extract_strided_slice %8 {offsets = [0, 48], sizes = [16, 16], strides = [1, 1]} : vector<16x192xbf16> to vector<16x16xbf16>
    %88 = arith.extf %87 : vector<16x16xbf16> to vector<16x16xf32>
    %cst_42 = arith.constant 2.500000e-01 : f32
    %89 = vector.broadcast %cst_42 : f32 to vector<16x16xf32>
    %90 = arith.mulf %88, %89 : vector<16x16xf32>
    %91 = arith.truncf %90 : vector<16x16xf32> to vector<16x16xbf16>
    %92 = vector.extract_strided_slice %8 {offsets = [0, 112], sizes = [16, 16], strides = [1, 1]} : vector<16x192xbf16> to vector<16x16xbf16>
    %93 = vector.extract_strided_slice %8 {offsets = [0, 176], sizes = [16, 16], strides = [1, 1]} : vector<16x192xbf16> to vector<16x16xbf16>
    %cst_43 = arith.constant dense<0.000000e+00> : vector<16x16xf32>
    %94 = tpu.matmul %91, %92, %cst_43 {dimension_numbers = #tpu.dot_dimension_numbers<[1], [1], [0], [0], [0, 0, 1, 0], [], []>} : vector<16x16xbf16>, vector<16x16xbf16>, vector<16x16xf32> -> vector<16x16xf32>
    %cst_44 = arith.constant dense<0xFF800000> : vector<16xf32>
    %95 = vector.multi_reduction <maximumf>, %94, %cst_44 [1] : vector<16x16xf32> to vector<16xf32>
    %96 = vector.shape_cast %95 : vector<16xf32> to vector<16x1xf32>
    %97 = vector.broadcast %96 : vector<16x1xf32> to vector<16x16xf32>
    %98 = arith.subf %94, %97 : vector<16x16xf32>
    %99 = math.exp %98 : vector<16x16xf32>
    %cst_45 = arith.constant dense<0.000000e+00> : vector<16xf32>
    %100 = vector.multi_reduction <add>, %99, %cst_45 [1] : vector<16x16xf32> to vector<16xf32>
    %101 = vector.shape_cast %100 : vector<16xf32> to vector<16x1xf32>
    %102 = arith.truncf %99 : vector<16x16xf32> to vector<16x16xbf16>
    %cst_46 = arith.constant dense<0.000000e+00> : vector<16x16xf32>
    %103 = tpu.matmul %102, %93, %cst_46 {dimension_numbers = #tpu.dot_dimension_numbers<[1], [0], [0], [1], [0, 0, 1, 1], [], []>} : vector<16x16xbf16>, vector<16x16xbf16>, vector<16x16xf32> -> vector<16x16xf32>
    %104 = tpu.reciprocal %101 {approx = true} : vector<16x1xf32> -> vector<16x1xf32>
    %105 = vector.broadcast %104 : vector<16x1xf32> to vector<16x16xf32>
    %106 = arith.mulf %103, %105 : vector<16x16xf32>
    %c0_47 = arith.constant 0 : index
    %c0_48 = arith.constant 0 : index
    %107 = vector.load %arg6[%c0_47, %c0_48] : memref<16x64xf32, #tpu.memory_space<vmem>>, vector<16x64xf32>
    %108 = arith.truncf %106 : vector<16x16xf32> to vector<16x16xbf16>
    %c48 = arith.constant 48 : index
    %c0_49 = arith.constant 0 : index
    %109 = vector.load %arg2[%c48, %c0_49] : memref<64x64xbf16, #tpu.memory_space<vmem>>, vector<16x64xbf16>
    %cst_50 = arith.constant dense<0.000000e+00> : vector<16x64xf32>
    %110 = tpu.matmul %108, %109, %cst_50 {dimension_numbers = #tpu.dot_dimension_numbers<[1], [0], [0], [1], [0, 0, 1, 1], [], []>} : vector<16x16xbf16>, vector<16x64xbf16>, vector<16x64xf32> -> vector<16x64xf32>
    %111 = arith.addf %107, %110 : vector<16x64xf32>
    %c0_51 = arith.constant 0 : index
    %c0_52 = arith.constant 0 : index
    %112 = vector.load %arg6[%c0_51, %c0_52] : memref<16x64xf32, #tpu.memory_space<vmem>>, vector<16x64xf32>
    tpu.vector_store %arg6[%c0_51, %c0_52], %111 {strides = array<i32>} : memref<16x64xf32, #tpu.memory_space<vmem>>, vector<16x64xf32>,
    %c0_53 = arith.constant 0 : index
    %c0_54 = arith.constant 0 : index
    %113 = vector.load %arg6[%c0_53, %c0_54] : memref<16x64xf32, #tpu.memory_space<vmem>>, vector<16x64xf32>
    %114 = arith.truncf %113 : vector<16x64xf32> to vector<16x64xbf16>
    %c0_55 = arith.constant 0 : index
    %c0_56 = arith.constant 0 : index
    %c0_57 = arith.constant 0 : index
    %115 = vector.load %arg5[%c0_55, %c0_56, %c0_57] : memref<1x16x64xbf16, #tpu.memory_space<vmem>>, vector<1x16x64xbf16>
    %116 = vector.shape_cast %115 : vector<1x16x64xbf16> to vector<16x64xbf16>
    %117 = vector.shape_cast %114 : vector<16x64xbf16> to vector<1x16x64xbf16>
    tpu.vector_store %arg5[%c0_55, %c0_56, %c0_57], %117 {strides = array<i32>} : memref<1x16x64xbf16, #tpu.memory_space<vmem>>, vector<1x16x64xbf16>,
    return
  }
  func.func @transform_0(%arg0: i32) -> (i32, i32, i32) {
    %c0_i32 = arith.constant 0 : i32
    %c0_i32_0 = arith.constant 0 : i32
    %c0_i32_1 = arith.constant 0 : i32
    return %arg0, %c0_i32, %c0_i32_0 : i32, i32, i32
  }
  func.func @transform_1(%arg0: i32) -> (i32, i32) {
    %c0_i32 = arith.constant 0 : i32
    %c0_i32_0 = arith.constant 0 : i32
    %c0_i32_1 = arith.constant 0 : i32
    return %c0_i32, %c0_i32_0 : i32, i32
  }
  func.func @transform_2(%arg0: i32) -> (i32, i32) {
    %c0_i32 = arith.constant 0 : i32
    %c0_i32_0 = arith.constant 0 : i32
    %c0_i32_1 = arith.constant 0 : i32
    return %c0_i32, %c0_i32_0 : i32, i32
  }
  func.func @transform_3(%arg0: i32) -> (i32, i32, i32) {
    %c0_i32 = arith.constant 0 : i32
    %c0_i32_0 = arith.constant 0 : i32
    %c0_i32_1 = arith.constant 0 : i32
    return %arg0, %c0_i32, %c0_i32_0 : i32, i32, i32
  }
  func.func @transform_4(%arg0: i32) -> (i32, i32, i32) {
    %c0_i32 = arith.constant 0 : i32
    %c0_i32_0 = arith.constant 0 : i32
    %c0_i32_1 = arith.constant 0 : i32
    return %arg0, %c0_i32, %c0_i32_0 : i32, i32, i32
  }
}

module attributes {stable_mosaic.version = 11 : i64} {
  func.func @_linear_kernel(%arg0: i32, %arg1: i32, %arg2: i32, %arg3: memref<32x64xbf16, #tpu.memory_space<vmem>>, %arg4: memref<64x192xbf16, #tpu.memory_space<vmem>>, %arg5: memref<1x192xf32, #tpu.memory_space<vmem>>, %arg6: memref<1x64xf32, #tpu.memory_space<vmem>>, %arg7: memref<1x64xf32, #tpu.memory_space<vmem>>, %arg8: memref<32x192xbf16, #tpu.memory_space<vmem>>, %arg9: memref<32x64xbf16, #tpu.memory_space<vmem>>) attributes {dimension_semantics = [#tpu.dimension_semantics<parallel>, #tpu.dimension_semantics<arbitrary>, #tpu.dimension_semantics<arbitrary>], iteration_bounds = array<i64: 1, 1, 1>, scalar_prefetch = 0 : i64, scratch_operands = 1 : i64, tpu.core_type = #tpu.core_type<tc>, window_params = [{transform_indices = @transform_0, window_bounds = array<i64: 32, 64>}, {transform_indices = @transform_1, window_bounds = array<i64: 64, 192>}, {transform_indices = @transform_2, window_bounds = array<i64: 1, 192>}, {pipeline_mode = #tpu.pipeline_mode<synchronous>, transform_indices = @transform_3, window_bounds = array<i64: 1, 64>}, {pipeline_mode = #tpu.pipeline_mode<synchronous>, transform_indices = @transform_4, window_bounds = array<i64: 1, 64>}, {transform_indices = @transform_5, window_bounds = array<i64: 32, 192>}]} {
    %c0_i32 = arith.constant 0 : i32
    %0 = arith.cmpi eq, %arg1, %c0_i32 : i32
    %1 = arith.extui %0 : i1 to i32
    %c0_i32_0 = arith.constant 0 : i32
    %2 = arith.cmpi ne, %1, %c0_i32_0 : i32
    scf.if %2 {
      %c0_8 = arith.constant 0 : index
      %c0_9 = arith.constant 0 : index
      %11 = vector.load %arg3[%c0_8, %c0_9] : memref<32x64xbf16, #tpu.memory_space<vmem>>, vector<32x64xbf16>
      %12 = arith.extf %11 : vector<32x64xbf16> to vector<32x64xf32>
      %cst_10 = arith.constant dense<0.000000e+00> : vector<32xf32>
      %13 = vector.multi_reduction <add>, %12, %cst_10 [1] : vector<32x64xf32> to vector<32xf32>
      %14 = vector.shape_cast %13 : vector<32xf32> to vector<32x1xf32>
      %cst_11 = arith.constant 6.400000e+01 : f32
      %15 = vector.broadcast %cst_11 : f32 to vector<32x1xf32>
      %16 = arith.divf %14, %15 : vector<32x1xf32>
      %17 = vector.broadcast %16 : vector<32x1xf32> to vector<32x64xf32>
      %18 = arith.subf %12, %17 : vector<32x64xf32>
      %19 = arith.mulf %18, %18 : vector<32x64xf32>
      %cst_12 = arith.constant dense<0.000000e+00> : vector<32xf32>
      %20 = vector.multi_reduction <add>, %19, %cst_12 [1] : vector<32x64xf32> to vector<32xf32>
      %21 = vector.shape_cast %20 : vector<32xf32> to vector<32x1xf32>
      %cst_13 = arith.constant 6.400000e+01 : f32
      %22 = vector.broadcast %cst_13 : f32 to vector<32x1xf32>
      %23 = arith.divf %21, %22 : vector<32x1xf32>
      %24 = vector.broadcast %16 : vector<32x1xf32> to vector<32x64xf32>
      %25 = arith.subf %12, %24 : vector<32x64xf32>
      %cst_14 = arith.constant 9.99999974E-6 : f32
      %26 = vector.broadcast %cst_14 : f32 to vector<32x1xf32>
      %27 = arith.addf %23, %26 : vector<32x1xf32>
      %28 = math.rsqrt %27 : vector<32x1xf32>
      %29 = vector.broadcast %28 : vector<32x1xf32> to vector<32x64xf32>
      %30 = arith.mulf %25, %29 : vector<32x64xf32>
      %c0_15 = arith.constant 0 : index
      %c0_16 = arith.constant 0 : index
      %31 = vector.load %arg6[%c0_15, %c0_16] : memref<1x64xf32, #tpu.memory_space<vmem>>, vector<1x64xf32>
      %32 = vector.broadcast %31 : vector<1x64xf32> to vector<32x64xf32>
      %33 = arith.mulf %30, %32 : vector<32x64xf32>
      %c0_17 = arith.constant 0 : index
      %c0_18 = arith.constant 0 : index
      %34 = vector.load %arg7[%c0_17, %c0_18] : memref<1x64xf32, #tpu.memory_space<vmem>>, vector<1x64xf32>
      %35 = vector.broadcast %34 : vector<1x64xf32> to vector<32x64xf32>
      %36 = arith.addf %33, %35 : vector<32x64xf32>
      %37 = arith.truncf %36 : vector<32x64xf32> to vector<32x64xbf16>
      %c0_19 = arith.constant 0 : index
      %c0_20 = arith.constant 0 : index
      %38 = vector.load %arg9[%c0_19, %c0_20] : memref<32x64xbf16, #tpu.memory_space<vmem>>, vector<32x64xbf16>
      tpu.vector_store %arg9[%c0_19, %c0_20], %37 {strides = array<i32>} : memref<32x64xbf16, #tpu.memory_space<vmem>>, vector<32x64xbf16>,
    } else {
    }
    %c0 = arith.constant 0 : index
    %c0_1 = arith.constant 0 : index
    %3 = vector.load %arg9[%c0, %c0_1] : memref<32x64xbf16, #tpu.memory_space<vmem>>, vector<32x64xbf16>
    %c0_2 = arith.constant 0 : index
    %c0_3 = arith.constant 0 : index
    %4 = vector.load %arg4[%c0_2, %c0_3] : memref<64x192xbf16, #tpu.memory_space<vmem>>, vector<64x192xbf16>
    %cst = arith.constant dense<0.000000e+00> : vector<32x192xf32>
    %5 = tpu.matmul %3, %4, %cst {dimension_numbers = #tpu.dot_dimension_numbers<[1], [0], [0], [1], [0, 0, 1, 1], [], []>} : vector<32x64xbf16>, vector<64x192xbf16>, vector<32x192xf32> -> vector<32x192xf32>
    %c0_4 = arith.constant 0 : index
    %c0_5 = arith.constant 0 : index
    %6 = vector.load %arg5[%c0_4, %c0_5] : memref<1x192xf32, #tpu.memory_space<vmem>>, vector<1x192xf32>
    %7 = vector.broadcast %6 : vector<1x192xf32> to vector<32x192xf32>
    %8 = arith.addf %5, %7 : vector<32x192xf32>
    %9 = arith.truncf %8 : vector<32x192xf32> to vector<32x192xbf16>
    %c0_6 = arith.constant 0 : index
    %c0_7 = arith.constant 0 : index
    %10 = vector.load %arg8[%c0_6, %c0_7] : memref<32x192xbf16, #tpu.memory_space<vmem>>, vector<32x192xbf16>
    tpu.vector_store %arg8[%c0_6, %c0_7], %9 {strides = array<i32>} : memref<32x192xbf16, #tpu.memory_space<vmem>>, vector<32x192xbf16>,
    return
  }
  func.func @transform_0(%arg0: i32, %arg1: i32, %arg2: i32) -> (i32, i32) {
    %c0_i32 = arith.constant 0 : i32
    return %arg0, %arg2 : i32, i32
  }
  func.func @transform_1(%arg0: i32, %arg1: i32, %arg2: i32) -> (i32, i32) {
    %c0_i32 = arith.constant 0 : i32
    return %arg2, %arg1 : i32, i32
  }
  func.func @transform_2(%arg0: i32, %arg1: i32, %arg2: i32) -> (i32, i32) {
    %c0_i32 = arith.constant 0 : i32
    %c0_i32_0 = arith.constant 0 : i32
    return %c0_i32, %arg1 : i32, i32
  }
  func.func @transform_3(%arg0: i32, %arg1: i32, %arg2: i32) -> (i32, i32) {
    %c0_i32 = arith.constant 0 : i32
    %c0_i32_0 = arith.constant 0 : i32
    %c0_i32_1 = arith.constant 0 : i32
    return %c0_i32, %c0_i32_0 : i32, i32
  }
  func.func @transform_4(%arg0: i32, %arg1: i32, %arg2: i32) -> (i32, i32) {
    %c0_i32 = arith.constant 0 : i32
    %c0_i32_0 = arith.constant 0 : i32
    %c0_i32_1 = arith.constant 0 : i32
    return %c0_i32, %c0_i32_0 : i32, i32
  }
  func.func @transform_5(%arg0: i32, %arg1: i32, %arg2: i32) -> (i32, i32) {
    %c0_i32 = arith.constant 0 : i32
    return %arg0, %arg1 : i32, i32
  }
}

module attributes {stable_mosaic.version = 11 : i64} {
  func.func @_linear_kernel(%arg0: i32, %arg1: i32, %arg2: i32, %arg3: memref<32x64xbf16, #tpu.memory_space<vmem>>, %arg4: memref<64x512xbf16, #tpu.memory_space<vmem>>, %arg5: memref<1x512xf32, #tpu.memory_space<vmem>>, %arg6: memref<1x64xf32, #tpu.memory_space<vmem>>, %arg7: memref<1x64xf32, #tpu.memory_space<vmem>>, %arg8: memref<32x512xbf16, #tpu.memory_space<vmem>>, %arg9: memref<32x64xbf16, #tpu.memory_space<vmem>>) attributes {dimension_semantics = [#tpu.dimension_semantics<parallel>, #tpu.dimension_semantics<arbitrary>, #tpu.dimension_semantics<arbitrary>], iteration_bounds = array<i64: 1, 4, 1>, scalar_prefetch = 0 : i64, scratch_operands = 1 : i64, tpu.core_type = #tpu.core_type<tc>, window_params = [{transform_indices = @transform_0, window_bounds = array<i64: 32, 64>}, {transform_indices = @transform_1, window_bounds = array<i64: 64, 512>}, {transform_indices = @transform_2, window_bounds = array<i64: 1, 512>}, {pipeline_mode = #tpu.pipeline_mode<synchronous>, transform_indices = @transform_3, window_bounds = array<i64: 1, 64>}, {pipeline_mode = #tpu.pipeline_mode<synchronous>, transform_indices = @transform_4, window_bounds = array<i64: 1, 64>}, {transform_indices = @transform_5, window_bounds = array<i64: 32, 512>}]} {
    %c0_i32 = arith.constant 0 : i32
    %0 = arith.cmpi eq, %arg1, %c0_i32 : i32
    %1 = arith.extui %0 : i1 to i32
    %c0_i32_0 = arith.constant 0 : i32
    %2 = arith.cmpi ne, %1, %c0_i32_0 : i32
    scf.if %2 {
      %c0_24 = arith.constant 0 : index
      %c0_25 = arith.constant 0 : index
      %52 = vector.load %arg3[%c0_24, %c0_25] : memref<32x64xbf16, #tpu.memory_space<vmem>>, vector<32x64xbf16>
      %53 = arith.extf %52 : vector<32x64xbf16> to vector<32x64xf32>
      %cst_26 = arith.constant dense<0.000000e+00> : vector<32xf32>
      %54 = vector.multi_reduction <add>, %53, %cst_26 [1] : vector<32x64xf32> to vector<32xf32>
      %55 = vector.shape_cast %54 : vector<32xf32> to vector<32x1xf32>
      %cst_27 = arith.constant 6.400000e+01 : f32
      %56 = vector.broadcast %cst_27 : f32 to vector<32x1xf32>
      %57 = arith.divf %55, %56 : vector<32x1xf32>
      %58 = vector.broadcast %57 : vector<32x1xf32> to vector<32x64xf32>
      %59 = arith.subf %53, %58 : vector<32x64xf32>
      %60 = arith.mulf %59, %59 : vector<32x64xf32>
      %cst_28 = arith.constant dense<0.000000e+00> : vector<32xf32>
      %61 = vector.multi_reduction <add>, %60, %cst_28 [1] : vector<32x64xf32> to vector<32xf32>
      %62 = vector.shape_cast %61 : vector<32xf32> to vector<32x1xf32>
      %cst_29 = arith.constant 6.400000e+01 : f32
      %63 = vector.broadcast %cst_29 : f32 to vector<32x1xf32>
      %64 = arith.divf %62, %63 : vector<32x1xf32>
      %65 = vector.broadcast %57 : vector<32x1xf32> to vector<32x64xf32>
      %66 = arith.subf %53, %65 : vector<32x64xf32>
      %cst_30 = arith.constant 9.99999974E-6 : f32
      %67 = vector.broadcast %cst_30 : f32 to vector<32x1xf32>
      %68 = arith.addf %64, %67 : vector<32x1xf32>
      %69 = math.rsqrt %68 : vector<32x1xf32>
      %70 = vector.broadcast %69 : vector<32x1xf32> to vector<32x64xf32>
      %71 = arith.mulf %66, %70 : vector<32x64xf32>
      %c0_31 = arith.constant 0 : index
      %c0_32 = arith.constant 0 : index
      %72 = vector.load %arg6[%c0_31, %c0_32] : memref<1x64xf32, #tpu.memory_space<vmem>>, vector<1x64xf32>
      %73 = vector.broadcast %72 : vector<1x64xf32> to vector<32x64xf32>
      %74 = arith.mulf %71, %73 : vector<32x64xf32>
      %c0_33 = arith.constant 0 : index
      %c0_34 = arith.constant 0 : index
      %75 = vector.load %arg7[%c0_33, %c0_34] : memref<1x64xf32, #tpu.memory_space<vmem>>, vector<1x64xf32>
      %76 = vector.broadcast %75 : vector<1x64xf32> to vector<32x64xf32>
      %77 = arith.addf %74, %76 : vector<32x64xf32>
      %78 = arith.truncf %77 : vector<32x64xf32> to vector<32x64xbf16>
      %c0_35 = arith.constant 0 : index
      %c0_36 = arith.constant 0 : index
      %79 = vector.load %arg9[%c0_35, %c0_36] : memref<32x64xbf16, #tpu.memory_space<vmem>>, vector<32x64xbf16>
      tpu.vector_store %arg9[%c0_35, %c0_36], %78 {strides = array<i32>} : memref<32x64xbf16, #tpu.memory_space<vmem>>, vector<32x64xbf16>,
    } else {
    }
    %c0 = arith.constant 0 : index
    %c0_1 = arith.constant 0 : index
    %3 = vector.load %arg9[%c0, %c0_1] : memref<32x64xbf16, #tpu.memory_space<vmem>>, vector<32x64xbf16>
    %c0_2 = arith.constant 0 : index
    %c0_3 = arith.constant 0 : index
    %4 = vector.load %arg4[%c0_2, %c0_3] : memref<64x512xbf16, #tpu.memory_space<vmem>>, vector<64x512xbf16>
    %cst = arith.constant dense<0.000000e+00> : vector<32x512xf32>
    %5 = tpu.matmul %3, %4, %cst {dimension_numbers = #tpu.dot_dimension_numbers<[1], [0], [0], [1], [0, 0, 1, 1], [], []>} : vector<32x64xbf16>, vector<64x512xbf16>, vector<32x512xf32> -> vector<32x512xf32>
    %c0_4 = arith.constant 0 : index
    %c0_5 = arith.constant 0 : index
    %6 = vector.load %arg5[%c0_4, %c0_5] : memref<1x512xf32, #tpu.memory_space<vmem>>, vector<1x512xf32>
    %7 = vector.broadcast %6 : vector<1x512xf32> to vector<32x512xf32>
    %8 = arith.addf %5, %7 : vector<32x512xf32>
    %cst_6 = arith.constant 5.000000e-01 : f32
    %9 = vector.broadcast %cst_6 : f32 to vector<32x512xf32>
    %10 = arith.mulf %9, %8 : vector<32x512xf32>
    %cst_7 = arith.constant 0.707106769 : f32
    %11 = vector.broadcast %cst_7 : f32 to vector<32x512xf32>
    %12 = arith.mulf %8, %11 : vector<32x512xf32>
    %cst_8 = arith.constant 0.000000e+00 : f32
    %13 = vector.broadcast %cst_8 : f32 to vector<32x512xf32>
    %14 = arith.cmpf oge, %12, %13 : vector<32x512xf32>
    %cst_9 = arith.constant 1.000000e+00 : f32
    %cst_10 = arith.constant -1.000000e+00 : f32
    %15 = vector.broadcast %cst_9 : f32 to vector<32x512xf32>
    %16 = vector.broadcast %cst_10 : f32 to vector<32x512xf32>
    %17 = arith.select %14, %15, %16 : vector<32x512xi1>, vector<32x512xf32>
    %18 = math.absf %12 : vector<32x512xf32>
    %cst_11 = arith.constant 0.327591091 : f32
    %19 = vector.broadcast %cst_11 : f32 to vector<32x512xf32>
    %20 = arith.mulf %19, %18 : vector<32x512xf32>
    %cst_12 = arith.constant 1.000000e+00 : f32
    %21 = vector.broadcast %cst_12 : f32 to vector<32x512xf32>
    %22 = arith.addf %21, %20 : vector<32x512xf32>
    %cst_13 = arith.constant 1.000000e+00 : f32
    %23 = vector.broadcast %cst_13 : f32 to vector<32x512xf32>
    %24 = arith.divf %23, %22 : vector<32x512xf32>
    %cst_14 = arith.constant 1.06140542 : f32
    %25 = vector.broadcast %cst_14 : f32 to vector<32x512xf32>
    %26 = arith.mulf %25, %24 : vector<32x512xf32>
    %cst_15 = arith.constant -1.45315206 : f32
    %27 = vector.broadcast %cst_15 : f32 to vector<32x512xf32>
    %28 = arith.addf %26, %27 : vector<32x512xf32>
    %29 = arith.mulf %28, %24 : vector<32x512xf32>
    %cst_16 = arith.constant 1.42141378 : f32
    %30 = vector.broadcast %cst_16 : f32 to vector<32x512xf32>
    %31 = arith.addf %29, %30 : vector<32x512xf32>
    %32 = arith.mulf %31, %24 : vector<32x512xf32>
    %cst_17 = arith.constant -0.284496725 : f32
    %33 = vector.broadcast %cst_17 : f32 to vector<32x512xf32>
    %34 = arith.addf %32, %33 : vector<32x512xf32>
    %35 = arith.mulf %34, %24 : vector<32x512xf32>
    %cst_18 = arith.constant 0.254829586 : f32
    %36 = vector.broadcast %cst_18 : f32 to vector<32x512xf32>
    %37 = arith.addf %35, %36 : vector<32x512xf32>
    %38 = arith.mulf %37, %24 : vector<32x512xf32>
    %cst_19 = arith.constant 0.000000e+00 : f32
    %39 = vector.broadcast %cst_19 : f32 to vector<32x512xf32>
    %40 = arith.subf %39, %18 : vector<32x512xf32>
    %41 = arith.mulf %40, %18 : vector<32x512xf32>
    %42 = math.exp %41 : vector<32x512xf32>
    %43 = arith.mulf %38, %42 : vector<32x512xf32>
    %cst_20 = arith.constant 1.000000e+00 : f32
    %44 = vector.broadcast %cst_20 : f32 to vector<32x512xf32>
    %45 = arith.subf %44, %43 : vector<32x512xf32>
    %46 = arith.mulf %17, %45 : vector<32x512xf32>
    %cst_21 = arith.constant 1.000000e+00 : f32
    %47 = vector.broadcast %cst_21 : f32 to vector<32x512xf32>
    %48 = arith.addf %47, %46 : vector<32x512xf32>
    %49 = arith.mulf %10, %48 : vector<32x512xf32>
    %50 = arith.truncf %49 : vector<32x512xf32> to vector<32x512xbf16>
    %c0_22 = arith.constant 0 : index
    %c0_23 = arith.constant 0 : index
    %51 = vector.load %arg8[%c0_22, %c0_23] : memref<32x512xbf16, #tpu.memory_space<vmem>>, vector<32x512xbf16>
    tpu.vector_store %arg8[%c0_22, %c0_23], %50 {strides = array<i32>} : memref<32x512xbf16, #tpu.memory_space<vmem>>, vector<32x512xbf16>,
    return
  }
  func.func @transform_0(%arg0: i32, %arg1: i32, %arg2: i32) -> (i32, i32) {
    %c0_i32 = arith.constant 0 : i32
    return %arg0, %arg2 : i32, i32
  }
  func.func @transform_1(%arg0: i32, %arg1: i32, %arg2: i32) -> (i32, i32) {
    %c0_i32 = arith.constant 0 : i32
    return %arg2, %arg1 : i32, i32
  }
  func.func @transform_2(%arg0: i32, %arg1: i32, %arg2: i32) -> (i32, i32) {
    %c0_i32 = arith.constant 0 : i32
    %c0_i32_0 = arith.constant 0 : i32
    return %c0_i32, %arg1 : i32, i32
  }
  func.func @transform_3(%arg0: i32, %arg1: i32, %arg2: i32) -> (i32, i32) {
    %c0_i32 = arith.constant 0 : i32
    %c0_i32_0 = arith.constant 0 : i32
    %c0_i32_1 = arith.constant 0 : i32
    return %c0_i32, %c0_i32_0 : i32, i32
  }
  func.func @transform_4(%arg0: i32, %arg1: i32, %arg2: i32) -> (i32, i32) {
    %c0_i32 = arith.constant 0 : i32
    %c0_i32_0 = arith.constant 0 : i32
    %c0_i32_1 = arith.constant 0 : i32
    return %c0_i32, %c0_i32_0 : i32, i32
  }
  func.func @transform_5(%arg0: i32, %arg1: i32, %arg2: i32) -> (i32, i32) {
    %c0_i32 = arith.constant 0 : i32
    return %arg0, %arg1 : i32, i32
  }
}

module attributes {stable_mosaic.version = 11 : i64} {
  func.func @_linear_kernel(%arg0: i32, %arg1: i32, %arg2: i32, %arg3: memref<32x512xbf16, #tpu.memory_space<vmem>>, %arg4: memref<512x64xbf16, #tpu.memory_space<vmem>>, %arg5: memref<1x64xf32, #tpu.memory_space<vmem>>, %arg6: memref<32x64xbf16, #tpu.memory_space<vmem>>, %arg7: memref<32x64xbf16, #tpu.memory_space<vmem>>, %arg8: memref<32x64xf32, #tpu.memory_space<vmem>>) attributes {dimension_semantics = [#tpu.dimension_semantics<parallel>, #tpu.dimension_semantics<parallel>, #tpu.dimension_semantics<arbitrary>], iteration_bounds = array<i64: 1, 1, 4>, scalar_prefetch = 0 : i64, scratch_operands = 1 : i64, tpu.core_type = #tpu.core_type<tc>, window_params = [{transform_indices = @transform_0, window_bounds = array<i64: 32, 512>}, {transform_indices = @transform_1, window_bounds = array<i64: 512, 64>}, {transform_indices = @transform_2, window_bounds = array<i64: 1, 64>}, {transform_indices = @transform_3, window_bounds = array<i64: 32, 64>}, {transform_indices = @transform_4, window_bounds = array<i64: 32, 64>}]} {
    %c0 = arith.constant 0 : index
    %c0_0 = arith.constant 0 : index
    %0 = vector.load %arg3[%c0, %c0_0] : memref<32x512xbf16, #tpu.memory_space<vmem>>, vector<32x512xbf16>
    %c0_i32 = arith.constant 0 : i32
    %1 = arith.cmpi eq, %arg2, %c0_i32 : i32
    %2 = arith.extui %1 : i1 to i32
    %c0_i32_1 = arith.constant 0 : i32
    %3 = arith.cmpi ne, %2, %c0_i32_1 : i32
    scf.if %3 {
      %cst_9 = arith.constant 0.000000e+00 : f32
      %12 = vector.broadcast %cst_9 : f32 to vector<32x64xf32>
      %c0_10 = arith.constant 0 : index
      %c0_11 = arith.constant 0 : index
      %13 = vector.load %arg8[%c0_10, %c0_11] : memref<32x64xf32, #tpu.memory_space<vmem>>, vector<32x64xf32>
      tpu.vector_store %arg8[%c0_10, %c0_11], %12 {strides = array<i32>} : memref<32x64xf32, #tpu.memory_space<vmem>>, vector<32x64xf32>,
    } else {
    }
    %c0_2 = arith.constant 0 : index
    %c0_3 = arith.constant 0 : index
    %4 = vector.load %arg8[%c0_2, %c0_3] : memref<32x64xf32, #tpu.memory_space<vmem>>, vector<32x64xf32>
    %c0_4 = arith.constant 0 : index
    %c0_5 = arith.constant 0 : index
    %5 = vector.load %arg4[%c0_4, %c0_5] : memref<512x64xbf16, #tpu.memory_space<vmem>>, vector<512x64xbf16>
    %cst = arith.constant dense<0.000000e+00> : vector<32x64xf32>
    %6 = tpu.matmul %0, %5, %cst {dimension_numbers = #tpu.dot_dimension_numbers<[1], [0], [0], [1], [0, 0, 1, 1], [], []>} : vector<32x512xbf16>, vector<512x64xbf16>, vector<32x64xf32> -> vector<32x64xf32>
    %7 = arith.addf %4, %6 : vector<32x64xf32>
    %c0_6 = arith.constant 0 : index
    %c0_7 = arith.constant 0 : index
    %8 = vector.load %arg8[%c0_6, %c0_7] : memref<32x64xf32, #tpu.memory_space<vmem>>, vector<32x64xf32>
    tpu.vector_store %arg8[%c0_6, %c0_7], %7 {strides = array<i32>} : memref<32x64xf32, #tpu.memory_space<vmem>>, vector<32x64xf32>,
    %c3_i32 = arith.constant 3 : i32
    %9 = arith.cmpi eq, %arg2, %c3_i32 : i32
    %10 = arith.extui %9 : i1 to i32
    %c0_i32_8 = arith.constant 0 : i32
    %11 = arith.cmpi ne, %10, %c0_i32_8 : i32
    scf.if %11 {
      %c0_9 = arith.constant 0 : index
      %c0_10 = arith.constant 0 : index
      %12 = vector.load %arg8[%c0_9, %c0_10] : memref<32x64xf32, #tpu.memory_space<vmem>>, vector<32x64xf32>
      %c0_11 = arith.constant 0 : index
      %c0_12 = arith.constant 0 : index
      %13 = vector.load %arg5[%c0_11, %c0_12] : memref<1x64xf32, #tpu.memory_space<vmem>>, vector<1x64xf32>
      %14 = vector.broadcast %13 : vector<1x64xf32> to vector<32x64xf32>
      %15 = arith.addf %12, %14 : vector<32x64xf32>
      %c0_13 = arith.constant 0 : index
      %c0_14 = arith.constant 0 : index
      %16 = vector.load %arg6[%c0_13, %c0_14] : memref<32x64xbf16, #tpu.memory_space<vmem>>, vector<32x64xbf16>
      %17 = arith.extf %16 : vector<32x64xbf16> to vector<32x64xf32>
      %18 = arith.addf %15, %17 : vector<32x64xf32>
      %19 = arith.truncf %18 : vector<32x64xf32> to vector<32x64xbf16>
      %c0_15 = arith.constant 0 : index
      %c0_16 = arith.constant 0 : index
      %20 = vector.load %arg7[%c0_15, %c0_16] : memref<32x64xbf16, #tpu.memory_space<vmem>>, vector<32x64xbf16>
      tpu.vector_store %arg7[%c0_15, %c0_16], %19 {strides = array<i32>} : memref<32x64xbf16, #tpu.memory_space<vmem>>, vector<32x64xbf16>,
    } else {
    }
    return
  }
  func.func @transform_0(%arg0: i32, %arg1: i32, %arg2: i32) -> (i32, i32) {
    %c0_i32 = arith.constant 0 : i32
    return %arg0, %arg2 : i32, i32
  }
  func.func @transform_1(%arg0: i32, %arg1: i32, %arg2: i32) -> (i32, i32) {
    %c0_i32 = arith.constant 0 : i32
    return %arg2, %arg1 : i32, i32
  }
  func.func @transform_2(%arg0: i32, %arg1: i32, %arg2: i32) -> (i32, i32) {
    %c0_i32 = arith.constant 0 : i32
    %c0_i32_0 = arith.constant 0 : i32
    return %c0_i32, %arg1 : i32, i32
  }
  func.func @transform_3(%arg0: i32, %arg1: i32, %arg2: i32) -> (i32, i32) {
    %c0_i32 = arith.constant 0 : i32
    return %arg0, %arg1 : i32, i32
  }
  func.func @transform_4(%arg0: i32, %arg1: i32, %arg2: i32) -> (i32, i32) {
    %c0_i32 = arith.constant 0 : i32
    return %arg0, %arg1 : i32, i32
  }
}

module attributes {stable_mosaic.version = 11 : i64} {
  func.func @_linear_kernel(%arg0: i32, %arg1: i32, %arg2: i32, %arg3: memref<32x64xbf16, #tpu.memory_space<vmem>>, %arg4: memref<64x512xbf16, #tpu.memory_space<vmem>>, %arg5: memref<1x512xf32, #tpu.memory_space<vmem>>, %arg6: memref<1x64xf32, #tpu.memory_space<vmem>>, %arg7: memref<1x64xf32, #tpu.memory_space<vmem>>, %arg8: memref<32x512xbf16, #tpu.memory_space<vmem>>, %arg9: memref<32x64xbf16, #tpu.memory_space<vmem>>) attributes {dimension_semantics = [#tpu.dimension_semantics<parallel>, #tpu.dimension_semantics<arbitrary>, #tpu.dimension_semantics<arbitrary>], iteration_bounds = array<i64: 1, 4, 1>, scalar_prefetch = 0 : i64, scratch_operands = 1 : i64, tpu.core_type = #tpu.core_type<tc>, window_params = [{transform_indices = @transform_0, window_bounds = array<i64: 32, 64>}, {transform_indices = @transform_1, window_bounds = array<i64: 64, 512>}, {transform_indices = @transform_2, window_bounds = array<i64: 1, 512>}, {pipeline_mode = #tpu.pipeline_mode<synchronous>, transform_indices = @transform_3, window_bounds = array<i64: 1, 64>}, {pipeline_mode = #tpu.pipeline_mode<synchronous>, transform_indices = @transform_4, window_bounds = array<i64: 1, 64>}, {transform_indices = @transform_5, window_bounds = array<i64: 32, 512>}]} {
    %c0_i32 = arith.constant 0 : i32
    %0 = arith.cmpi eq, %arg1, %c0_i32 : i32
    %1 = arith.extui %0 : i1 to i32
    %c0_i32_0 = arith.constant 0 : i32
    %2 = arith.cmpi ne, %1, %c0_i32_0 : i32
    scf.if %2 {
      %c0_24 = arith.constant 0 : index
      %c0_25 = arith.constant 0 : index
      %52 = vector.load %arg3[%c0_24, %c0_25] : memref<32x64xbf16, #tpu.memory_space<vmem>>, vector<32x64xbf16>
      %53 = arith.extf %52 : vector<32x64xbf16> to vector<32x64xf32>
      %cst_26 = arith.constant dense<0.000000e+00> : vector<32xf32>
      %54 = vector.multi_reduction <add>, %53, %cst_26 [1] : vector<32x64xf32> to vector<32xf32>
      %55 = vector.shape_cast %54 : vector<32xf32> to vector<32x1xf32>
      %cst_27 = arith.constant 6.400000e+01 : f32
      %56 = vector.broadcast %cst_27 : f32 to vector<32x1xf32>
      %57 = arith.divf %55, %56 : vector<32x1xf32>
      %58 = vector.broadcast %57 : vector<32x1xf32> to vector<32x64xf32>
      %59 = arith.subf %53, %58 : vector<32x64xf32>
      %60 = arith.mulf %59, %59 : vector<32x64xf32>
      %cst_28 = arith.constant dense<0.000000e+00> : vector<32xf32>
      %61 = vector.multi_reduction <add>, %60, %cst_28 [1] : vector<32x64xf32> to vector<32xf32>
      %62 = vector.shape_cast %61 : vector<32xf32> to vector<32x1xf32>
      %cst_29 = arith.constant 6.400000e+01 : f32
      %63 = vector.broadcast %cst_29 : f32 to vector<32x1xf32>
      %64 = arith.divf %62, %63 : vector<32x1xf32>
      %65 = vector.broadcast %57 : vector<32x1xf32> to vector<32x64xf32>
      %66 = arith.subf %53, %65 : vector<32x64xf32>
      %cst_30 = arith.constant 9.99999974E-6 : f32
      %67 = vector.broadcast %cst_30 : f32 to vector<32x1xf32>
      %68 = arith.addf %64, %67 : vector<32x1xf32>
      %69 = math.rsqrt %68 : vector<32x1xf32>
      %70 = vector.broadcast %69 : vector<32x1xf32> to vector<32x64xf32>
      %71 = arith.mulf %66, %70 : vector<32x64xf32>
      %c0_31 = arith.constant 0 : index
      %c0_32 = arith.constant 0 : index
      %72 = vector.load %arg6[%c0_31, %c0_32] : memref<1x64xf32, #tpu.memory_space<vmem>>, vector<1x64xf32>
      %73 = vector.broadcast %72 : vector<1x64xf32> to vector<32x64xf32>
      %74 = arith.mulf %71, %73 : vector<32x64xf32>
      %c0_33 = arith.constant 0 : index
      %c0_34 = arith.constant 0 : index
      %75 = vector.load %arg7[%c0_33, %c0_34] : memref<1x64xf32, #tpu.memory_space<vmem>>, vector<1x64xf32>
      %76 = vector.broadcast %75 : vector<1x64xf32> to vector<32x64xf32>
      %77 = arith.addf %74, %76 : vector<32x64xf32>
      %78 = arith.truncf %77 : vector<32x64xf32> to vector<32x64xbf16>
      %c0_35 = arith.constant 0 : index
      %c0_36 = arith.constant 0 : index
      %79 = vector.load %arg9[%c0_35, %c0_36] : memref<32x64xbf16, #tpu.memory_space<vmem>>, vector<32x64xbf16>
      tpu.vector_store %arg9[%c0_35, %c0_36], %78 {strides = array<i32>} : memref<32x64xbf16, #tpu.memory_space<vmem>>, vector<32x64xbf16>,
    } else {
    }
    %c0 = arith.constant 0 : index
    %c0_1 = arith.constant 0 : index
    %3 = vector.load %arg9[%c0, %c0_1] : memref<32x64xbf16, #tpu.memory_space<vmem>>, vector<32x64xbf16>
    %c0_2 = arith.constant 0 : index
    %c0_3 = arith.constant 0 : index
    %4 = vector.load %arg4[%c0_2, %c0_3] : memref<64x512xbf16, #tpu.memory_space<vmem>>, vector<64x512xbf16>
    %cst = arith.constant dense<0.000000e+00> : vector<32x512xf32>
    %5 = tpu.matmul %3, %4, %cst {dimension_numbers = #tpu.dot_dimension_numbers<[1], [0], [0], [1], [0, 0, 1, 1], [], []>} : vector<32x64xbf16>, vector<64x512xbf16>, vector<32x512xf32> -> vector<32x512xf32>
    %c0_4 = arith.constant 0 : index
    %c0_5 = arith.constant 0 : index
    %6 = vector.load %arg5[%c0_4, %c0_5] : memref<1x512xf32, #tpu.memory_space<vmem>>, vector<1x512xf32>
    %7 = vector.broadcast %6 : vector<1x512xf32> to vector<32x512xf32>
    %8 = arith.addf %5, %7 : vector<32x512xf32>
    %cst_6 = arith.constant 5.000000e-01 : f32
    %9 = vector.broadcast %cst_6 : f32 to vector<32x512xf32>
    %10 = arith.mulf %9, %8 : vector<32x512xf32>
    %cst_7 = arith.constant 0.707106769 : f32
    %11 = vector.broadcast %cst_7 : f32 to vector<32x512xf32>
    %12 = arith.mulf %8, %11 : vector<32x512xf32>
    %cst_8 = arith.constant 0.000000e+00 : f32
    %13 = vector.broadcast %cst_8 : f32 to vector<32x512xf32>
    %14 = arith.cmpf oge, %12, %13 : vector<32x512xf32>
    %cst_9 = arith.constant 1.000000e+00 : f32
    %cst_10 = arith.constant -1.000000e+00 : f32
    %15 = vector.broadcast %cst_9 : f32 to vector<32x512xf32>
    %16 = vector.broadcast %cst_10 : f32 to vector<32x512xf32>
    %17 = arith.select %14, %15, %16 : vector<32x512xi1>, vector<32x512xf32>
    %18 = math.absf %12 : vector<32x512xf32>
    %cst_11 = arith.constant 0.327591091 : f32
    %19 = vector.broadcast %cst_11 : f32 to vector<32x512xf32>
    %20 = arith.mulf %19, %18 : vector<32x512xf32>
    %cst_12 = arith.constant 1.000000e+00 : f32
    %21 = vector.broadcast %cst_12 : f32 to vector<32x512xf32>
    %22 = arith.addf %21, %20 : vector<32x512xf32>
    %cst_13 = arith.constant 1.000000e+00 : f32
    %23 = vector.broadcast %cst_13 : f32 to vector<32x512xf32>
    %24 = arith.divf %23, %22 : vector<32x512xf32>
    %cst_14 = arith.constant 1.06140542 : f32
    %25 = vector.broadcast %cst_14 : f32 to vector<32x512xf32>
    %26 = arith.mulf %25, %24 : vector<32x512xf32>
    %cst_15 = arith.constant -1.45315206 : f32
    %27 = vector.broadcast %cst_15 : f32 to vector<32x512xf32>
    %28 = arith.addf %26, %27 : vector<32x512xf32>
    %29 = arith.mulf %28, %24 : vector<32x512xf32>
    %cst_16 = arith.constant 1.42141378 : f32
    %30 = vector.broadcast %cst_16 : f32 to vector<32x512xf32>
    %31 = arith.addf %29, %30 : vector<32x512xf32>
    %32 = arith.mulf %31, %24 : vector<32x512xf32>
    %cst_17 = arith.constant -0.284496725 : f32
    %33 = vector.broadcast %cst_17 : f32 to vector<32x512xf32>
    %34 = arith.addf %32, %33 : vector<32x512xf32>
    %35 = arith.mulf %34, %24 : vector<32x512xf32>
    %cst_18 = arith.constant 0.254829586 : f32
    %36 = vector.broadcast %cst_18 : f32 to vector<32x512xf32>
    %37 = arith.addf %35, %36 : vector<32x512xf32>
    %38 = arith.mulf %37, %24 : vector<32x512xf32>
    %cst_19 = arith.constant 0.000000e+00 : f32
    %39 = vector.broadcast %cst_19 : f32 to vector<32x512xf32>
    %40 = arith.subf %39, %18 : vector<32x512xf32>
    %41 = arith.mulf %40, %18 : vector<32x512xf32>
    %42 = math.exp %41 : vector<32x512xf32>
    %43 = arith.mulf %38, %42 : vector<32x512xf32>
    %cst_20 = arith.constant 1.000000e+00 : f32
    %44 = vector.broadcast %cst_20 : f32 to vector<32x512xf32>
    %45 = arith.subf %44, %43 : vector<32x512xf32>
    %46 = arith.mulf %17, %45 : vector<32x512xf32>
    %cst_21 = arith.constant 1.000000e+00 : f32
    %47 = vector.broadcast %cst_21 : f32 to vector<32x512xf32>
    %48 = arith.addf %47, %46 : vector<32x512xf32>
    %49 = arith.mulf %10, %48 : vector<32x512xf32>
    %50 = arith.truncf %49 : vector<32x512xf32> to vector<32x512xbf16>
    %c0_22 = arith.constant 0 : index
    %c0_23 = arith.constant 0 : index
    %51 = vector.load %arg8[%c0_22, %c0_23] : memref<32x512xbf16, #tpu.memory_space<vmem>>, vector<32x512xbf16>
    tpu.vector_store %arg8[%c0_22, %c0_23], %50 {strides = array<i32>} : memref<32x512xbf16, #tpu.memory_space<vmem>>, vector<32x512xbf16>,
    return
  }
  func.func @transform_0(%arg0: i32, %arg1: i32, %arg2: i32) -> (i32, i32) {
    %c0_i32 = arith.constant 0 : i32
    return %arg0, %arg2 : i32, i32
  }
  func.func @transform_1(%arg0: i32, %arg1: i32, %arg2: i32) -> (i32, i32) {
    %c0_i32 = arith.constant 0 : i32
    return %arg2, %arg1 : i32, i32
  }
  func.func @transform_2(%arg0: i32, %arg1: i32, %arg2: i32) -> (i32, i32) {
    %c0_i32 = arith.constant 0 : i32
    %c0_i32_0 = arith.constant 0 : i32
    return %c0_i32, %arg1 : i32, i32
  }
  func.func @transform_3(%arg0: i32, %arg1: i32, %arg2: i32) -> (i32, i32) {
    %c0_i32 = arith.constant 0 : i32
    %c0_i32_0 = arith.constant 0 : i32
    %c0_i32_1 = arith.constant 0 : i32
    return %c0_i32, %c0_i32_0 : i32, i32
  }
  func.func @transform_4(%arg0: i32, %arg1: i32, %arg2: i32) -> (i32, i32) {
    %c0_i32 = arith.constant 0 : i32
    %c0_i32_0 = arith.constant 0 : i32
    %c0_i32_1 = arith.constant 0 : i32
    return %c0_i32, %c0_i32_0 : i32, i32
  }
  func.func @transform_5(%arg0: i32, %arg1: i32, %arg2: i32) -> (i32, i32) {
    %c0_i32 = arith.constant 0 : i32
    return %arg0, %arg1 : i32, i32
  }
}

module attributes {stable_mosaic.version = 11 : i64} {
  func.func @_head_kernel(%arg0: i32, %arg1: memref<2x64xbf16, #tpu.memory_space<vmem>>, %arg2: memref<1x64xf32, #tpu.memory_space<vmem>>, %arg3: memref<1x64xf32, #tpu.memory_space<vmem>>, %arg4: memref<64x128xbf16, #tpu.memory_space<vmem>>, %arg5: memref<1x128xf32, #tpu.memory_space<vmem>>, %arg6: memref<128x64xbf16, #tpu.memory_space<vmem>>, %arg7: memref<1x64xf32, #tpu.memory_space<vmem>>, %arg8: memref<64x128xbf16, #tpu.memory_space<vmem>>, %arg9: memref<1x128xf32, #tpu.memory_space<vmem>>, %arg10: memref<2x128xf32, #tpu.memory_space<vmem>>) attributes {dimension_semantics = [#tpu.dimension_semantics<parallel>], iteration_bounds = array<i64: 1>, scalar_prefetch = 0 : i64, scratch_operands = 0 : i64, tpu.core_type = #tpu.core_type<tc>, window_params = [{transform_indices = @transform_0, window_bounds = array<i64: 2, 64>}, {pipeline_mode = #tpu.pipeline_mode<synchronous>, transform_indices = @transform_1, window_bounds = array<i64: 1, 64>}, {pipeline_mode = #tpu.pipeline_mode<synchronous>, transform_indices = @transform_2, window_bounds = array<i64: 1, 64>}, {pipeline_mode = #tpu.pipeline_mode<synchronous>, transform_indices = @transform_3, window_bounds = array<i64: 64, 128>}, {pipeline_mode = #tpu.pipeline_mode<synchronous>, transform_indices = @transform_4, window_bounds = array<i64: 1, 128>}, {pipeline_mode = #tpu.pipeline_mode<synchronous>, transform_indices = @transform_5, window_bounds = array<i64: 128, 64>}, {pipeline_mode = #tpu.pipeline_mode<synchronous>, transform_indices = @transform_6, window_bounds = array<i64: 1, 64>}, {pipeline_mode = #tpu.pipeline_mode<synchronous>, transform_indices = @transform_7, window_bounds = array<i64: 64, 128>}, {pipeline_mode = #tpu.pipeline_mode<synchronous>, transform_indices = @transform_8, window_bounds = array<i64: 1, 128>}, {transform_indices = @transform_9, window_bounds = array<i64: 2, 128>}]} {
    %c0 = arith.constant 0 : index
    %c0_0 = arith.constant 0 : index
    %0 = vector.load %arg1[%c0, %c0_0] : memref<2x64xbf16, #tpu.memory_space<vmem>>, vector<2x64xbf16>
    %1 = arith.extf %0 : vector<2x64xbf16> to vector<2x64xf32>
    %cst = arith.constant dense<0.000000e+00> : vector<2xf32>
    %2 = vector.multi_reduction <add>, %1, %cst [1] : vector<2x64xf32> to vector<2xf32>
    %3 = vector.shape_cast %2 : vector<2xf32> to vector<2x1xf32>
    %cst_1 = arith.constant 6.400000e+01 : f32
    %4 = vector.broadcast %cst_1 : f32 to vector<2x1xf32>
    %5 = arith.divf %3, %4 : vector<2x1xf32>
    %6 = vector.broadcast %5 : vector<2x1xf32> to vector<2x64xf32>
    %7 = arith.subf %1, %6 : vector<2x64xf32>
    %8 = arith.mulf %7, %7 : vector<2x64xf32>
    %cst_2 = arith.constant dense<0.000000e+00> : vector<2xf32>
    %9 = vector.multi_reduction <add>, %8, %cst_2 [1] : vector<2x64xf32> to vector<2xf32>
    %10 = vector.shape_cast %9 : vector<2xf32> to vector<2x1xf32>
    %cst_3 = arith.constant 6.400000e+01 : f32
    %11 = vector.broadcast %cst_3 : f32 to vector<2x1xf32>
    %12 = arith.divf %10, %11 : vector<2x1xf32>
    %13 = vector.broadcast %5 : vector<2x1xf32> to vector<2x64xf32>
    %14 = arith.subf %1, %13 : vector<2x64xf32>
    %cst_4 = arith.constant 9.99999974E-6 : f32
    %15 = vector.broadcast %cst_4 : f32 to vector<2x1xf32>
    %16 = arith.addf %12, %15 : vector<2x1xf32>
    %17 = math.rsqrt %16 : vector<2x1xf32>
    %18 = vector.broadcast %17 : vector<2x1xf32> to vector<2x64xf32>
    %19 = arith.mulf %14, %18 : vector<2x64xf32>
    %c0_5 = arith.constant 0 : index
    %c0_6 = arith.constant 0 : index
    %20 = vector.load %arg2[%c0_5, %c0_6] : memref<1x64xf32, #tpu.memory_space<vmem>>, vector<1x64xf32>
    %21 = vector.broadcast %20 : vector<1x64xf32> to vector<2x64xf32>
    %22 = arith.mulf %19, %21 : vector<2x64xf32>
    %c0_7 = arith.constant 0 : index
    %c0_8 = arith.constant 0 : index
    %23 = vector.load %arg3[%c0_7, %c0_8] : memref<1x64xf32, #tpu.memory_space<vmem>>, vector<1x64xf32>
    %24 = vector.broadcast %23 : vector<1x64xf32> to vector<2x64xf32>
    %25 = arith.addf %22, %24 : vector<2x64xf32>
    %26 = arith.truncf %25 : vector<2x64xf32> to vector<2x64xbf16>
    %c0_9 = arith.constant 0 : index
    %c0_10 = arith.constant 0 : index
    %27 = vector.load %arg4[%c0_9, %c0_10] : memref<64x128xbf16, #tpu.memory_space<vmem>>, vector<64x128xbf16>
    %cst_11 = arith.constant dense<0.000000e+00> : vector<2x128xf32>
    %28 = tpu.matmul %26, %27, %cst_11 {dimension_numbers = #tpu.dot_dimension_numbers<[1], [0], [0], [1], [0, 0, 1, 1], [], []>} : vector<2x64xbf16>, vector<64x128xbf16>, vector<2x128xf32> -> vector<2x128xf32>
    %c0_12 = arith.constant 0 : index
    %c0_13 = arith.constant 0 : index
    %29 = vector.load %arg5[%c0_12, %c0_13] : memref<1x128xf32, #tpu.memory_space<vmem>>, vector<1x128xf32>
    %30 = vector.broadcast %29 : vector<1x128xf32> to vector<2x128xf32>
    %31 = arith.addf %28, %30 : vector<2x128xf32>
    %cst_14 = arith.constant 5.000000e-01 : f32
    %32 = vector.broadcast %cst_14 : f32 to vector<2x128xf32>
    %33 = arith.mulf %32, %31 : vector<2x128xf32>
    %cst_15 = arith.constant 0.707106769 : f32
    %34 = vector.broadcast %cst_15 : f32 to vector<2x128xf32>
    %35 = arith.mulf %31, %34 : vector<2x128xf32>
    %cst_16 = arith.constant 0.000000e+00 : f32
    %36 = vector.broadcast %cst_16 : f32 to vector<2x128xf32>
    %37 = arith.cmpf oge, %35, %36 : vector<2x128xf32>
    %cst_17 = arith.constant 1.000000e+00 : f32
    %cst_18 = arith.constant -1.000000e+00 : f32
    %38 = vector.broadcast %cst_17 : f32 to vector<2x128xf32>
    %39 = vector.broadcast %cst_18 : f32 to vector<2x128xf32>
    %40 = arith.select %37, %38, %39 : vector<2x128xi1>, vector<2x128xf32>
    %41 = math.absf %35 : vector<2x128xf32>
    %cst_19 = arith.constant 0.327591091 : f32
    %42 = vector.broadcast %cst_19 : f32 to vector<2x128xf32>
    %43 = arith.mulf %42, %41 : vector<2x128xf32>
    %cst_20 = arith.constant 1.000000e+00 : f32
    %44 = vector.broadcast %cst_20 : f32 to vector<2x128xf32>
    %45 = arith.addf %44, %43 : vector<2x128xf32>
    %cst_21 = arith.constant 1.000000e+00 : f32
    %46 = vector.broadcast %cst_21 : f32 to vector<2x128xf32>
    %47 = arith.divf %46, %45 : vector<2x128xf32>
    %cst_22 = arith.constant 1.06140542 : f32
    %48 = vector.broadcast %cst_22 : f32 to vector<2x128xf32>
    %49 = arith.mulf %48, %47 : vector<2x128xf32>
    %cst_23 = arith.constant -1.45315206 : f32
    %50 = vector.broadcast %cst_23 : f32 to vector<2x128xf32>
    %51 = arith.addf %49, %50 : vector<2x128xf32>
    %52 = arith.mulf %51, %47 : vector<2x128xf32>
    %cst_24 = arith.constant 1.42141378 : f32
    %53 = vector.broadcast %cst_24 : f32 to vector<2x128xf32>
    %54 = arith.addf %52, %53 : vector<2x128xf32>
    %55 = arith.mulf %54, %47 : vector<2x128xf32>
    %cst_25 = arith.constant -0.284496725 : f32
    %56 = vector.broadcast %cst_25 : f32 to vector<2x128xf32>
    %57 = arith.addf %55, %56 : vector<2x128xf32>
    %58 = arith.mulf %57, %47 : vector<2x128xf32>
    %cst_26 = arith.constant 0.254829586 : f32
    %59 = vector.broadcast %cst_26 : f32 to vector<2x128xf32>
    %60 = arith.addf %58, %59 : vector<2x128xf32>
    %61 = arith.mulf %60, %47 : vector<2x128xf32>
    %cst_27 = arith.constant 0.000000e+00 : f32
    %62 = vector.broadcast %cst_27 : f32 to vector<2x128xf32>
    %63 = arith.subf %62, %41 : vector<2x128xf32>
    %64 = arith.mulf %63, %41 : vector<2x128xf32>
    %65 = math.exp %64 : vector<2x128xf32>
    %66 = arith.mulf %61, %65 : vector<2x128xf32>
    %cst_28 = arith.constant 1.000000e+00 : f32
    %67 = vector.broadcast %cst_28 : f32 to vector<2x128xf32>
    %68 = arith.subf %67, %66 : vector<2x128xf32>
    %69 = arith.mulf %40, %68 : vector<2x128xf32>
    %cst_29 = arith.constant 1.000000e+00 : f32
    %70 = vector.broadcast %cst_29 : f32 to vector<2x128xf32>
    %71 = arith.addf %70, %69 : vector<2x128xf32>
    %72 = arith.mulf %33, %71 : vector<2x128xf32>
    %73 = arith.truncf %72 : vector<2x128xf32> to vector<2x128xbf16>
    %c0_30 = arith.constant 0 : index
    %c0_31 = arith.constant 0 : index
    %74 = vector.load %arg6[%c0_30, %c0_31] : memref<128x64xbf16, #tpu.memory_space<vmem>>, vector<128x64xbf16>
    %cst_32 = arith.constant dense<0.000000e+00> : vector<2x64xf32>
    %75 = tpu.matmul %73, %74, %cst_32 {dimension_numbers = #tpu.dot_dimension_numbers<[1], [0], [0], [1], [0, 0, 1, 1], [], []>} : vector<2x128xbf16>, vector<128x64xbf16>, vector<2x64xf32> -> vector<2x64xf32>
    %c0_33 = arith.constant 0 : index
    %c0_34 = arith.constant 0 : index
    %76 = vector.load %arg7[%c0_33, %c0_34] : memref<1x64xf32, #tpu.memory_space<vmem>>, vector<1x64xf32>
    %77 = vector.broadcast %76 : vector<1x64xf32> to vector<2x64xf32>
    %78 = arith.addf %75, %77 : vector<2x64xf32>
    %cst_35 = arith.constant 5.000000e-01 : f32
    %79 = vector.broadcast %cst_35 : f32 to vector<2x64xf32>
    %80 = arith.mulf %79, %78 : vector<2x64xf32>
    %cst_36 = arith.constant 0.707106769 : f32
    %81 = vector.broadcast %cst_36 : f32 to vector<2x64xf32>
    %82 = arith.mulf %78, %81 : vector<2x64xf32>
    %cst_37 = arith.constant 0.000000e+00 : f32
    %83 = vector.broadcast %cst_37 : f32 to vector<2x64xf32>
    %84 = arith.cmpf oge, %82, %83 : vector<2x64xf32>
    %cst_38 = arith.constant 1.000000e+00 : f32
    %cst_39 = arith.constant -1.000000e+00 : f32
    %85 = vector.broadcast %cst_38 : f32 to vector<2x64xf32>
    %86 = vector.broadcast %cst_39 : f32 to vector<2x64xf32>
    %87 = arith.select %84, %85, %86 : vector<2x64xi1>, vector<2x64xf32>
    %88 = math.absf %82 : vector<2x64xf32>
    %cst_40 = arith.constant 0.327591091 : f32
    %89 = vector.broadcast %cst_40 : f32 to vector<2x64xf32>
    %90 = arith.mulf %89, %88 : vector<2x64xf32>
    %cst_41 = arith.constant 1.000000e+00 : f32
    %91 = vector.broadcast %cst_41 : f32 to vector<2x64xf32>
    %92 = arith.addf %91, %90 : vector<2x64xf32>
    %cst_42 = arith.constant 1.000000e+00 : f32
    %93 = vector.broadcast %cst_42 : f32 to vector<2x64xf32>
    %94 = arith.divf %93, %92 : vector<2x64xf32>
    %cst_43 = arith.constant 1.06140542 : f32
    %95 = vector.broadcast %cst_43 : f32 to vector<2x64xf32>
    %96 = arith.mulf %95, %94 : vector<2x64xf32>
    %cst_44 = arith.constant -1.45315206 : f32
    %97 = vector.broadcast %cst_44 : f32 to vector<2x64xf32>
    %98 = arith.addf %96, %97 : vector<2x64xf32>
    %99 = arith.mulf %98, %94 : vector<2x64xf32>
    %cst_45 = arith.constant 1.42141378 : f32
    %100 = vector.broadcast %cst_45 : f32 to vector<2x64xf32>
    %101 = arith.addf %99, %100 : vector<2x64xf32>
    %102 = arith.mulf %101, %94 : vector<2x64xf32>
    %cst_46 = arith.constant -0.284496725 : f32
    %103 = vector.broadcast %cst_46 : f32 to vector<2x64xf32>
    %104 = arith.addf %102, %103 : vector<2x64xf32>
    %105 = arith.mulf %104, %94 : vector<2x64xf32>
    %cst_47 = arith.constant 0.254829586 : f32
    %106 = vector.broadcast %cst_47 : f32 to vector<2x64xf32>
    %107 = arith.addf %105, %106 : vector<2x64xf32>
    %108 = arith.mulf %107, %94 : vector<2x64xf32>
    %cst_48 = arith.constant 0.000000e+00 : f32
    %109 = vector.broadcast %cst_48 : f32 to vector<2x64xf32>
    %110 = arith.subf %109, %88 : vector<2x64xf32>
    %111 = arith.mulf %110, %88 : vector<2x64xf32>
    %112 = math.exp %111 : vector<2x64xf32>
    %113 = arith.mulf %108, %112 : vector<2x64xf32>
    %cst_49 = arith.constant 1.000000e+00 : f32
    %114 = vector.broadcast %cst_49 : f32 to vector<2x64xf32>
    %115 = arith.subf %114, %113 : vector<2x64xf32>
    %116 = arith.mulf %87, %115 : vector<2x64xf32>
    %cst_50 = arith.constant 1.000000e+00 : f32
    %117 = vector.broadcast %cst_50 : f32 to vector<2x64xf32>
    %118 = arith.addf %117, %116 : vector<2x64xf32>
    %119 = arith.mulf %80, %118 : vector<2x64xf32>
    %120 = arith.truncf %119 : vector<2x64xf32> to vector<2x64xbf16>
    %c0_51 = arith.constant 0 : index
    %c0_52 = arith.constant 0 : index
    %121 = vector.load %arg8[%c0_51, %c0_52] : memref<64x128xbf16, #tpu.memory_space<vmem>>, vector<64x128xbf16>
    %cst_53 = arith.constant dense<0.000000e+00> : vector<2x128xf32>
    %122 = tpu.matmul %120, %121, %cst_53 {dimension_numbers = #tpu.dot_dimension_numbers<[1], [0], [0], [1], [0, 0, 1, 1], [], []>} : vector<2x64xbf16>, vector<64x128xbf16>, vector<2x128xf32> -> vector<2x128xf32>
    %c0_54 = arith.constant 0 : index
    %c0_55 = arith.constant 0 : index
    %123 = vector.load %arg9[%c0_54, %c0_55] : memref<1x128xf32, #tpu.memory_space<vmem>>, vector<1x128xf32>
    %124 = vector.broadcast %123 : vector<1x128xf32> to vector<2x128xf32>
    %125 = arith.addf %122, %124 : vector<2x128xf32>
    %c0_56 = arith.constant 0 : index
    %c0_57 = arith.constant 0 : index
    %126 = vector.load %arg10[%c0_56, %c0_57] : memref<2x128xf32, #tpu.memory_space<vmem>>, vector<2x128xf32>
    tpu.vector_store %arg10[%c0_56, %c0_57], %125 {strides = array<i32>} : memref<2x128xf32, #tpu.memory_space<vmem>>, vector<2x128xf32>,
    return
  }
  func.func @transform_0(%arg0: i32) -> (i32, i32) {
    %c0_i32 = arith.constant 0 : i32
    %c0_i32_0 = arith.constant 0 : i32
    return %arg0, %c0_i32 : i32, i32
  }
  func.func @transform_1(%arg0: i32) -> (i32, i32) {
    %c0_i32 = arith.constant 0 : i32
    %c0_i32_0 = arith.constant 0 : i32
    %c0_i32_1 = arith.constant 0 : i32
    return %c0_i32, %c0_i32_0 : i32, i32
  }
  func.func @transform_2(%arg0: i32) -> (i32, i32) {
    %c0_i32 = arith.constant 0 : i32
    %c0_i32_0 = arith.constant 0 : i32
    %c0_i32_1 = arith.constant 0 : i32
    return %c0_i32, %c0_i32_0 : i32, i32
  }
  func.func @transform_3(%arg0: i32) -> (i32, i32) {
    %c0_i32 = arith.constant 0 : i32
    %c0_i32_0 = arith.constant 0 : i32
    %c0_i32_1 = arith.constant 0 : i32
    return %c0_i32, %c0_i32_0 : i32, i32
  }
  func.func @transform_4(%arg0: i32) -> (i32, i32) {
    %c0_i32 = arith.constant 0 : i32
    %c0_i32_0 = arith.constant 0 : i32
    %c0_i32_1 = arith.constant 0 : i32
    return %c0_i32, %c0_i32_0 : i32, i32
  }
  func.func @transform_5(%arg0: i32) -> (i32, i32) {
    %c0_i32 = arith.constant 0 : i32
    %c0_i32_0 = arith.constant 0 : i32
    %c0_i32_1 = arith.constant 0 : i32
    return %c0_i32, %c0_i32_0 : i32, i32
  }
  func.func @transform_6(%arg0: i32) -> (i32, i32) {
    %c0_i32 = arith.constant 0 : i32
    %c0_i32_0 = arith.constant 0 : i32
    %c0_i32_1 = arith.constant 0 : i32
    return %c0_i32, %c0_i32_0 : i32, i32
  }
  func.func @transform_7(%arg0: i32) -> (i32, i32) {
    %c0_i32 = arith.constant 0 : i32
    %c0_i32_0 = arith.constant 0 : i32
    %c0_i32_1 = arith.constant 0 : i32
    return %c0_i32, %c0_i32_0 : i32, i32
  }
  func.func @transform_8(%arg0: i32) -> (i32, i32) {
    %c0_i32 = arith.constant 0 : i32
    %c0_i32_0 = arith.constant 0 : i32
    %c0_i32_1 = arith.constant 0 : i32
    return %c0_i32, %c0_i32_0 : i32, i32
  }
  func.func @transform_9(%arg0: i32) -> (i32, i32) {
    %c0_i32 = arith.constant 0 : i32
    %c0_i32_0 = arith.constant 0 : i32
    return %arg0, %c0_i32 : i32, i32
  }
}

</mosaic_0001>

<llo_original>
// kernel: vision_transformer.10
$region0: #{vision_transformer.10}
  #allocation0 [shape = 'u32[]', space=smem, size = 0x4, offset = 0x4, fixed_abs, tag = 'smem constant byte address 0x4 - core index']
  #allocation1 [shape = 'u32[72,128]{1,0:T(1,128)}', space=vmem, size = 0x9000, scoped, tag = 'internal scratch']
  %s0 = inlined_call_operand.vmem [shape: bf16[30,48], index: 0, kind: input, shape index: {}]
  %s1 = inlined_call_operand.vmem [shape: bf16[48,64], index: 1, kind: input, shape index: {}]
  %s2 = inlined_call_operand.vmem [shape: f32[1,64], index: 2, kind: input, shape index: {}]
  %s3 = inlined_call_operand.vmem [shape: bf16[30,64], index: 3, kind: output, shape index: {}]
  %s4 = sld [smem:[#allocation0]]
  $region22: #{vision_transformer.10} parent=0
    _
  %s6 = ssub.s32 1, %s4
  %s7 = scalar_select 0, %s6, %s4
  // Predicated region
  $region2: #{vision_transformer.10} parent=0 // pred_check
    _
  $region3: #{vision_transformer.10} parent=0 // pred_check_branch
    %9 = sbr.rel (0) target = $region5
  $region4: #{vision_transformer.10} parent=0 // pred_region
    _
  $region5: #{vision_transformer.10} parent=0 // pred_fallthru
    _
  // Predicated region
  $region6: #{vision_transformer.10} parent=0 // pred_check
    _
  $region7: #{vision_transformer.10} parent=0 // pred_check_branch
    %11 = sbr.rel (0) target = $region9
  $region8: #{vision_transformer.10} parent=0 // pred_region
    _
  $region9: #{vision_transformer.10} parent=0 // pred_fallthru
    _
  // Predicated region
  $region10: #{vision_transformer.10} parent=0 // pred_check
    _
  $region11: #{vision_transformer.10} parent=0 // pred_check_branch
    %13 = sbr.rel (0) target = $region13
  $region12: #{vision_transformer.10} parent=0 // pred_region
    _
  $region13: #{vision_transformer.10} parent=0 // pred_fallthru
    _
  %v15 = vld [vmem:[%s0] sm:$0xf]
  %v16 = vld [vmem:[%s0 + $0x4] sm:$0xf]
  %v17 = vld [vmem:[%s0 + $0x8] sm:$0xf]
  %v18 = vld [vmem:[%s0 + $0xc] sm:$0x7]
  %v19 = vld [vmem:[%s1] sm:$0xf]
  %v20 = vld [vmem:[%s1 + $0x4] sm:$0xf]
  %v21 = vld [vmem:[%s1 + $0x8] sm:$0xf]
  %v22 = vld [vmem:[%s1 + $0xc] sm:$0xf]
  %v23 = vld [vmem:[%s1 + $0x10] sm:$0xf]
  %v24 = vld [vmem:[%s1 + $0x14] sm:$0xf]
  %v25 = vld [vmem:[%s2] sm:$0x1]
  %v27 = vperm.slane %v25, 0
  %v33 = vunpack.c.l.b16 %v15
  %v34 = vunpack.c.l.b16 %v16
  %v35 = vunpack.c.l.b16 %v17
  %v36 = vunpack.c.l.b16 %v18
  %v37 = vpack.c.b16 %v34, %v33
  %v38 = vpack.c.b16 %v36, %v35
  %v45 = vunpack.c.l.b16 %v19
  %v46 = vunpack.c.l.b16 %v20
  %v47 = vunpack.c.l.b16 %v21
  %v48 = vunpack.c.l.b16 %v22
  %v49 = vunpack.c.l.b16 %v23
  %v50 = vunpack.c.l.b16 %v24
  %v51 = vpack.c.b16 %v46, %v45
  %v52 = vpack.c.b16 %v48, %v47
  %v53 = vpack.c.b16 %v50, %v49
  %vm57 = vcmask 392192
  %v59 = vsel %vm57, %v37, 0
  %v62 = vsel %vm57, %v38, 0
  %64 = vmatpush.bf16.msra.mxu0 0
  %65 = vmatpush.bf16.msra.mxu0 0
  %66 = vmatpush.bf16.msra.mxu0 0
  %67 = vmatpush.bf16.msra.mxu0 0
  %68 = vmatpush.bf16.msra.mxu0 0
  %69 = vmatpush.bf16.msra.mxu0 %v53
  %70 = vmatpush.bf16.msra.mxu0 %v52
  %71 = vmatpush.bf16.msra.mxu0 %v51
  %72 = vmatmul.bf16.gmra.mxu0 %v59
  %v73 = vpop.f32.mrf.mxu0
  %v74 = vadd.f32 %v27, %v73
  %v75 = vpop.f32.mrf.mxu0
  %v76 = vadd.f32 %v27, %v75
  %77 = vmatmul.bf16.gmra.mxu0 %v62
  %v78 = vpop.f32.mrf.mxu0
  %v79 = vadd.f32 %v27, %v78
  %v80 = vpop.f32.mrf.mxu0
  %v81 = vadd.f32 %v27, %v80
  %82 = vdwg.mxu0
  %v83 = vpack.c.bf16 %v74, %v74
  %v84 = vpack.c.bf16 %v76, %v76
  %v85 = vpack.c.bf16 %v79, %v79
  %v86 = vpack.c.bf16 %v81, %v81
  %vm87 = vcmask 519168
  %88 = vst.msk [vmem:[%s3] sm:$0xf] %vm87, %v83
  %89 = vst.msk [vmem:[%s3 + $0x4] sm:$0xf] %vm87, %v84
  %90 = vst.msk [vmem:[%s3 + $0x8] sm:$0xf] %vm87, %v85
  %vm91 = vcmask 518144
  %92 = vst.msk [vmem:[%s3 + $0xc] sm:$0x7] %vm91, %v86
  // Predicated region
  $region14: #{vision_transformer.10} parent=0 // pred_check
    _
  $region15: #{vision_transformer.10} parent=0 // pred_check_branch
    %94 = sbr.rel (0) target = $region17
  $region16: #{vision_transformer.10} parent=0 // pred_region
    _
  $region17: #{vision_transformer.10} parent=0 // pred_fallthru
    _
  // Predicated region
  $region18: #{vision_transformer.10} parent=0 // pred_check
    _
  $region19: #{vision_transformer.10} parent=0 // pred_check_branch
    %96 = sbr.rel (0) target = $region21
  $region20: #{vision_transformer.10} parent=0 // pred_region
    _
  $region21: #{vision_transformer.10} parent=0 // pred_fallthru
    _

// kernel: vision_transformer.11
$region0: #{vision_transformer.11}
  #allocation0 [shape = 'u32[]', space=smem, size = 0x4, offset = 0x4, fixed_abs, tag = 'smem constant byte address 0x4 - core index']
  #allocation1 [shape = 'u32[72,128]{1,0:T(1,128)}', space=vmem, size = 0x9000, scoped, tag = 'internal scratch']
  #allocation2 [shape = 'bf16[32,64]{1,0:T(8,128)(2,1)}', space=vmem, size = 0x2000, scoped, tag = 'scratch operand']
  %s0 = inlined_call_operand.vmem [shape: bf16[32,64], index: 0, kind: input, shape index: {}]
  %s1 = inlined_call_operand.vmem [shape: bf16[64,192], index: 1, kind: input, shape index: {}]
  %s2 = inlined_call_operand.vmem [shape: f32[1,192], index: 2, kind: input, shape index: {}]
  %s3 = inlined_call_operand.vmem [shape: f32[1,64], index: 3, kind: input, shape index: {}]
  %s4 = inlined_call_operand.vmem [shape: f32[1,64], index: 4, kind: input, shape index: {}]
  %s5 = inlined_call_operand.vmem [shape: bf16[32,192], index: 5, kind: output, shape index: {}]
  %s6 = sld [smem:[#allocation0]]
  $region34: #{vision_transformer.11} parent=0
    _
  %s8 = ssub.s32 1, %s6
  %s9 = scalar_select 0, %s8, %s6
  // Predicated region
  $region2: #{vision_transformer.11} parent=0 // pred_check
    _
  $region3: #{vision_transformer.11} parent=0 // pred_check_branch
    %11 = sbr.rel (0) target = $region5
  $region4: #{vision_transformer.11} parent=0 // pred_region
    _
  $region5: #{vision_transformer.11} parent=0 // pred_fallthru
    _
  // Predicated region
  $region6: #{vision_transformer.11} parent=0 // pred_check
    _
  $region7: #{vision_transformer.11} parent=0 // pred_check_branch
    %13 = sbr.rel (0) target = $region9
  $region8: #{vision_transformer.11} parent=0 // pred_region
    _
  $region9: #{vision_transformer.11} parent=0 // pred_fallthru
    _
  // Predicated region
  $region10: #{vision_transformer.11} parent=0 // pred_check
    _
  $region11: #{vision_transformer.11} parent=0 // pred_check_branch
    %15 = sbr.rel (0) target = $region13
  $region12: #{vision_transformer.11} parent=0 // pred_region
    _
  $region13: #{vision_transformer.11} parent=0 // pred_fallthru
    _
  // Predicated region
  $region14: #{vision_transformer.11} parent=0 // pred_check
    _
  $region15: #{vision_transformer.11} parent=0 // pred_check_branch
    %17 = sbr.rel (0) target = $region17
  $region16: #{vision_transformer.11} parent=0 // pred_region
    _
  $region17: #{vision_transformer.11} parent=0 // pred_fallthru
    _
  // Predicated region
  $region18: #{vision_transformer.11} parent=0 // pred_check
    _
  $region19: #{vision_transformer.11} parent=0 // pred_check_branch
    %19 = sbr.rel (0) target = $region21
  $region20: #{vision_transformer.11} parent=0 // pred_region
    _
  $region21: #{vision_transformer.11} parent=0 // pred_fallthru
    _
  %p21 = scmp.eq.s32.totalorder 0, 0
  // Predicated region
  $region22: #{vision_transformer.11} parent=0 // pred_check
    %p22 = pneg %p21
  $region23: #{vision_transformer.11} parent=0 // pred_check_branch
    %24 = sbr.rel (%p22) target = $region25
  $region24: #{vision_transformer.11} parent=0 // pred_region
    %v25 = vld [vmem:[%s0] sm:$0xf]
    %v26 = vld [vmem:[%s0 + $0x4] sm:$0xf]
    %v27 = vld [vmem:[%s0 + $0x8] sm:$0xf]
    %v28 = vld [vmem:[%s0 + $0xc] sm:$0xf]
    %v29 = vunpack.c.l.bf16 %v25
    %v30 = vunpack.c.l.bf16 %v26
    %v31 = vunpack.c.l.bf16 %v27
    %v32 = vunpack.c.l.bf16 %v28
    %vm33 = vcmask 523264
    %v34 = vsel %vm33, %v29, 0.0
    %35 = vadd.xlane.f32.xlu0 %v34
    %v36 = vpop.xlane.xlu0 %35
    %v37 = vsel %vm33, %v30, 0.0
    %38 = vadd.xlane.f32.xlu0 %v37
    %v39 = vpop.xlane.xlu0 %38
    %v40 = vsel %vm33, %v31, 0.0
    %41 = vadd.xlane.f32.xlu0 %v40
    %v42 = vpop.xlane.xlu0 %41
    %v43 = vsel %vm33, %v32, 0.0
    %44 = vadd.xlane.f32.xlu0 %v43
    %v45 = vpop.xlane.xlu0 %44
    %v46 = vrcp.pop 64.0
    %v47 = vmul.f32 64.0, %v46
    %v48 = vsub.f32 1.0, %v47
    %v49 = vmul.f32 %v46, %v48
    %v50 = vadd.f32 %v46, %v49
    %vm51 = vweird.f32 %v46
    %v52 = vsel %vm51, %v46, %v50
    %v53 = vmul.f32 %v36, %v52
    %v54 = vmul.f32 %v39, %v52
    %v55 = vmul.f32 %v42, %v52
    %v56 = vmul.f32 %v45, %v52
    %v57 = vsub.f32 %v29, %v53
    %v58 = vsub.f32 %v30, %v54
    %v59 = vsub.f32 %v31, %v55
    %v60 = vsub.f32 %v32, %v56
    %v61 = vmul.f32 %v57, %v57
    %v62 = vmul.f32 %v58, %v58
    %v63 = vmul.f32 %v59, %v59
    %v64 = vmul.f32 %v60, %v60
    %v65 = vsel %vm33, %v61, 0.0
    %66 = vadd.xlane.f32.xlu0 %v65
    %v67 = vpop.xlane.xlu0 %66
    %v68 = vsel %vm33, %v62, 0.0
    %69 = vadd.xlane.f32.xlu0 %v68
    %v70 = vpop.xlane.xlu0 %69
    %v71 = vsel %vm33, %v63, 0.0
    %72 = vadd.xlane.f32.xlu0 %v71
    %v73 = vpop.xlane.xlu0 %72
    %v74 = vsel %vm33, %v64, 0.0
    %75 = vadd.xlane.f32.xlu0 %v74
    %v76 = vpop.xlane.xlu0 %75
    %v77 = vmul.f32 %v67, %v52
    %v78 = vmul.f32 %v70, %v52
    %v79 = vmul.f32 %v73, %v52
    %v80 = vmul.f32 %v76, %v52
    %v81 = vadd.f32 %v77, 1e-05
    %v82 = vadd.f32 %v78, 1e-05
    %v83 = vadd.f32 %v79, 1e-05
    %v84 = vadd.f32 %v80, 1e-05
    %v85 = vrsqrt.pop %v81
    %v86 = vmul.f32 %v85, %v81
    %v87 = vmul.f32 %v86, %v85
    %v88 = vmul.f32 0.5, %v87
    %v89 = vsub.f32 1.5, %v88
    %v90 = vmul.f32 %v85, %v89
    %vm91 = vweird.f32 %v81
    %vm92 = vweird.f32 %v85
    %vm93 = vmor %vm91, %vm92
    %v94 = vsel %vm93, %v85, %v90
    %v95 = vrsqrt.pop %v82
    %v96 = vmul.f32 %v95, %v82
    %v97 = vmul.f32 %v96, %v95
    %v98 = vmul.f32 0.5, %v97
    %v99 = vsub.f32 1.5, %v98
    %v100 = vmul.f32 %v95, %v99
    %vm101 = vweird.f32 %v82
    %vm102 = vweird.f32 %v95
    %vm103 = vmor %vm101, %vm102
    %v104 = vsel %vm103, %v95, %v100
    %v105 = vrsqrt.pop %v83
    %v106 = vmul.f32 %v105, %v83
    %v107 = vmul.f32 %v106, %v105
    %v108 = vmul.f32 0.5, %v107
    %v109 = vsub.f32 1.5, %v108
    %v110 = vmul.f32 %v105, %v109
    %vm111 = vweird.f32 %v83
    %vm112 = vweird.f32 %v105
    %vm113 = vmor %vm111, %vm112
    %v114 = vsel %vm113, %v105, %v110
    %v115 = vrsqrt.pop %v84
    %v116 = vmul.f32 %v115, %v84
    %v117 = vmul.f32 %v116, %v115
    %v118 = vmul.f32 0.5, %v117
    %v119 = vsub.f32 1.5, %v118
    %v120 = vmul.f32 %v115, %v119
    %vm121 = vweird.f32 %v84
    %vm122 = vweird.f32 %v115
    %vm123 = vmor %vm121, %vm122
    %v124 = vsel %vm123, %v115, %v120
    %v125 = vmul.f32 %v57, %v94
    %v126 = vmul.f32 %v58, %v104
    %v127 = vmul.f32 %v59, %v114
    %v128 = vmul.f32 %v60, %v124
    %v129 = vld [vmem:[%s3] sm:$0x1]
    %v131 = vperm.slane %v129, 0
    %v133 = vmul.f32 %v125, %v131
    %v134 = vmul.f32 %v126, %v131
    %v135 = vmul.f32 %v127, %v131
    %v136 = vmul.f32 %v128, %v131
    %v137 = vld [vmem:[%s4] sm:$0x1]
    %v139 = vperm.slane %v137, 0
    %v141 = vadd.f32 %v133, %v139
    %v142 = vadd.f32 %v134, %v139
    %v143 = vadd.f32 %v135, %v139
    %v144 = vadd.f32 %v136, %v139
    %v145 = vpack.c.bf16 %v141, %v141
    %v146 = vpack.c.bf16 %v142, %v142
    %v147 = vpack.c.bf16 %v143, %v143
    %v148 = vpack.c.bf16 %v144, %v144
    %vm149 = vcmask 519168
    %150 = vst.msk [vmem:[#allocation2] sm:$0xf] %vm149, %v145
    %151 = vst.msk [vmem:[#allocation2 + $0x4] sm:$0xf] %vm149, %v146
    %152 = vst.msk [vmem:[#allocation2 + $0x8] sm:$0xf] %vm149, %v147
    %153 = vst.msk [vmem:[#allocation2 + $0xc] sm:$0xf] %vm149, %v148
  $region25: #{vision_transformer.11} parent=0 // pred_fallthru
    _
  %v154 = vld [vmem:[#allocation2] sm:$0xf]
  %v155 = vld [vmem:[#allocation2 + $0x4] sm:$0xf]
  %v156 = vld [vmem:[#allocation2 + $0x8] sm:$0xf]
  %v157 = vld [vmem:[#allocation2 + $0xc] sm:$0xf]
  %v158 = vld [vmem:[%s1] sm:$0xff]
  %v159 = vld [vmem:[%s1 + $0x8] sm:$0xff]
  %v160 = vld [vmem:[%s1 + $0x10] sm:$0xff]
  %v161 = vld [vmem:[%s1 + $0x18] sm:$0xff]
  %v162 = vld [vmem:[%s1 + $0x20] sm:$0xff]
  %v163 = vld [vmem:[%s1 + $0x28] sm:$0xff]
  %v164 = vld [vmem:[%s1 + $0x30] sm:$0xff]
  %v165 = vld [vmem:[%s1 + $0x38] sm:$0xff]
  %v166 = vld [vmem:[%s2] sm:$0x3]
  %v168 = vperm.slane %v166, 0
  %v169 = vperm.slane %v166, 1
  %v176 = vunpack.c.l.b16 %v154
  %v177 = vunpack.c.l.b16 %v155
  %v178 = vunpack.c.l.b16 %v156
  %v179 = vunpack.c.l.b16 %v157
  %v180 = vpack.c.b16 %v177, %v176
  %v181 = vpack.c.b16 %v179, %v178
  %v190 = vunpack.c.l.b16 %v158
  %v191 = vunpack.c.h.b16 %v158
  %v192 = vunpack.c.l.b16 %v159
  %v193 = vunpack.c.h.b16 %v159
  %v194 = vunpack.c.l.b16 %v160
  %v195 = vunpack.c.h.b16 %v160
  %v196 = vunpack.c.l.b16 %v161
  %v197 = vunpack.c.h.b16 %v161
  %v198 = vunpack.c.l.b16 %v162
  %v199 = vunpack.c.h.b16 %v162
  %v200 = vunpack.c.l.b16 %v163
  %v201 = vunpack.c.h.b16 %v163
  %v202 = vunpack.c.l.b16 %v164
  %v203 = vunpack.c.h.b16 %v164
  %v204 = vunpack.c.l.b16 %v165
  %v205 = vunpack.c.h.b16 %v165
  %v206 = vpack.c.b16 %v192, %v190
  %v207 = vpack.c.b16 %v193, %v191
  %v208 = vpack.c.b16 %v196, %v194
  %v209 = vpack.c.b16 %v197, %v195
  %v210 = vpack.c.b16 %v200, %v198
  %v211 = vpack.c.b16 %v201, %v199
  %v212 = vpack.c.b16 %v204, %v202
  %v213 = vpack.c.b16 %v205, %v203
  %vm222 = vcmask 523264
  %v224 = vsel %vm222, %v180, 0
  %v227 = vsel %vm222, %v181, 0
  %229 = vmatpush.bf16.msra.mxu0 0
  %230 = vmatpush.bf16.msra.mxu0 0
  %231 = vmatpush.bf16.msra.mxu0 0
  %232 = vmatpush.bf16.msra.mxu0 0
  %233 = vmatpush.bf16.msra.mxu0 %v212
  %234 = vmatpush.bf16.msra.mxu0 %v210
  %235 = vmatpush.bf16.msra.mxu0 %v208
  %236 = vmatpush.bf16.msra.mxu0 %v206
  %237 = vmatmul.bf16.gmra.mxu0 %v224
  %v238 = vpop.f32.mrf.mxu0
  %v239 = vadd.f32 %v168, %v238
  %v240 = vpop.f32.mrf.mxu0
  %v241 = vadd.f32 %v168, %v240
  %242 = vmatmul.bf16.gmra.mxu0 %v227
  %v243 = vpop.f32.mrf.mxu0
  %v244 = vadd.f32 %v168, %v243
  %v245 = vpop.f32.mrf.mxu0
  %v246 = vadd.f32 %v168, %v245
  %247 = vdwg.mxu0
  %248 = vmatpush.bf16.msra.mxu0 0
  %249 = vmatpush.bf16.msra.mxu0 0
  %250 = vmatpush.bf16.msra.mxu0 0
  %251 = vmatpush.bf16.msra.mxu0 0
  %252 = vmatpush.bf16.msra.mxu0 %v213
  %253 = vmatpush.bf16.msra.mxu0 %v211
  %254 = vmatpush.bf16.msra.mxu0 %v209
  %255 = vmatpush.bf16.msra.mxu0 %v207
  %256 = vmatmul.bf16.gmra.mxu0 %v224
  %v257 = vpop.f32.mrf.mxu0
  %v258 = vadd.f32 %v169, %v257
  %v259 = vpop.f32.mrf.mxu0
  %v260 = vadd.f32 %v169, %v259
  %261 = vmatmul.bf16.gmra.mxu0 %v227
  %v262 = vpop.f32.mrf.mxu0
  %v263 = vadd.f32 %v169, %v262
  %v264 = vpop.f32.mrf.mxu0
  %v265 = vadd.f32 %v169, %v264
  %266 = vdwg.mxu0
  %v267 = vpack.c.bf16 %v258, %v239
  %v268 = vpack.c.bf16 %v260, %v241
  %v269 = vpack.c.bf16 %v263, %v244
  %v270 = vpack.c.bf16 %v265, %v246
  %vm271 = vcmask 1043456
  %vm272 = vcmask 523268
  %vm273 = vmor %vm272, %vm271
  %274 = vst.msk [vmem:[%s5] sm:$0xff] %vm273, %v267
  %275 = vst.msk [vmem:[%s5 + $0x8] sm:$0xff] %vm273, %v268
  %276 = vst.msk [vmem:[%s5 + $0x10] sm:$0xff] %vm273, %v269
  %277 = vst.msk [vmem:[%s5 + $0x18] sm:$0xff] %vm273, %v270
  // Predicated region
  $region26: #{vision_transformer.11} parent=0 // pred_check
    _
  $region27: #{vision_transformer.11} parent=0 // pred_check_branch
    %279 = sbr.rel (0) target = $region29
  $region28: #{vision_transformer.11} parent=0 // pred_region
    _
  $region29: #{vision_transformer.11} parent=0 // pred_fallthru
    _
  // Predicated region
  $region30: #{vision_transformer.11} parent=0 // pred_check
    _
  $region31: #{vision_transformer.11} parent=0 // pred_check_branch
    %281 = sbr.rel (0) target = $region33
  $region32: #{vision_transformer.11} parent=0 // pred_region
    _
  $region33: #{vision_transformer.11} parent=0 // pred_fallthru
    _

// kernel: vision_transformer.12
$region0: #{vision_transformer.12}
  #allocation0 [shape = 'u32[]', space=smem, size = 0x4, offset = 0x4, fixed_abs, tag = 'smem constant byte address 0x4 - core index']
  #allocation1 [shape = 'u32[72,128]{1,0:T(1,128)}', space=vmem, size = 0x9000, scoped, tag = 'internal scratch']
  #allocation2 [shape = 'f32[16,64]{1,0:T(8,128)}', space=vmem, size = 0x2000, scoped, tag = 'scratch operand']
  %s0 = inlined_call_operand.vmem [shape: bf16[2,16,192], index: 0, kind: input, shape index: {}]
  %s1 = inlined_call_operand.vmem [shape: bf16[64,64], index: 1, kind: input, shape index: {}]
  %s2 = inlined_call_operand.vmem [shape: f32[1,64], index: 2, kind: input, shape index: {}]
  %s3 = inlined_call_operand.vmem [shape: bf16[2,16,64], index: 3, kind: input, shape index: {}]
  %s4 = inlined_call_operand.vmem [shape: bf16[2,16,64], index: 4, kind: output, shape index: {}]
  %s5 = sld [smem:[#allocation0]]
  $region49: #{vision_transformer.12} parent=0
    _
  %s7 = ssub.s32 1, %s5
  %s8 = scalar_select 0, %s7, %s5
  loop: start=0, step=1, limit=4
  $region2: #{vision_transformer.12} parent=0 // loop_pre_header
    _
  $region3: #{vision_transformer.12} parent=0 // loop_header
    %s10 = sphi 0, %s14
    %p11 = scmp.ge.s32.totalorder %s10, 4
    %s20 = sphi 0, %s22
    %s23 = sphi 0, %s20
    %s24 = sphi 0, %s23
    %s40 = sphi 0, %s24
    %s44 = sphi 0, %s44
    %s46 = sphi 0, %s44
    %s47 = sphi 0, %s46
    %s61 = sphi 0, %s47
    %s65 = sphi 0, %s65
    %s67 = sphi 0, %s65
    %s68 = sphi 0, %s67
    %s82 = sphi 0, %s68
    %s88 = sphi 0, %s90
    %s91 = sphi 0, %s88
    %s92 = sphi 0, %s91
    %s108 = sphi 0, %s92
    %s114 = sphi 0, %s116
    %s117 = sphi 0, %s114
    %s118 = sphi 0, %s117
    %s134 = sphi 0, %s118
  $region4: #{vision_transformer.12} parent=0 // loop_header_branch
    %13 = sbr.rel (%p11) target = $region8
  $region5: #{vision_transformer.12} parent=0 // loop_body
    %s15 = ssub.s32 %s10, 1
    %s16 = ssub.s32 %s10, 2
    %s17 = sadd.s32 %s10, 1
    %s18 = ssub.s32 %s10, %s17
    %p19 = scmp.eq.s32.totalorder %s18, 0
    %s21 = sadd.s32 %s20, 1
    %s22 = scalar_select %p19, %s20, %s21
    %p25 = pneg %p19
    %p26 = scmp.eq.s32.totalorder %s10, 1
    %p27 = por %p25, %p26
    %p28 = scmp.ne.s32.totalorder %s20, %s23
    %p29 = scmp.eq.s32.totalorder %s10, 0
    %p30 = por %p28, %p29
    %p31 = scmp.ne.s32.totalorder %s20, %s23
    %p32 = scmp.eq.s32.totalorder %s15, 1
    %p33 = por %p31, %p32
    %p34 = scmp.ne.s32.totalorder %s23, %s24
    %p35 = scmp.eq.s32.totalorder %s15, 0
    %p36 = por %p34, %p35
    %p37 = scmp.ne.s32.totalorder %s23, %s24
    %p38 = scmp.eq.s32.totalorder %s16, 1
    %p39 = por %p37, %p38
    %p41 = scmp.ne.s32.totalorder %s24, %s40
    %p42 = scmp.eq.s32.totalorder %s16, 0
    %p43 = por %p41, %p42
    %s45 = sadd.s32 %s44, 1
    %p48 = scmp.eq.s32.totalorder %s10, 1
    %p49 = scmp.ne.s32.totalorder %s44, %s46
    %p50 = scmp.eq.s32.totalorder %s10, 0
    %p51 = por %p49, %p50
    %p52 = scmp.ne.s32.totalorder %s44, %s46
    %p53 = scmp.eq.s32.totalorder %s15, 1
    %p54 = por %p52, %p53
    %p55 = scmp.ne.s32.totalorder %s46, %s47
    %p56 = scmp.eq.s32.totalorder %s15, 0
    %p57 = por %p55, %p56
    %p58 = scmp.ne.s32.totalorder %s46, %s47
    %p59 = scmp.eq.s32.totalorder %s16, 1
    %p60 = por %p58, %p59
    %p62 = scmp.ne.s32.totalorder %s47, %s61
    %p63 = scmp.eq.s32.totalorder %s16, 0
    %p64 = por %p62, %p63
    %s66 = sadd.s32 %s65, 1
    %p69 = scmp.eq.s32.totalorder %s10, 1
    %p70 = scmp.ne.s32.totalorder %s65, %s67
    %p71 = scmp.eq.s32.totalorder %s10, 0
    %p72 = por %p70, %p71
    %p73 = scmp.ne.s32.totalorder %s65, %s67
    %p74 = scmp.eq.s32.totalorder %s15, 1
    %p75 = por %p73, %p74
    %p76 = scmp.ne.s32.totalorder %s67, %s68
    %p77 = scmp.eq.s32.totalorder %s15, 0
    %p78 = por %p76, %p77
    %p79 = scmp.ne.s32.totalorder %s67, %s68
    %p80 = scmp.eq.s32.totalorder %s16, 1
    %p81 = por %p79, %p80
    %p83 = scmp.ne.s32.totalorder %s68, %s82
    %p84 = scmp.eq.s32.totalorder %s16, 0
    %p85 = por %p83, %p84
    %s86 = ssub.s32 %s10, %s17
    %p87 = scmp.eq.s32.totalorder %s86, 0
    %s89 = sadd.s32 %s88, 1
    %s90 = scalar_select %p87, %s88, %s89
    %p93 = pneg %p87
    %p94 = scmp.eq.s32.totalorder %s10, 1
    %p95 = por %p93, %p94
    %p96 = scmp.ne.s32.totalorder %s88, %s91
    %p97 = scmp.eq.s32.totalorder %s10, 0
    %p98 = por %p96, %p97
    %p99 = scmp.ne.s32.totalorder %s88, %s91
    %p100 = scmp.eq.s32.totalorder %s15, 1
    %p101 = por %p99, %p100
    %p102 = scmp.ne.s32.totalorder %s91, %s92
    %p103 = scmp.eq.s32.totalorder %s15, 0
    %p104 = por %p102, %p103
    %p105 = scmp.ne.s32.totalorder %s91, %s92
    %p106 = scmp.eq.s32.totalorder %s16, 1
    %p107 = por %p105, %p106
    %p109 = scmp.ne.s32.totalorder %s92, %s108
    %p110 = scmp.eq.s32.totalorder %s16, 0
    %p111 = por %p109, %p110
    %s112 = ssub.s32 %s10, %s17
    %p113 = scmp.eq.s32.totalorder %s112, 0
    %s115 = sadd.s32 %s114, 1
    %s116 = scalar_select %p113, %s114, %s115
    %p119 = pneg %p113
    %p120 = scmp.eq.s32.totalorder %s10, 1
    %p121 = por %p119, %p120
    %p122 = scmp.ne.s32.totalorder %s114, %s117
    %p123 = scmp.eq.s32.totalorder %s10, 0
    %p124 = por %p122, %p123
    %p125 = scmp.ne.s32.totalorder %s114, %s117
    %p126 = scmp.eq.s32.totalorder %s15, 1
    %p127 = por %p125, %p126
    %p128 = scmp.ne.s32.totalorder %s117, %s118
    %p129 = scmp.eq.s32.totalorder %s15, 0
    %p130 = por %p128, %p129
    %p131 = scmp.ne.s32.totalorder %s117, %s118
    %p132 = scmp.eq.s32.totalorder %s16, 1
    %p133 = por %p131, %p132
    %p135 = scmp.ne.s32.totalorder %s118, %s134
    %p136 = scmp.eq.s32.totalorder %s16, 0
    %p137 = por %p135, %p136
    %p138 = scmp.le.s32.totalorder 1, %s10
    %p139 = scmp.lt.s32.totalorder %s10, 3
    %p140 = pnand %p138, %p139
    %p141 = pneg %p140
    // Predicated region
    $region9: #{vision_transformer.12} parent=5 // pred_check
      _
    $region10: #{vision_transformer.12} parent=5 // pred_check_branch
      %143 = sbr.rel (%p140) target = $region12
    $region11: #{vision_transformer.12} parent=5 // pred_region
      %s144 = ssub.s32 %s10, 1
      // Predicated region
      $region13: #{vision_transformer.12} parent=11 // pred_check
        %p145 = pneg %p57
      $region14: #{vision_transformer.12} parent=11 // pred_check_branch
        %147 = sbr.rel (%p145) target = $region16
      $region15: #{vision_transformer.12} parent=11 // pred_region
        _
      $region16: #{vision_transformer.12} parent=11 // pred_fallthru
        _
      // Predicated region
      $region17: #{vision_transformer.12} parent=11 // pred_check
        %p148 = pneg %p78
      $region18: #{vision_transformer.12} parent=11 // pred_check_branch
        %150 = sbr.rel (%p148) target = $region20
      $region19: #{vision_transformer.12} parent=11 // pred_region
        _
      $region20: #{vision_transformer.12} parent=11 // pred_fallthru
        _
    $region12: #{vision_transformer.12} parent=5 // pred_fallthru
      _
    %p151 = scmp.lt.s32.totalorder %s10, 2
    // Predicated region
    $region21: #{vision_transformer.12} parent=5 // pred_check
      %p152 = pneg %p151
    $region22: #{vision_transformer.12} parent=5 // pred_check_branch
      %154 = sbr.rel (%p152) target = $region24
    $region23: #{vision_transformer.12} parent=5 // pred_region
      // Predicated region
      $region25: #{vision_transformer.12} parent=23 // pred_check
        %p155 = pneg %p30
      $region26: #{vision_transformer.12} parent=23 // pred_check_branch
        %157 = sbr.rel (%p155) target = $region28
      $region27: #{vision_transformer.12} parent=23 // pred_region
        %p158 = scmp.lt.s32.totalorder %s10, 1
        %s159 = scalar_select %p158, %s10, 1
        %s160 = smul.addr %s159, 4
        %s161 = smul.addr %s160, 4
        %s162 = scalar_lea.vmem %s0, %s161
      $region28: #{vision_transformer.12} parent=23 // pred_fallthru
        _
      // Predicated region
      $region29: #{vision_transformer.12} parent=23 // pred_check
        %p163 = pneg %p98
      $region30: #{vision_transformer.12} parent=23 // pred_check_branch
        %165 = sbr.rel (%p163) target = $region32
      $region31: #{vision_transformer.12} parent=23 // pred_region
        %p166 = scmp.lt.s32.totalorder %s10, 1
        %s167 = scalar_select %p166, %s10, 1
        %s168 = smul.addr %s167, 2
        %s169 = smul.addr %s168, 4
        %s170 = scalar_lea.vmem %s3, %s169
      $region32: #{vision_transformer.12} parent=23 // pred_fallthru
        _
    $region24: #{vision_transformer.12} parent=5 // pred_fallthru
      _
    %p171 = scmp.le.s32.totalorder 1, %s10
    %p172 = scmp.lt.s32.totalorder %s10, 3
    %p173 = pnand %p171, %p172
    %p174 = pneg %p173
    // Predicated region
    $region33: #{vision_transformer.12} parent=5 // pred_check
      _
    $region34: #{vision_transformer.12} parent=5 // pred_check_branch
      %176 = sbr.rel (%p173) target = $region36
    $region35: #{vision_transformer.12} parent=5 // pred_region
      %s177 = ssub.s32 %s10, 1
      %p178 = scmp.lt.s32.totalorder %s15, 1
      %s179 = scalar_select %p178, %s15, 1
      %s180 = smul.addr %s179, 4
      %s181 = smul.addr %s180, 4
      %s182 = scalar_lea.vmem %s0, %s181
      %p183 = pneg %p36
      %p184 = pneg %p33
      %p185 = pneg %p57
      %p186 = pneg %p54
      %p187 = pneg %p78
      %p188 = pneg %p75
      %p189 = scmp.lt.s32.totalorder %s15, 1
      %s190 = scalar_select %p189, %s15, 1
      %s191 = smul.addr %s190, 2
      %s192 = smul.addr %s191, 4
      %s193 = scalar_lea.vmem %s3, %s192
      %p194 = pneg %p104
      %p195 = pneg %p101
      %p196 = pneg %p130
      %p197 = pneg %p127
      %p198 = scmp.lt.s32.totalorder %s15, 1
      %s199 = scalar_select %p198, %s15, 1
      %s200 = smul.addr %s199, 2
      %s201 = smul.addr %s200, 4
      %s202 = scalar_lea.vmem %s4, %s201
      %p203 = scmp.lt.s32.totalorder %s15, 1
      %s204 = scalar_select %p203, %s15, 1
      %s205 = smul.addr %s204, 4
      %s206 = smul.addr %s205, 4
      %s207 = scalar_lea.vmem %s0, %s206
      %p208 = scmp.lt.s32.totalorder %s15, 1
      %s209 = scalar_select %p208, %s15, 1
      %s210 = smul.addr %s209, 2
      %s211 = smul.addr %s210, 4
      %s212 = scalar_lea.vmem %s3, %s211
      %p213 = scmp.lt.s32.totalorder %s15, 1
      %s214 = scalar_select %p213, %s15, 1
      %s215 = smul.addr %s214, 2
      %s216 = smul.addr %s215, 4
      %s217 = scalar_lea.vmem %s4, %s216
      %v219 = vld [vmem:[%s212] sm:$0xf]
      %v220 = vld [vmem:[%s212 + $0x4] sm:$0xf]
      %v221 = vunpack.c.l.bf16 %v219
      %v222 = vunpack.c.l.bf16 %v220
      %v223 = vld [vmem:[%s2] sm:$0x1]
      %v225 = vperm.slane %v223, 0
      %v227 = vadd.f32 %v221, %v225
      %v228 = vadd.f32 %v222, %v225
      %vm229 = vcmask 523264
      %230 = vst.msk [vmem:[#allocation2] sm:$0xff] %vm229, %v227
      %231 = vst.msk [vmem:[#allocation2 + $0x8] sm:$0xff] %vm229, %v228
      %v232 = vld [vmem:[%s207] sm:$0xff]
      %v233 = vld [vmem:[%s207 + $0x8] sm:$0xff]
      %v234 = vunpack.c.l.bf16 %v232
      %v235 = vunpack.c.l.bf16 %v233
      %v236 = vmul.f32 %v234, 0.25
      %v237 = vmul.f32 %v235, 0.25
      %v238 = vpack.c.bf16 %v237, %v236
      %v241 = vunpack.c.l.b16 %v232
      %v242 = vunpack.c.l.b16 %v233
      %v243 = vpack.c.b16 %v242, %v241
      %244 = vrot.lane.b32.xlu0 %v243, 64
      %v245 = vpop.permute.xlu0 %244
      %vm246 = vcmask 130048
      %v248 = vsel %vm246, %v238, 0
      %v251 = vsel %vm246, %v245, 0
      %253 = vmatpush.bf16.xpose.msra.mxu0 0
      %254 = vmatpush.bf16.xpose.msra.mxu0 0
      %255 = vmatpush.bf16.xpose.msra.mxu0 0
      %256 = vmatpush.bf16.xpose.msra.mxu0 0
      %257 = vmatpush.bf16.xpose.msra.mxu0 0
      %258 = vmatpush.bf16.xpose.msra.mxu0 0
      %259 = vmatpush.bf16.xpose.msra.mxu0 0
      %260 = vmatpush.bf16.xpose.msra.mxu0 %v251
      %261 = vmatmul.bf16.gmra.mxu0 %v248
      %v262 = vpop.f32.mrf.mxu0
      %v263 = vadd.f32 0.0, %v262
      %v264 = vpop.f32.mrf.mxu0
      %v265 = vadd.f32 0.0, %v264
      %266 = vdwg.mxu0
      %v267 = vsel %vm246, %v263, -inf
      %268 = vmax.xlane.f32.xlu0 %v267
      %v269 = vpop.xlane.xlu0 %268
      %v270 = vsel %vm246, %v265, -inf
      %271 = vmax.xlane.f32.xlu0 %v270
      %v272 = vpop.xlane.xlu0 %271
      %v273 = vsub.f32 %v263, %v269
      %v274 = vsub.f32 %v265, %v272
      %v275 = vmul.f32 %v273, 1.442695
      %v276 = vpow.pop %v275
      %v277 = vmul.f32 %v274, 1.442695
      %v278 = vpow.pop %v277
      %v279 = vsel %vm246, %v276, 0.0
      %280 = vadd.xlane.f32.xlu0 %v279
      %v281 = vpop.xlane.xlu0 %280
      %v282 = vsel %vm246, %v278, 0.0
      %283 = vadd.xlane.f32.xlu0 %v282
      %v284 = vpop.xlane.xlu0 %283
      %v285 = vpack.c.bf16 %v278, %v276
      %v286 = vunpack.c.h.b16 %v232
      %v287 = vunpack.c.h.b16 %v233
      %v288 = vpack.c.b16 %v287, %v286
      %v291 = vsel %vm246, %v285, 0
      %293 = vmatpush.bf16.msra.mxu0 0
      %294 = vmatpush.bf16.msra.mxu0 0
      %295 = vmatpush.bf16.msra.mxu0 0
      %296 = vmatpush.bf16.msra.mxu0 0
      %297 = vmatpush.bf16.msra.mxu0 0
      %298 = vmatpush.bf16.msra.mxu0 0
      %299 = vmatpush.bf16.msra.mxu0 0
      %300 = vmatpush.bf16.msra.mxu0 %v288
      %301 = vmatmul.bf16.gmra.mxu0 %v291
      %v302 = vpop.f32.mrf.mxu0
      %v303 = vadd.f32 0.0, %v302
      %v304 = vpop.f32.mrf.mxu0
      %v305 = vadd.f32 0.0, %v304
      %306 = vdwg.mxu0
      %v307 = vrcp.pop %v281
      %v308 = vrcp.pop %v284
      %v309 = vmul.f32 %v303, %v307
      %v310 = vmul.f32 %v305, %v308
      %v311 = vld [vmem:[#allocation2] sm:$0xff]
      %v312 = vld [vmem:[#allocation2 + $0x8] sm:$0xff]
      %v313 = vpack.c.bf16 %v310, %v309
      %v314 = vld [vmem:[%s1] sm:$0xf]
      %v315 = vld [vmem:[%s1 + $0x4] sm:$0xf]
      %v318 = vunpack.c.l.b16 %v314
      %v319 = vunpack.c.l.b16 %v315
      %v320 = vpack.c.b16 %v319, %v318
      %v323 = vsel %vm246, %v313, 0
      %325 = vmatpush.bf16.msra.mxu0 0
      %326 = vmatpush.bf16.msra.mxu0 0
      %327 = vmatpush.bf16.msra.mxu0 0
      %328 = vmatpush.bf16.msra.mxu0 0
      %329 = vmatpush.bf16.msra.mxu0 0
      %330 = vmatpush.bf16.msra.mxu0 0
      %331 = vmatpush.bf16.msra.mxu0 0
      %332 = vmatpush.bf16.msra.mxu0 %v320
      %333 = vmatmul.bf16.gmra.mxu0 %v323
      %v334 = vpop.f32.mrf.mxu0
      %v335 = vadd.f32 0.0, %v334
      %v336 = vpop.f32.mrf.mxu0
      %v337 = vadd.f32 0.0, %v336
      %338 = vdwg.mxu0
      %v339 = vadd.f32 %v311, %v335
      %v340 = vadd.f32 %v312, %v337
      %341 = vst.msk [vmem:[#allocation2] sm:$0xff] %vm229, %v339
      %342 = vst.msk [vmem:[#allocation2 + $0x8] sm:$0xff] %vm229, %v340
      %344 = vrot.lane.b32.xlu0 %v238, 112
      %v345 = vpop.permute.xlu0 %344
      %346 = vrot.lane.b32.xlu0 %v243, 48
      %v347 = vpop.permute.xlu0 %346
      %v349 = vsel %vm246, %v345, 0
      %v352 = vsel %vm246, %v347, 0
      %354 = vmatpush.bf16.xpose.msra.mxu0 0
      %355 = vmatpush.bf16.xpose.msra.mxu0 0
      %356 = vmatpush.bf16.xpose.msra.mxu0 0
      %357 = vmatpush.bf16.xpose.msra.mxu0 0
      %358 = vmatpush.bf16.xpose.msra.mxu0 0
      %359 = vmatpush.bf16.xpose.msra.mxu0 0
      %360 = vmatpush.bf16.xpose.msra.mxu0 0
      %361 = vmatpush.bf16.xpose.msra.mxu0 %v352
      %362 = vmatmul.bf16.gmra.mxu0 %v349
      %v363 = vpop.f32.mrf.mxu0
      %v364 = vadd.f32 0.0, %v363
      %v365 = vpop.f32.mrf.mxu0
      %v366 = vadd.f32 0.0, %v365
      %367 = vdwg.mxu0
      %v368 = vsel %vm246, %v364, -inf
      %369 = vmax.xlane.f32.xlu0 %v368
      %v370 = vpop.xlane.xlu0 %369
      %v371 = vsel %vm246, %v366, -inf
      %372 = vmax.xlane.f32.xlu0 %v371
      %v373 = vpop.xlane.xlu0 %372
      %v374 = vsub.f32 %v364, %v370
      %v375 = vsub.f32 %v366, %v373
      %v376 = vmul.f32 %v374, 1.442695
      %v377 = vpow.pop %v376
      %v378 = vmul.f32 %v375, 1.442695
      %v379 = vpow.pop %v378
      %v380 = vsel %vm246, %v377, 0.0
      %381 = vadd.xlane.f32.xlu0 %v380
      %v382 = vpop.xlane.xlu0 %381
      %v383 = vsel %vm246, %v379, 0.0
      %384 = vadd.xlane.f32.xlu0 %v383
      %v385 = vpop.xlane.xlu0 %384
      %v386 = vpack.c.bf16 %v379, %v377
      %387 = vrot.lane.b32.xlu0 %v288, 112
      %v388 = vpop.permute.xlu0 %387
      %v391 = vsel %vm246, %v386, 0
      %393 = vmatpush.bf16.msra.mxu0 0
      %394 = vmatpush.bf16.msra.mxu0 0
      %395 = vmatpush.bf16.msra.mxu0 0
      %396 = vmatpush.bf16.msra.mxu0 0
      %397 = vmatpush.bf16.msra.mxu0 0
      %398 = vmatpush.bf16.msra.mxu0 0
      %399 = vmatpush.bf16.msra.mxu0 0
      %400 = vmatpush.bf16.msra.mxu0 %v388
      %401 = vmatmul.bf16.gmra.mxu0 %v391
      %v402 = vpop.f32.mrf.mxu0
      %v403 = vadd.f32 0.0, %v402
      %v404 = vpop.f32.mrf.mxu0
      %v405 = vadd.f32 0.0, %v404
      %406 = vdwg.mxu0
      %v407 = vrcp.pop %v382
      %v408 = vrcp.pop %v385
      %v409 = vmul.f32 %v403, %v407
      %v410 = vmul.f32 %v405, %v408
      %v411 = vld [vmem:[#allocation2] sm:$0xff]
      %v412 = vld [vmem:[#allocation2 + $0x8] sm:$0xff]
      %v413 = vpack.c.bf16 %v410, %v409
      %v414 = vld [vmem:[%s1 + $0x8] sm:$0xf]
      %v415 = vld [vmem:[%s1 + $0xc] sm:$0xf]
      %v418 = vunpack.c.l.b16 %v414
      %v419 = vunpack.c.l.b16 %v415
      %v420 = vpack.c.b16 %v419, %v418
      %v423 = vsel %vm246, %v413, 0
      %425 = vmatpush.bf16.msra.mxu0 0
      %426 = vmatpush.bf16.msra.mxu0 0
      %427 = vmatpush.bf16.msra.mxu0 0
      %428 = vmatpush.bf16.msra.mxu0 0
      %429 = vmatpush.bf16.msra.mxu0 0
      %430 = vmatpush.bf16.msra.mxu0 0
      %431 = vmatpush.bf16.msra.mxu0 0
      %432 = vmatpush.bf16.msra.mxu0 %v420
      %433 = vmatmul.bf16.gmra.mxu0 %v423
      %v434 = vpop.f32.mrf.mxu0
      %v435 = vadd.f32 0.0, %v434
      %v436 = vpop.f32.mrf.mxu0
      %v437 = vadd.f32 0.0, %v436
      %438 = vdwg.mxu0
      %v439 = vadd.f32 %v411, %v435
      %v440 = vadd.f32 %v412, %v437
      %441 = vst.msk [vmem:[#allocation2] sm:$0xff] %vm229, %v439
      %442 = vst.msk [vmem:[#allocation2 + $0x8] sm:$0xff] %vm229, %v440
      %443 = vrot.lane.b32.xlu0 %v238, 96
      %v444 = vpop.permute.xlu0 %443
      %445 = vrot.lane.b32.xlu0 %v243, 32
      %v446 = vpop.permute.xlu0 %445
      %v448 = vsel %vm246, %v444, 0
      %v451 = vsel %vm246, %v446, 0
      %453 = vmatpush.bf16.xpose.msra.mxu0 0
      %454 = vmatpush.bf16.xpose.msra.mxu0 0
      %455 = vmatpush.bf16.xpose.msra.mxu0 0
      %456 = vmatpush.bf16.xpose.msra.mxu0 0
      %457 = vmatpush.bf16.xpose.msra.mxu0 0
      %458 = vmatpush.bf16.xpose.msra.mxu0 0
      %459 = vmatpush.bf16.xpose.msra.mxu0 0
      %460 = vmatpush.bf16.xpose.msra.mxu0 %v451
      %461 = vmatmul.bf16.gmra.mxu0 %v448
      %v462 = vpop.f32.mrf.mxu0
      %v463 = vadd.f32 0.0, %v462
      %v464 = vpop.f32.mrf.mxu0
      %v465 = vadd.f32 0.0, %v464
      %466 = vdwg.mxu0
      %v467 = vsel %vm246, %v463, -inf
      %468 = vmax.xlane.f32.xlu0 %v467
      %v469 = vpop.xlane.xlu0 %468
      %v470 = vsel %vm246, %v465, -inf
      %471 = vmax.xlane.f32.xlu0 %v470
      %v472 = vpop.xlane.xlu0 %471
      %v473 = vsub.f32 %v463, %v469
      %v474 = vsub.f32 %v465, %v472
      %v475 = vmul.f32 %v473, 1.442695
      %v476 = vpow.pop %v475
      %v477 = vmul.f32 %v474, 1.442695
      %v478 = vpow.pop %v477
      %v479 = vsel %vm246, %v476, 0.0
      %480 = vadd.xlane.f32.xlu0 %v479
      %v481 = vpop.xlane.xlu0 %480
      %v482 = vsel %vm246, %v478, 0.0
      %483 = vadd.xlane.f32.xlu0 %v482
      %v484 = vpop.xlane.xlu0 %483
      %v485 = vpack.c.bf16 %v478, %v476
      %486 = vrot.lane.b32.xlu0 %v288, 96
      %v487 = vpop.permute.xlu0 %486
      %v490 = vsel %vm246, %v485, 0
      %492 = vmatpush.bf16.msra.mxu0 0
      %493 = vmatpush.bf16.msra.mxu0 0
      %494 = vmatpush.bf16.msra.mxu0 0
      %495 = vmatpush.bf16.msra.mxu0 0
      %496 = vmatpush.bf16.msra.mxu0 0
      %497 = vmatpush.bf16.msra.mxu0 0
      %498 = vmatpush.bf16.msra.mxu0 0
      %499 = vmatpush.bf16.msra.mxu0 %v487
      %500 = vmatmul.bf16.gmra.mxu0 %v490
      %v501 = vpop.f32.mrf.mxu0
      %v502 = vadd.f32 0.0, %v501
      %v503 = vpop.f32.mrf.mxu0
      %v504 = vadd.f32 0.0, %v503
      %505 = vdwg.mxu0
      %v506 = vrcp.pop %v481
      %v507 = vrcp.pop %v484
      %v508 = vmul.f32 %v502, %v506
      %v509 = vmul.f32 %v504, %v507
      %v510 = vld [vmem:[#allocation2] sm:$0xff]
      %v511 = vld [vmem:[#allocation2 + $0x8] sm:$0xff]
      %v512 = vpack.c.bf16 %v509, %v508
      %v513 = vld [vmem:[%s1 + $0x10] sm:$0xf]
      %v514 = vld [vmem:[%s1 + $0x14] sm:$0xf]
      %v517 = vunpack.c.l.b16 %v513
      %v518 = vunpack.c.l.b16 %v514
      %v519 = vpack.c.b16 %v518, %v517
      %v522 = vsel %vm246, %v512, 0
      %524 = vmatpush.bf16.msra.mxu0 0
      %525 = vmatpush.bf16.msra.mxu0 0
      %526 = vmatpush.bf16.msra.mxu0 0
      %527 = vmatpush.bf16.msra.mxu0 0
      %528 = vmatpush.bf16.msra.mxu0 0
      %529 = vmatpush.bf16.msra.mxu0 0
      %530 = vmatpush.bf16.msra.mxu0 0
      %531 = vmatpush.bf16.msra.mxu0 %v519
      %532 = vmatmul.bf16.gmra.mxu0 %v522
      %v533 = vpop.f32.mrf.mxu0
      %v534 = vadd.f32 0.0, %v533
      %v535 = vpop.f32.mrf.mxu0
      %v536 = vadd.f32 0.0, %v535
      %537 = vdwg.mxu0
      %v538 = vadd.f32 %v510, %v534
      %v539 = vadd.f32 %v511, %v536
      %540 = vst.msk [vmem:[#allocation2] sm:$0xff] %vm229, %v538
      %541 = vst.msk [vmem:[#allocation2 + $0x8] sm:$0xff] %vm229, %v539
      %542 = vrot.lane.b32.xlu0 %v238, 80
      %v543 = vpop.permute.xlu0 %542
      %544 = vrot.lane.b32.xlu0 %v243, 16
      %v545 = vpop.permute.xlu0 %544
      %v547 = vsel %vm246, %v543, 0
      %v550 = vsel %vm246, %v545, 0
      %552 = vmatpush.bf16.xpose.msra.mxu0 0
      %553 = vmatpush.bf16.xpose.msra.mxu0 0
      %554 = vmatpush.bf16.xpose.msra.mxu0 0
      %555 = vmatpush.bf16.xpose.msra.mxu0 0
      %556 = vmatpush.bf16.xpose.msra.mxu0 0
      %557 = vmatpush.bf16.xpose.msra.mxu0 0
      %558 = vmatpush.bf16.xpose.msra.mxu0 0
      %559 = vmatpush.bf16.xpose.msra.mxu0 %v550
      %560 = vmatmul.bf16.gmra.mxu0 %v547
      %v561 = vpop.f32.mrf.mxu0
      %v562 = vadd.f32 0.0, %v561
      %v563 = vpop.f32.mrf.mxu0
      %v564 = vadd.f32 0.0, %v563
      %565 = vdwg.mxu0
      %v566 = vsel %vm246, %v562, -inf
      %567 = vmax.xlane.f32.xlu0 %v566
      %v568 = vpop.xlane.xlu0 %567
      %v569 = vsel %vm246, %v564, -inf
      %570 = vmax.xlane.f32.xlu0 %v569
      %v571 = vpop.xlane.xlu0 %570
      %v572 = vsub.f32 %v562, %v568
      %v573 = vsub.f32 %v564, %v571
      %v574 = vmul.f32 %v572, 1.442695
      %v575 = vpow.pop %v574
      %v576 = vmul.f32 %v573, 1.442695
      %v577 = vpow.pop %v576
      %v578 = vsel %vm246, %v575, 0.0
      %579 = vadd.xlane.f32.xlu0 %v578
      %v580 = vpop.xlane.xlu0 %579
      %v581 = vsel %vm246, %v577, 0.0
      %582 = vadd.xlane.f32.xlu0 %v581
      %v583 = vpop.xlane.xlu0 %582
      %v584 = vpack.c.bf16 %v577, %v575
      %585 = vrot.lane.b32.xlu0 %v288, 80
      %v586 = vpop.permute.xlu0 %585
      %v589 = vsel %vm246, %v584, 0
      %591 = vmatpush.bf16.msra.mxu0 0
      %592 = vmatpush.bf16.msra.mxu0 0
      %593 = vmatpush.bf16.msra.mxu0 0
      %594 = vmatpush.bf16.msra.mxu0 0
      %595 = vmatpush.bf16.msra.mxu0 0
      %596 = vmatpush.bf16.msra.mxu0 0
      %597 = vmatpush.bf16.msra.mxu0 0
      %598 = vmatpush.bf16.msra.mxu0 %v586
      %599 = vmatmul.bf16.gmra.mxu0 %v589
      %v600 = vpop.f32.mrf.mxu0
      %v601 = vadd.f32 0.0, %v600
      %v602 = vpop.f32.mrf.mxu0
      %v603 = vadd.f32 0.0, %v602
      %604 = vdwg.mxu0
      %v605 = vrcp.pop %v580
      %v606 = vrcp.pop %v583
      %v607 = vmul.f32 %v601, %v605
      %v608 = vmul.f32 %v603, %v606
      %v609 = vld [vmem:[#allocation2] sm:$0xff]
      %v610 = vld [vmem:[#allocation2 + $0x8] sm:$0xff]
      %v611 = vpack.c.bf16 %v608, %v607
      %v612 = vld [vmem:[%s1 + $0x18] sm:$0xf]
      %v613 = vld [vmem:[%s1 + $0x1c] sm:$0xf]
      %v616 = vunpack.c.l.b16 %v612
      %v617 = vunpack.c.l.b16 %v613
      %v618 = vpack.c.b16 %v617, %v616
      %v621 = vsel %vm246, %v611, 0
      %623 = vmatpush.bf16.msra.mxu0 0
      %624 = vmatpush.bf16.msra.mxu0 0
      %625 = vmatpush.bf16.msra.mxu0 0
      %626 = vmatpush.bf16.msra.mxu0 0
      %627 = vmatpush.bf16.msra.mxu0 0
      %628 = vmatpush.bf16.msra.mxu0 0
      %629 = vmatpush.bf16.msra.mxu0 0
      %630 = vmatpush.bf16.msra.mxu0 %v618
      %631 = vmatmul.bf16.gmra.mxu0 %v621
      %v632 = vpop.f32.mrf.mxu0
      %v633 = vadd.f32 0.0, %v632
      %v634 = vpop.f32.mrf.mxu0
      %v635 = vadd.f32 0.0, %v634
      %636 = vdwg.mxu0
      %v637 = vadd.f32 %v609, %v633
      %v638 = vadd.f32 %v610, %v635
      %639 = vst.msk [vmem:[#allocation2] sm:$0xff] %vm229, %v637
      %640 = vst.msk [vmem:[#allocation2 + $0x8] sm:$0xff] %vm229, %v638
      %v641 = vld [vmem:[#allocation2] sm:$0xff]
      %v642 = vld [vmem:[#allocation2 + $0x8] sm:$0xff]
      %v643 = vpack.c.bf16 %v641, %v641
      %v644 = vpack.c.bf16 %v642, %v642
      %vm645 = vcmask 519168
      %646 = vst.msk [vmem:[%s217] sm:$0xf] %vm645, %v643
      %647 = vst.msk [vmem:[%s217 + $0x4] sm:$0xf] %vm645, %v644
      %p648 = scmp.lt.s32.totalorder %s15, 1
      %s649 = scalar_select %p648, %s15, 1
      %s650 = smul.addr %s649, 2
      %s651 = smul.addr %s650, 4
      %s652 = scalar_lea.vmem %s4, %s651
      // Predicated region
      $region37: #{vision_transformer.12} parent=35 // pred_check
        %p653 = pneg %p127
      $region38: #{vision_transformer.12} parent=35 // pred_check_branch
        %655 = sbr.rel (%p653) target = $region40
      $region39: #{vision_transformer.12} parent=35 // pred_region
        _
      $region40: #{vision_transformer.12} parent=35 // pred_fallthru
        _
    $region36: #{vision_transformer.12} parent=5 // pred_fallthru
      _
    %p656 = scmp.le.s32.totalorder 2, %s10
    // Predicated region
    $region41: #{vision_transformer.12} parent=5 // pred_check
      %p657 = pneg %p656
    $region42: #{vision_transformer.12} parent=5 // pred_check_branch
      %659 = sbr.rel (%p657) target = $region44
    $region43: #{vision_transformer.12} parent=5 // pred_region
      %s660 = ssub.s32 %s10, 2
      // Predicated region
      $region45: #{vision_transformer.12} parent=43 // pred_check
        %p661 = pneg %p133
      $region46: #{vision_transformer.12} parent=43 // pred_check_branch
        %663 = sbr.rel (%p661) target = $region48
      $region47: #{vision_transformer.12} parent=43 // pred_region
        %p664 = scmp.lt.s32.totalorder %s16, 1
        %s665 = scalar_select %p664, %s16, 1
        %s666 = smul.addr %s665, 2
        %s667 = smul.addr %s666, 4
        %s668 = scalar_lea.vmem %s4, %s667
      $region48: #{vision_transformer.12} parent=43 // pred_fallthru
        _
    $region44: #{vision_transformer.12} parent=5 // pred_fallthru
      _
  $region6: #{vision_transformer.12} parent=0 // loop_footer
    %s14 = sadd.s32 1, %s10
  $region7: #{vision_transformer.12} parent=0 // loop_footer_branch
    %9 = sbr.rel target = $region3
  $region8: #{vision_transformer.12} parent=0 // loop_exit
    _

// kernel: vision_transformer.13
$region0: #{vision_transformer.13}
  #allocation0 [shape = 'u32[]', space=smem, size = 0x4, offset = 0x4, fixed_abs, tag = 'smem constant byte address 0x4 - core index']
  #allocation1 [shape = 'u32[72,128]{1,0:T(1,128)}', space=vmem, size = 0x9000, scoped, tag = 'internal scratch']
  #allocation2 [shape = 'bf16[32,64]{1,0:T(8,128)(2,1)}', space=vmem, size = 0x2000, scoped, tag = 'scratch operand']
  %s0 = inlined_call_operand.vmem [shape: bf16[32,64], index: 0, kind: input, shape index: {}]
  %s1 = inlined_call_operand.hbm [shape: bf16[64,2048], index: 1, kind: input, shape index: {}]
  %s2 = inlined_call_operand.vmem [shape: f32[1,2048], index: 2, kind: input, shape index: {}]
  %s3 = inlined_call_operand.vmem [shape: f32[1,64], index: 3, kind: input, shape index: {}]
  %s4 = inlined_call_operand.vmem [shape: f32[1,64], index: 4, kind: input, shape index: {}]
  %s5 = inlined_call_operand.vmem [shape: bf16[32,2048], index: 5, kind: output, shape index: {}]
  %s6 = sld [smem:[#allocation0]]
  $region80: #{vision_transformer.13} parent=0
    _
  %s8 = ssub.s32 1, %s6
  %s9 = scalar_select 0, %s8, %s6
  $region1: #{vision_transformer.13} parent=0
    #allocation3 [shape = 'u8[131072]{0}', space=vmem, size = 0x20000, scoped, tag = 'input window, operand 1']
    #allocation4 [shape = 's32[2]{0}', space=sflag, size = 0x8, scoped, tag = 'scoped memory for vision_transformer.13']
    #allocation5 [shape = 'u8[65536]{0}', space=vmem, size = 0x10000, scoped, tag = 'output window, operand 0']
    %10 = vsyncpa [#allocation4], 0
    %s11 = scalar_lea.sflag [#allocation4], 1
    %12 = vsyncpa %s11, 0
    loop: start=0, step=1, limit=6
    $region2: #{vision_transformer.13} parent=1 // loop_pre_header
      _
    $region3: #{vision_transformer.13} parent=1 // loop_header
      %s14 = sphi 0, %s18
      %p15 = scmp.ge.s32.totalorder %s14, 6
      %s21 = sphi 0, %s40
      %s22 = sphi 0, %s36
      %s23 = sphi 0, %s32
      %s24 = sphi 0, %s21
      %s25 = sphi 0, %s22
      %s26 = sphi 0, %s23
      %s27 = sphi 0, %s24
      %s28 = sphi 0, %s25
      %s29 = sphi 0, %s26
      %s45 = sphi 0, %s47
      %s48 = sphi 0, %s45
      %s49 = sphi 0, %s48
      %s65 = sphi 0, %s49
      %s73 = sphi 0, %s75
      %s76 = sphi 0, %s73
      %s77 = sphi 0, %s76
      %s93 = sphi 0, %s77
      %s99 = sphi 0, %s101
      %s102 = sphi 0, %s99
      %s103 = sphi 0, %s102
      %s119 = sphi 0, %s103
      %s123 = sphi 0, %s123
      %s125 = sphi 0, %s123
      %s126 = sphi 0, %s125
      %s140 = sphi 0, %s126
      %s144 = sphi 0, %s144
      %s146 = sphi 0, %s144
      %s147 = sphi 0, %s146
      %s161 = sphi 0, %s147
      %s169 = sphi 0, %s171
      %s172 = sphi 0, %s169
      %s173 = sphi 0, %s172
      %s189 = sphi 0, %s173
    $region4: #{vision_transformer.13} parent=1 // loop_header_branch
      %17 = sbr.rel (%p15) target = $region8
    $region5: #{vision_transformer.13} parent=1 // loop_body
      %s19 = ssub.s32 %s14, 1
      %s20 = ssub.s32 %s14, 2
      %s30 = sadd.s32 1, %s23
      %p31 = scmp.ge.s32.totalorder %s30, 1
      %s32 = scalar_select %p31, 0, %s30
      %s33 = sadd.s32 1, %s22
      %s34 = scalar_select %p31, %s33, %s22
      %p35 = scmp.ge.s32.totalorder %s34, 4
      %s36 = scalar_select %p35, 0, %s34
      %s37 = sadd.s32 1, %s21
      %s38 = scalar_select %p35, %s37, %s21
      %p39 = scmp.ge.s32.totalorder %s38, 1
      %s40 = scalar_select %p39, 0, %s38
      %s41 = ssub.s32 %s21, %s40
      %s42 = ssub.s32 %s23, %s32
      %s43 = sor.u32 %s41, %s42
      %p44 = scmp.eq.s32.totalorder %s43, 0
      %s46 = sadd.s32 %s45, 1
      %s47 = scalar_select %p44, %s45, %s46
      %p50 = pneg %p44
      %p51 = scmp.eq.s32.totalorder %s14, 3
      %p52 = por %p50, %p51
      %p53 = scmp.ne.s32.totalorder %s45, %s48
      %p54 = scmp.eq.s32.totalorder %s14, 0
      %p55 = por %p53, %p54
      %p56 = scmp.ne.s32.totalorder %s45, %s48
      %p57 = scmp.eq.s32.totalorder %s19, 3
      %p58 = por %p56, %p57
      %p59 = scmp.ne.s32.totalorder %s48, %s49
      %p60 = scmp.eq.s32.totalorder %s19, 0
      %p61 = por %p59, %p60
      %p62 = scmp.ne.s32.totalorder %s48, %s49
      %p63 = scmp.eq.s32.totalorder %s20, 3
      %p64 = por %p62, %p63
      %p66 = scmp.ne.s32.totalorder %s49, %s65
      %p67 = scmp.eq.s32.totalorder %s20, 0
      %p68 = por %p66, %p67
      %s69 = ssub.s32 %s23, %s32
      %s70 = ssub.s32 %s22, %s36
      %s71 = sor.u32 %s69, %s70
      %p72 = scmp.eq.s32.totalorder %s71, 0
      %s74 = sadd.s32 %s73, 1
      %s75 = scalar_select %p72, %s73, %s74
      %p78 = pneg %p72
      %p79 = scmp.eq.s32.totalorder %s14, 3
      %p80 = por %p78, %p79
      %p81 = scmp.ne.s32.totalorder %s73, %s76
      %p82 = scmp.eq.s32.totalorder %s14, 0
      %p83 = por %p81, %p82
      %p84 = scmp.ne.s32.totalorder %s73, %s76
      %p85 = scmp.eq.s32.totalorder %s19, 3
      %p86 = por %p84, %p85
      %p87 = scmp.ne.s32.totalorder %s76, %s77
      %p88 = scmp.eq.s32.totalorder %s19, 0
      %p89 = por %p87, %p88
      %p90 = scmp.ne.s32.totalorder %s76, %s77
      %p91 = scmp.eq.s32.totalorder %s20, 3
      %p92 = por %p90, %p91
      %p94 = scmp.ne.s32.totalorder %s77, %s93
      %p95 = scmp.eq.s32.totalorder %s20, 0
      %p96 = por %p94, %p95
      %s97 = ssub.s32 %s22, %s36
      %p98 = scmp.eq.s32.totalorder %s97, 0
      %s100 = sadd.s32 %s99, 1
      %s101 = scalar_select %p98, %s99, %s100
      %p104 = pneg %p98
      %p105 = scmp.eq.s32.totalorder %s14, 3
      %p106 = por %p104, %p105
      %p107 = scmp.ne.s32.totalorder %s99, %s102
      %p108 = scmp.eq.s32.totalorder %s14, 0
      %p109 = por %p107, %p108
      %p110 = scmp.ne.s32.totalorder %s99, %s102
      %p111 = scmp.eq.s32.totalorder %s19, 3
      %p112 = por %p110, %p111
      %p113 = scmp.ne.s32.totalorder %s102, %s103
      %p114 = scmp.eq.s32.totalorder %s19, 0
      %p115 = por %p113, %p114
      %p116 = scmp.ne.s32.totalorder %s102, %s103
      %p117 = scmp.eq.s32.totalorder %s20, 3
      %p118 = por %p116, %p117
      %p120 = scmp.ne.s32.totalorder %s103, %s119
      %p121 = scmp.eq.s32.totalorder %s20, 0
      %p122 = por %p120, %p121
      %s124 = sadd.s32 %s123, 1
      %p127 = scmp.eq.s32.totalorder %s14, 3
      %p128 = scmp.ne.s32.totalorder %s123, %s125
      %p129 = scmp.eq.s32.totalorder %s14, 0
      %p130 = por %p128, %p129
      %p131 = scmp.ne.s32.totalorder %s123, %s125
      %p132 = scmp.eq.s32.totalorder %s19, 3
      %p133 = por %p131, %p132
      %p134 = scmp.ne.s32.totalorder %s125, %s126
      %p135 = scmp.eq.s32.totalorder %s19, 0
      %p136 = por %p134, %p135
      %p137 = scmp.ne.s32.totalorder %s125, %s126
      %p138 = scmp.eq.s32.totalorder %s20, 3
      %p139 = por %p137, %p138
      %p141 = scmp.ne.s32.totalorder %s126, %s140
      %p142 = scmp.eq.s32.totalorder %s20, 0
      %p143 = por %p141, %p142
      %s145 = sadd.s32 %s144, 1
      %p148 = scmp.eq.s32.totalorder %s14, 3
      %p149 = scmp.ne.s32.totalorder %s144, %s146
      %p150 = scmp.eq.s32.totalorder %s14, 0
      %p151 = por %p149, %p150
      %p152 = scmp.ne.s32.totalorder %s144, %s146
      %p153 = scmp.eq.s32.totalorder %s19, 3
      %p154 = por %p152, %p153
      %p155 = scmp.ne.s32.totalorder %s146, %s147
      %p156 = scmp.eq.s32.totalorder %s19, 0
      %p157 = por %p155, %p156
      %p158 = scmp.ne.s32.totalorder %s146, %s147
      %p159 = scmp.eq.s32.totalorder %s20, 3
      %p160 = por %p158, %p159
      %p162 = scmp.ne.s32.totalorder %s147, %s161
      %p163 = scmp.eq.s32.totalorder %s20, 0
      %p164 = por %p162, %p163
      %s165 = ssub.s32 %s21, %s40
      %s166 = ssub.s32 %s22, %s36
      %s167 = sor.u32 %s165, %s166
      %p168 = scmp.eq.s32.totalorder %s167, 0
      %s170 = sadd.s32 %s169, 1
      %s171 = scalar_select %p168, %s169, %s170
      %p174 = pneg %p168
      %p175 = scmp.eq.s32.totalorder %s14, 3
      %p176 = por %p174, %p175
      %p177 = scmp.ne.s32.totalorder %s169, %s172
      %p178 = scmp.eq.s32.totalorder %s14, 0
      %p179 = por %p177, %p178
      %p180 = scmp.ne.s32.totalorder %s169, %s172
      %p181 = scmp.eq.s32.totalorder %s19, 3
      %p182 = por %p180, %p181
      %p183 = scmp.ne.s32.totalorder %s172, %s173
      %p184 = scmp.eq.s32.totalorder %s19, 0
      %p185 = por %p183, %p184
      %p186 = scmp.ne.s32.totalorder %s172, %s173
      %p187 = scmp.eq.s32.totalorder %s20, 3
      %p188 = por %p186, %p187
      %p190 = scmp.ne.s32.totalorder %s173, %s189
      %p191 = scmp.eq.s32.totalorder %s20, 0
      %p192 = por %p190, %p191
      %p193 = scmp.le.s32.totalorder 1, %s14
      %p194 = scmp.lt.s32.totalorder %s14, 5
      %p195 = pnand %p193, %p194
      %p196 = pneg %p195
      // Predicated region
      $region9: #{vision_transformer.13} parent=5 // pred_check
        _
      $region10: #{vision_transformer.13} parent=5 // pred_check_branch
        %198 = sbr.rel (%p195) target = $region12
      $region11: #{vision_transformer.13} parent=5 // pred_region
        %s199 = ssub.s32 %s14, 1
        // Predicated region
        $region13: #{vision_transformer.13} parent=11 // pred_check
          %p200 = pneg %p61
        $region14: #{vision_transformer.13} parent=11 // pred_check_branch
          %202 = sbr.rel (%p200) target = $region16
        $region15: #{vision_transformer.13} parent=11 // pred_region
          %s203 = smul.u32 4, %s24
          %p204 = scmp.lt.s32.totalorder %s203, 3
          %s205 = scalar_select %p204, %s203, 3
          %p206 = scmp.lt.s32.totalorder %s26, 0
          %s207 = scalar_select %p206, %s26, 0
          %s208 = sadd.s32 %s207, %s205
          %s209 = smul.addr %s208, 4
          %s210 = scalar_lea.vmem %s0, %s209
          %s211 = smul.u32 4, %s24
        $region16: #{vision_transformer.13} parent=11 // pred_fallthru
          _
        // Predicated region
        $region17: #{vision_transformer.13} parent=11 // pred_check
          %p212 = pneg %p136
        $region18: #{vision_transformer.13} parent=11 // pred_check_branch
          %214 = sbr.rel (%p212) target = $region20
        $region19: #{vision_transformer.13} parent=11 // pred_region
          _
        $region20: #{vision_transformer.13} parent=11 // pred_fallthru
          _
        // Predicated region
        $region21: #{vision_transformer.13} parent=11 // pred_check
          %p215 = pneg %p157
        $region22: #{vision_transformer.13} parent=11 // pred_check_branch
          %217 = sbr.rel (%p215) target = $region24
        $region23: #{vision_transformer.13} parent=11 // pred_region
          _
        $region24: #{vision_transformer.13} parent=11 // pred_fallthru
          _
      $region12: #{vision_transformer.13} parent=5 // pred_fallthru
        _
      %p218 = scmp.lt.s32.totalorder %s14, 4
      // Predicated region
      $region25: #{vision_transformer.13} parent=5 // pred_check
        %p219 = pneg %p218
      $region26: #{vision_transformer.13} parent=5 // pred_check_branch
        %221 = sbr.rel (%p219) target = $region28
      $region27: #{vision_transformer.13} parent=5 // pred_region
        // Predicated region
        $region29: #{vision_transformer.13} parent=27 // pred_check
          %p222 = pneg %p83
        $region30: #{vision_transformer.13} parent=27 // pred_check_branch
          %224 = sbr.rel (%p222) target = $region32
        $region31: #{vision_transformer.13} parent=27 // pred_region
          %s225 = sand.u32 %s73, 1
          %s226 = scalar_lea.sflag [#allocation4], %s225
          %s227 = sand.u32 %s73, 1
          %s228 = smul.addr %s227, 128
          %s229 = scalar_lea.vmem [#allocation3], %s228
          %s230 = smul.u32 8, %s23
          %s231 = smul.u32 4, %s22
          %233 = vsyncadd %s226, 0
          %s234 = smul.addr %s230, 16
          %s235 = sadd.s32 %s231, %s234
          %s236 = smul.addr %s235, 4
          %s237 = scalar_lea.hbm %s1, %s236
          %s238 = sshll.u32 %s237, 4
          %s239 = int_to_ptr.hbm [resolvable:$true] %s238
          %s240 = sshll.u32 %s229, 4
          %s241 = int_to_ptr.vmem [resolvable:$true] %s240
          %246 = dma.hbm_to_vmem [thread:$0]  %s239, 2048, %s241, %s226, 1024, 256, 16
        $region32: #{vision_transformer.13} parent=27 // pred_fallthru
          _
        // Predicated region
        $region33: #{vision_transformer.13} parent=27 // pred_check
          %p247 = pneg %p109
        $region34: #{vision_transformer.13} parent=27 // pred_check_branch
          %249 = sbr.rel (%p247) target = $region36
        $region35: #{vision_transformer.13} parent=27 // pred_region
          %s250 = smul.u32 4, %s22
          %p251 = scmp.lt.s32.totalorder %s250, 15
          %s252 = scalar_select %p251, %s250, 15
          %s253 = scalar_lea.vmem %s2, %s252
          %s254 = smul.u32 4, %s22
        $region36: #{vision_transformer.13} parent=27 // pred_fallthru
          _
      $region28: #{vision_transformer.13} parent=5 // pred_fallthru
        _
      %p255 = scmp.le.s32.totalorder 1, %s14
      %p256 = scmp.lt.s32.totalorder %s14, 5
      %p257 = pnand %p255, %p256
      %p258 = pneg %p257
      // Predicated region
      $region37: #{vision_transformer.13} parent=5 // pred_check
        _
      $region38: #{vision_transformer.13} parent=5 // pred_check_branch
        %260 = sbr.rel (%p257) target = $region40
      $region39: #{vision_transformer.13} parent=5 // pred_region
        %s261 = ssub.s32 %s14, 1
        %s262 = sand.u32 %s76, 1
        %s263 = scalar_lea.sflag [#allocation4], %s262
        %s264 = sand.u32 %s76, 1
        %s265 = smul.addr %s264, 128
        %s266 = scalar_lea.vmem [#allocation3], %s265
        // Predicated region
        $region41: #{vision_transformer.13} parent=39 // pred_check
          %p267 = pneg %p89
        $region42: #{vision_transformer.13} parent=39 // pred_check_branch
          %269 = sbr.rel (%p267) target = $region44
        $region43: #{vision_transformer.13} parent=39 // pred_region
          %271 = dma.done %s263, 2048
        $region44: #{vision_transformer.13} parent=39 // pred_fallthru
          _
        %s272 = smul.u32 4, %s24
        %p273 = scmp.lt.s32.totalorder %s272, 3
        %s274 = scalar_select %p273, %s272, 3
        %p275 = scmp.lt.s32.totalorder %s26, 0
        %s276 = scalar_select %p275, %s26, 0
        %s277 = sadd.s32 %s276, %s274
        %s278 = smul.addr %s277, 4
        %s279 = scalar_lea.vmem %s0, %s278
        %p280 = pneg %p61
        %p281 = pneg %p58
        %s282 = sand.u32 %s76, 1
        %s283 = scalar_lea.sflag [#allocation4], %s282
        %s284 = sand.u32 %s76, 1
        %s285 = smul.addr %s284, 128
        %s286 = scalar_lea.vmem [#allocation3], %s285
        %p287 = pneg %p89
        %p288 = pneg %p86
        %s289 = smul.u32 4, %s25
        %p290 = scmp.lt.s32.totalorder %s289, 15
        %s291 = scalar_select %p290, %s289, 15
        %s292 = scalar_lea.vmem %s2, %s291
        %p293 = pneg %p115
        %p294 = pneg %p112
        %p295 = pneg %p136
        %p296 = pneg %p133
        %p297 = pneg %p157
        %p298 = pneg %p154
        %p299 = pneg %p185
        %p300 = pneg %p182
        %s301 = sand.u32 %s172, 1
        %s302 = sand.u32 %s172, 1
        %s303 = smul.addr %s302, 64
        %s304 = scalar_lea.vmem [#allocation5], %s303
        %s305 = smul.u32 4, %s24
        %p306 = scmp.lt.s32.totalorder %s305, 3
        %s307 = scalar_select %p306, %s305, 3
        %p308 = scmp.lt.s32.totalorder %s26, 0
        %s309 = scalar_select %p308, %s26, 0
        %s310 = sadd.s32 %s309, %s307
        %s311 = smul.addr %s310, 4
        %s312 = scalar_lea.vmem %s0, %s311
        %s313 = smul.u32 4, %s24
        %s314 = smul.u32 8, %s26
        %s315 = smul.u32 4, %s25
        %s316 = smul.u32 4, %s25
        %p317 = scmp.lt.s32.totalorder %s316, 15
        %s318 = scalar_select %p317, %s316, 15
        %s319 = scalar_lea.vmem %s2, %s318
        %s320 = smul.u32 4, %s25
        %s321 = smul.u32 4, %s24
        %s322 = smul.u32 4, %s25
        %p324 = scmp.eq.s32.totalorder %s25, 0
        // Predicated region
        $region45: #{vision_transformer.13} parent=39 // pred_check
          %p325 = pneg %p324
        $region46: #{vision_transformer.13} parent=39 // pred_check_branch
          %327 = sbr.rel (%p325) target = $region48
        $region47: #{vision_transformer.13} parent=39 // pred_region
          %v328 = vld [vmem:[%s312] sm:$0xf]
          %v329 = vld [vmem:[%s312 + $0x4] sm:$0xf]
          %v330 = vld [vmem:[%s312 + $0x8] sm:$0xf]
          %v331 = vld [vmem:[%s312 + $0xc] sm:$0xf]
          %v332 = vunpack.c.l.bf16 %v328
          %v333 = vunpack.c.l.bf16 %v329
          %v334 = vunpack.c.l.bf16 %v330
          %v335 = vunpack.c.l.bf16 %v331
          %vm336 = vcmask 523264
          %v337 = vsel %vm336, %v332, 0.0
          %338 = vadd.xlane.f32.xlu0 %v337
          %v339 = vpop.xlane.xlu0 %338
          %v340 = vsel %vm336, %v333, 0.0
          %341 = vadd.xlane.f32.xlu0 %v340
          %v342 = vpop.xlane.xlu0 %341
          %v343 = vsel %vm336, %v334, 0.0
          %344 = vadd.xlane.f32.xlu0 %v343
          %v345 = vpop.xlane.xlu0 %344
          %v346 = vsel %vm336, %v335, 0.0
          %347 = vadd.xlane.f32.xlu0 %v346
          %v348 = vpop.xlane.xlu0 %347
          %v349 = vrcp.pop 64.0
          %v350 = vmul.f32 64.0, %v349
          %v351 = vsub.f32 1.0, %v350
          %v352 = vmul.f32 %v349, %v351
          %v353 = vadd.f32 %v349, %v352
          %vm354 = vweird.f32 %v349
          %v355 = vsel %vm354, %v349, %v353
          %v356 = vmul.f32 %v339, %v355
          %v357 = vmul.f32 %v342, %v355
          %v358 = vmul.f32 %v345, %v355
          %v359 = vmul.f32 %v348, %v355
          %v360 = vsub.f32 %v332, %v356
          %v361 = vsub.f32 %v333, %v357
          %v362 = vsub.f32 %v334, %v358
          %v363 = vsub.f32 %v335, %v359
          %v364 = vmul.f32 %v360, %v360
          %v365 = vmul.f32 %v361, %v361
          %v366 = vmul.f32 %v362, %v362
          %v367 = vmul.f32 %v363, %v363
          %v368 = vsel %vm336, %v364, 0.0
          %369 = vadd.xlane.f32.xlu0 %v368
          %v370 = vpop.xlane.xlu0 %369
          %v371 = vsel %vm336, %v365, 0.0
          %372 = vadd.xlane.f32.xlu0 %v371
          %v373 = vpop.xlane.xlu0 %372
          %v374 = vsel %vm336, %v366, 0.0
          %375 = vadd.xlane.f32.xlu0 %v374
          %v376 = vpop.xlane.xlu0 %375
          %v377 = vsel %vm336, %v367, 0.0
          %378 = vadd.xlane.f32.xlu0 %v377
          %v379 = vpop.xlane.xlu0 %378
          %v380 = vmul.f32 %v370, %v355
          %v381 = vmul.f32 %v373, %v355
          %v382 = vmul.f32 %v376, %v355
          %v383 = vmul.f32 %v379, %v355
          %v384 = vadd.f32 %v380, 1e-05
          %v385 = vadd.f32 %v381, 1e-05
          %v386 = vadd.f32 %v382, 1e-05
          %v387 = vadd.f32 %v383, 1e-05
          %v388 = vrsqrt.pop %v384
          %v389 = vmul.f32 %v388, %v384
          %v390 = vmul.f32 %v389, %v388
          %v391 = vmul.f32 0.5, %v390
          %v392 = vsub.f32 1.5, %v391
          %v393 = vmul.f32 %v388, %v392
          %vm394 = vweird.f32 %v384
          %vm395 = vweird.f32 %v388
          %vm396 = vmor %vm394, %vm395
          %v397 = vsel %vm396, %v388, %v393
          %v398 = vrsqrt.pop %v385
          %v399 = vmul.f32 %v398, %v385
          %v400 = vmul.f32 %v399, %v398
          %v401 = vmul.f32 0.5, %v400
          %v402 = vsub.f32 1.5, %v401
          %v403 = vmul.f32 %v398, %v402
          %vm404 = vweird.f32 %v385
          %vm405 = vweird.f32 %v398
          %vm406 = vmor %vm404, %vm405
          %v407 = vsel %vm406, %v398, %v403
          %v408 = vrsqrt.pop %v386
          %v409 = vmul.f32 %v408, %v386
          %v410 = vmul.f32 %v409, %v408
          %v411 = vmul.f32 0.5, %v410
          %v412 = vsub.f32 1.5, %v411
          %v413 = vmul.f32 %v408, %v412
          %vm414 = vweird.f32 %v386
          %vm415 = vweird.f32 %v408
          %vm416 = vmor %vm414, %vm415
          %v417 = vsel %vm416, %v408, %v413
          %v418 = vrsqrt.pop %v387
          %v419 = vmul.f32 %v418, %v387
          %v420 = vmul.f32 %v419, %v418
          %v421 = vmul.f32 0.5, %v420
          %v422 = vsub.f32 1.5, %v421
          %v423 = vmul.f32 %v418, %v422
          %vm424 = vweird.f32 %v387
          %vm425 = vweird.f32 %v418
          %vm426 = vmor %vm424, %vm425
          %v427 = vsel %vm426, %v418, %v423
          %v428 = vmul.f32 %v360, %v397
          %v429 = vmul.f32 %v361, %v407
          %v430 = vmul.f32 %v362, %v417
          %v431 = vmul.f32 %v363, %v427
          %v432 = vld [vmem:[%s3] sm:$0x1]
          %v434 = vperm.slane %v432, 0
          %v436 = vmul.f32 %v428, %v434
          %v437 = vmul.f32 %v429, %v434
          %v438 = vmul.f32 %v430, %v434
          %v439 = vmul.f32 %v431, %v434
          %v440 = vld [vmem:[%s4] sm:$0x1]
          %v442 = vperm.slane %v440, 0
          %v444 = vadd.f32 %v436, %v442
          %v445 = vadd.f32 %v437, %v442
          %v446 = vadd.f32 %v438, %v442
          %v447 = vadd.f32 %v439, %v442
          %v448 = vpack.c.bf16 %v444, %v444
          %v449 = vpack.c.bf16 %v445, %v445
          %v450 = vpack.c.bf16 %v446, %v446
          %v451 = vpack.c.bf16 %v447, %v447
          %vm452 = vcmask 519168
          %453 = vst.msk [vmem:[#allocation2] sm:$0xf] %vm452, %v448
          %454 = vst.msk [vmem:[#allocation2 + $0x4] sm:$0xf] %vm452, %v449
          %455 = vst.msk [vmem:[#allocation2 + $0x8] sm:$0xf] %vm452, %v450
          %456 = vst.msk [vmem:[#allocation2 + $0xc] sm:$0xf] %vm452, %v451
        $region48: #{vision_transformer.13} parent=39 // pred_fallthru
          _
        %v457 = vld [vmem:[#allocation2] sm:$0xf]
        %v458 = vld [vmem:[#allocation2 + $0x4] sm:$0xf]
        %v459 = vld [vmem:[#allocation2 + $0x8] sm:$0xf]
        %v460 = vld [vmem:[#allocation2 + $0xc] sm:$0xf]
        %v461 = vld [vmem:[%s266] sm:$0xff]
        %v462 = vld [vmem:[%s266 + $0x8] sm:$0xff]
        %v463 = vld [vmem:[%s266 + $0x10] sm:$0xff]
        %v464 = vld [vmem:[%s266 + $0x18] sm:$0xff]
        %v465 = vld [vmem:[%s266 + $0x20] sm:$0xff]
        %v466 = vld [vmem:[%s266 + $0x28] sm:$0xff]
        %v467 = vld [vmem:[%s266 + $0x30] sm:$0xff]
        %v468 = vld [vmem:[%s266 + $0x38] sm:$0xff]
        %v469 = vld [vmem:[%s266 + $0x40] sm:$0xff]
        %v470 = vld [vmem:[%s266 + $0x48] sm:$0xff]
        %v471 = vld [vmem:[%s266 + $0x50] sm:$0xff]
        %v472 = vld [vmem:[%s266 + $0x58] sm:$0xff]
        %v473 = vld [vmem:[%s266 + $0x60] sm:$0xff]
        %v474 = vld [vmem:[%s266 + $0x68] sm:$0xff]
        %v475 = vld [vmem:[%s266 + $0x70] sm:$0xff]
        %v476 = vld [vmem:[%s266 + $0x78] sm:$0xff]
        %v477 = vld [vmem:[%s319] sm:$0xf]
        %v479 = vperm.slane %v477, 0
        %v480 = vperm.slane %v477, 1
        %v481 = vperm.slane %v477, 2
        %v482 = vperm.slane %v477, 3
        %v491 = vunpack.c.l.b16 %v457
        %v492 = vunpack.c.l.b16 %v458
        %v493 = vunpack.c.l.b16 %v459
        %v494 = vunpack.c.l.b16 %v460
        %v495 = vpack.c.b16 %v492, %v491
        %v496 = vpack.c.b16 %v494, %v493
        %v513 = vunpack.c.l.b16 %v461
        %v514 = vunpack.c.h.b16 %v461
        %v515 = vunpack.c.l.b16 %v462
        %v516 = vunpack.c.h.b16 %v462
        %v517 = vunpack.c.l.b16 %v463
        %v518 = vunpack.c.h.b16 %v463
        %v519 = vunpack.c.l.b16 %v464
        %v520 = vunpack.c.h.b16 %v464
        %v521 = vunpack.c.l.b16 %v465
        %v522 = vunpack.c.h.b16 %v465
        %v523 = vunpack.c.l.b16 %v466
        %v524 = vunpack.c.h.b16 %v466
        %v525 = vunpack.c.l.b16 %v467
        %v526 = vunpack.c.h.b16 %v467
        %v527 = vunpack.c.l.b16 %v468
        %v528 = vunpack.c.h.b16 %v468
        %v529 = vunpack.c.l.b16 %v469
        %v530 = vunpack.c.h.b16 %v469
        %v531 = vunpack.c.l.b16 %v470
        %v532 = vunpack.c.h.b16 %v470
        %v533 = vunpack.c.l.b16 %v471
        %v534 = vunpack.c.h.b16 %v471
        %v535 = vunpack.c.l.b16 %v472
        %v536 = vunpack.c.h.b16 %v472
        %v537 = vunpack.c.l.b16 %v473
        %v538 = vunpack.c.h.b16 %v473
        %v539 = vunpack.c.l.b16 %v474
        %v540 = vunpack.c.h.b16 %v474
        %v541 = vunpack.c.l.b16 %v475
        %v542 = vunpack.c.h.b16 %v475
        %v543 = vunpack.c.l.b16 %v476
        %v544 = vunpack.c.h.b16 %v476
        %v545 = vpack.c.b16 %v517, %v513
        %v546 = vpack.c.b16 %v518, %v514
        %v547 = vpack.c.b16 %v519, %v515
        %v548 = vpack.c.b16 %v520, %v516
        %v549 = vpack.c.b16 %v525, %v521
        %v550 = vpack.c.b16 %v526, %v522
        %v551 = vpack.c.b16 %v527, %v523
        %v552 = vpack.c.b16 %v528, %v524
        %v553 = vpack.c.b16 %v533, %v529
        %v554 = vpack.c.b16 %v534, %v530
        %v555 = vpack.c.b16 %v535, %v531
        %v556 = vpack.c.b16 %v536, %v532
        %v557 = vpack.c.b16 %v541, %v537
        %v558 = vpack.c.b16 %v542, %v538
        %v559 = vpack.c.b16 %v543, %v539
        %v560 = vpack.c.b16 %v544, %v540
        %vm577 = vcmask 523264
        %v579 = vsel %vm577, %v495, 0
        %v582 = vsel %vm577, %v496, 0
        %584 = vmatpush.bf16.msra.mxu0 0
        %585 = vmatpush.bf16.msra.mxu0 0
        %586 = vmatpush.bf16.msra.mxu0 0
        %587 = vmatpush.bf16.msra.mxu0 0
        %588 = vmatpush.bf16.msra.mxu0 %v557
        %589 = vmatpush.bf16.msra.mxu0 %v553
        %590 = vmatpush.bf16.msra.mxu0 %v549
        %591 = vmatpush.bf16.msra.mxu0 %v545
        %592 = vmatmul.bf16.gmra.mxu0 %v579
        %v593 = vpop.f32.mrf.mxu0
        %v594 = vadd.f32 %v479, %v593
        %v595 = vpop.f32.mrf.mxu0
        %v596 = vadd.f32 %v479, %v595
        %597 = vmatmul.bf16.gmra.mxu0 %v582
        %v598 = vpop.f32.mrf.mxu0
        %v599 = vadd.f32 %v479, %v598
        %v600 = vpop.f32.mrf.mxu0
        %v601 = vadd.f32 %v479, %v600
        %602 = vdwg.mxu0
        %603 = vmatpush.bf16.msra.mxu0 0
        %604 = vmatpush.bf16.msra.mxu0 0
        %605 = vmatpush.bf16.msra.mxu0 0
        %606 = vmatpush.bf16.msra.mxu0 0
        %607 = vmatpush.bf16.msra.mxu0 %v558
        %608 = vmatpush.bf16.msra.mxu0 %v554
        %609 = vmatpush.bf16.msra.mxu0 %v550
        %610 = vmatpush.bf16.msra.mxu0 %v546
        %611 = vmatmul.bf16.gmra.mxu0 %v579
        %v612 = vpop.f32.mrf.mxu0
        %v613 = vadd.f32 %v480, %v612
        %v614 = vpop.f32.mrf.mxu0
        %v615 = vadd.f32 %v480, %v614
        %616 = vmatmul.bf16.gmra.mxu0 %v582
        %v617 = vpop.f32.mrf.mxu0
        %v618 = vadd.f32 %v480, %v617
        %v619 = vpop.f32.mrf.mxu0
        %v620 = vadd.f32 %v480, %v619
        %621 = vdwg.mxu0
        %622 = vmatpush.bf16.msra.mxu0 0
        %623 = vmatpush.bf16.msra.mxu0 0
        %624 = vmatpush.bf16.msra.mxu0 0
        %625 = vmatpush.bf16.msra.mxu0 0
        %626 = vmatpush.bf16.msra.mxu0 %v559
        %627 = vmatpush.bf16.msra.mxu0 %v555
        %628 = vmatpush.bf16.msra.mxu0 %v551
        %629 = vmatpush.bf16.msra.mxu0 %v547
        %630 = vmatmul.bf16.gmra.mxu0 %v579
        %v631 = vpop.f32.mrf.mxu0
        %v632 = vadd.f32 %v481, %v631
        %v633 = vpop.f32.mrf.mxu0
        %v634 = vadd.f32 %v481, %v633
        %635 = vmatmul.bf16.gmra.mxu0 %v582
        %v636 = vpop.f32.mrf.mxu0
        %v637 = vadd.f32 %v481, %v636
        %v638 = vpop.f32.mrf.mxu0
        %v639 = vadd.f32 %v481, %v638
        %640 = vdwg.mxu0
        %641 = vmatpush.bf16.msra.mxu0 0
        %642 = vmatpush.bf16.msra.mxu0 0
        %643 = vmatpush.bf16.msra.mxu0 0
        %644 = vmatpush.bf16.msra.mxu0 0
        %645 = vmatpush.bf16.msra.mxu0 %v560
        %646 = vmatpush.bf16.msra.mxu0 %v556
        %647 = vmatpush.bf16.msra.mxu0 %v552
        %648 = vmatpush.bf16.msra.mxu0 %v548
        %649 = vmatmul.bf16.gmra.mxu0 %v579
        %v650 = vpop.f32.mrf.mxu0
        %v651 = vadd.f32 %v482, %v650
        %v652 = vpop.f32.mrf.mxu0
        %v653 = vadd.f32 %v482, %v652
        %654 = vmatmul.bf16.gmra.mxu0 %v582
        %v655 = vpop.f32.mrf.mxu0
        %v656 = vadd.f32 %v482, %v655
        %v657 = vpop.f32.mrf.mxu0
        %v658 = vadd.f32 %v482, %v657
        %659 = vdwg.mxu0
        %v660 = vmul.f32 %v594, 0.5
        %v661 = vmul.f32 %v613, 0.5
        %v662 = vmul.f32 %v632, 0.5
        %v663 = vmul.f32 %v651, 0.5
        %v664 = vmul.f32 %v596, 0.5
        %v665 = vmul.f32 %v615, 0.5
        %v666 = vmul.f32 %v634, 0.5
        %v667 = vmul.f32 %v653, 0.5
        %v668 = vmul.f32 %v599, 0.5
        %v669 = vmul.f32 %v618, 0.5
        %v670 = vmul.f32 %v637, 0.5
        %v671 = vmul.f32 %v656, 0.5
        %v672 = vmul.f32 %v601, 0.5
        %v673 = vmul.f32 %v620, 0.5
        %v674 = vmul.f32 %v639, 0.5
        %v675 = vmul.f32 %v658, 0.5
        %v676 = vmul.f32 %v594, 0.70710677
        %v677 = vmul.f32 %v613, 0.70710677
        %v678 = vmul.f32 %v632, 0.70710677
        %v679 = vmul.f32 %v651, 0.70710677
        %v680 = vmul.f32 %v596, 0.70710677
        %v681 = vmul.f32 %v615, 0.70710677
        %v682 = vmul.f32 %v634, 0.70710677
        %v683 = vmul.f32 %v653, 0.70710677
        %v684 = vmul.f32 %v599, 0.70710677
        %v685 = vmul.f32 %v618, 0.70710677
        %v686 = vmul.f32 %v637, 0.70710677
        %v687 = vmul.f32 %v656, 0.70710677
        %v688 = vmul.f32 %v601, 0.70710677
        %v689 = vmul.f32 %v620, 0.70710677
        %v690 = vmul.f32 %v639, 0.70710677
        %v691 = vmul.f32 %v658, 0.70710677
        %vm692 = vcmp.ge.f32.partialorder %v676, 0.0
        %vm693 = vcmp.ge.f32.partialorder %v677, 0.0
        %vm694 = vcmp.ge.f32.partialorder %v678, 0.0
        %vm695 = vcmp.ge.f32.partialorder %v679, 0.0
        %vm696 = vcmp.ge.f32.partialorder %v680, 0.0
        %vm697 = vcmp.ge.f32.partialorder %v681, 0.0
        %vm698 = vcmp.ge.f32.partialorder %v682, 0.0
        %vm699 = vcmp.ge.f32.partialorder %v683, 0.0
        %vm700 = vcmp.ge.f32.partialorder %v684, 0.0
        %vm701 = vcmp.ge.f32.partialorder %v685, 0.0
        %vm702 = vcmp.ge.f32.partialorder %v686, 0.0
        %vm703 = vcmp.ge.f32.partialorder %v687, 0.0
        %vm704 = vcmp.ge.f32.partialorder %v688, 0.0
        %vm705 = vcmp.ge.f32.partialorder %v689, 0.0
        %vm706 = vcmp.ge.f32.partialorder %v690, 0.0
        %vm707 = vcmp.ge.f32.partialorder %v691, 0.0
        %v708 = vsel %vm692, 1.0, -1.0
        %v709 = vsel %vm693, 1.0, -1.0
        %v710 = vsel %vm694, 1.0, -1.0
        %v711 = vsel %vm695, 1.0, -1.0
        %v712 = vsel %vm696, 1.0, -1.0
        %v713 = vsel %vm697, 1.0, -1.0
        %v714 = vsel %vm698, 1.0, -1.0
        %v715 = vsel %vm699, 1.0, -1.0
        %v716 = vsel %vm700, 1.0, -1.0
        %v717 = vsel %vm701, 1.0, -1.0
        %v718 = vsel %vm702, 1.0, -1.0
        %v719 = vsel %vm703, 1.0, -1.0
        %v720 = vsel %vm704, 1.0, -1.0
        %v721 = vsel %vm705, 1.0, -1.0
        %v722 = vsel %vm706, 1.0, -1.0
        %v723 = vsel %vm707, 1.0, -1.0
        %v724 = vand.u32 2147483647, %v676
        %v725 = vand.u32 2147483647, %v677
        %v726 = vand.u32 2147483647, %v678
        %v727 = vand.u32 2147483647, %v679
        %v728 = vand.u32 2147483647, %v680
        %v729 = vand.u32 2147483647, %v681
        %v730 = vand.u32 2147483647, %v682
        %v731 = vand.u32 2147483647, %v683
        %v732 = vand.u32 2147483647, %v684
        %v733 = vand.u32 2147483647, %v685
        %v734 = vand.u32 2147483647, %v686
        %v735 = vand.u32 2147483647, %v687
        %v736 = vand.u32 2147483647, %v688
        %v737 = vand.u32 2147483647, %v689
        %v738 = vand.u32 2147483647, %v690
        %v739 = vand.u32 2147483647, %v691
        %v740 = vmul.f32 %v724, 0.3275911
        %v741 = vmul.f32 %v725, 0.3275911
        %v742 = vmul.f32 %v726, 0.3275911
        %v743 = vmul.f32 %v727, 0.3275911
        %v744 = vmul.f32 %v728, 0.3275911
        %v745 = vmul.f32 %v729, 0.3275911
        %v746 = vmul.f32 %v730, 0.3275911
        %v747 = vmul.f32 %v731, 0.3275911
        %v748 = vmul.f32 %v732, 0.3275911
        %v749 = vmul.f32 %v733, 0.3275911
        %v750 = vmul.f32 %v734, 0.3275911
        %v751 = vmul.f32 %v735, 0.3275911
        %v752 = vmul.f32 %v736, 0.3275911
        %v753 = vmul.f32 %v737, 0.3275911
        %v754 = vmul.f32 %v738, 0.3275911
        %v755 = vmul.f32 %v739, 0.3275911
        %v756 = vadd.f32 %v740, 1.0
        %v757 = vadd.f32 %v741, 1.0
        %v758 = vadd.f32 %v742, 1.0
        %v759 = vadd.f32 %v743, 1.0
        %v760 = vadd.f32 %v744, 1.0
        %v761 = vadd.f32 %v745, 1.0
        %v762 = vadd.f32 %v746, 1.0
        %v763 = vadd.f32 %v747, 1.0
        %v764 = vadd.f32 %v748, 1.0
        %v765 = vadd.f32 %v749, 1.0
        %v766 = vadd.f32 %v750, 1.0
        %v767 = vadd.f32 %v751, 1.0
        %v768 = vadd.f32 %v752, 1.0
        %v769 = vadd.f32 %v753, 1.0
        %v770 = vadd.f32 %v754, 1.0
        %v771 = vadd.f32 %v755, 1.0
        %v772 = vrcp.pop %v756
        %v773 = vmul.f32 %v756, %v772
        %v774 = vsub.f32 1.0, %v773
        %v775 = vmul.f32 %v772, %v774
        %v776 = vadd.f32 %v772, %v775
        %vm777 = vweird.f32 %v756
        %vm778 = vweird.f32 %v772
        %vm779 = vmor %vm777, %vm778
        %v780 = vsel %vm779, %v772, %v776
        %v781 = vand.u32 2147483647, %v756
        %vm782 = vcmp.eq.f32.partialorder %v781, 8.507059e+37
        %v783 = vand.u32 %v756, 2147483648
        %v784 = vor.u32 1.1754944e-38, %v783
        %v785 = vsel %vm782, %v784, %v780
        %v786 = vmul.f32 1.0, %v785
        %v787 = vrcp.pop %v757
        %v788 = vmul.f32 %v757, %v787
        %v789 = vsub.f32 1.0, %v788
        %v790 = vmul.f32 %v787, %v789
        %v791 = vadd.f32 %v787, %v790
        %vm792 = vweird.f32 %v757
        %vm793 = vweird.f32 %v787
        %vm794 = vmor %vm792, %vm793
        %v795 = vsel %vm794, %v787, %v791
        %v796 = vand.u32 2147483647, %v757
        %vm797 = vcmp.eq.f32.partialorder %v796, 8.507059e+37
        %v798 = vand.u32 %v757, 2147483648
        %v799 = vor.u32 1.1754944e-38, %v798
        %v800 = vsel %vm797, %v799, %v795
        %v801 = vmul.f32 1.0, %v800
        %v802 = vrcp.pop %v758
        %v803 = vmul.f32 %v758, %v802
        %v804 = vsub.f32 1.0, %v803
        %v805 = vmul.f32 %v802, %v804
        %v806 = vadd.f32 %v802, %v805
        %vm807 = vweird.f32 %v758
        %vm808 = vweird.f32 %v802
        %vm809 = vmor %vm807, %vm808
        %v810 = vsel %vm809, %v802, %v806
        %v811 = vand.u32 2147483647, %v758
        %vm812 = vcmp.eq.f32.partialorder %v811, 8.507059e+37
        %v813 = vand.u32 %v758, 2147483648
        %v814 = vor.u32 1.1754944e-38, %v813
        %v815 = vsel %vm812, %v814, %v810
        %v816 = vmul.f32 1.0, %v815
        %v817 = vrcp.pop %v759
        %v818 = vmul.f32 %v759, %v817
        %v819 = vsub.f32 1.0, %v818
        %v820 = vmul.f32 %v817, %v819
        %v821 = vadd.f32 %v817, %v820
        %vm822 = vweird.f32 %v759
        %vm823 = vweird.f32 %v817
        %vm824 = vmor %vm822, %vm823
        %v825 = vsel %vm824, %v817, %v821
        %v826 = vand.u32 2147483647, %v759
        %vm827 = vcmp.eq.f32.partialorder %v826, 8.507059e+37
        %v828 = vand.u32 %v759, 2147483648
        %v829 = vor.u32 1.1754944e-38, %v828
        %v830 = vsel %vm827, %v829, %v825
        %v831 = vmul.f32 1.0, %v830
        %v832 = vrcp.pop %v760
        %v833 = vmul.f32 %v760, %v832
        %v834 = vsub.f32 1.0, %v833
        %v835 = vmul.f32 %v832, %v834
        %v836 = vadd.f32 %v832, %v835
        %vm837 = vweird.f32 %v760
        %vm838 = vweird.f32 %v832
        %vm839 = vmor %vm837, %vm838
        %v840 = vsel %vm839, %v832, %v836
        %v841 = vand.u32 2147483647, %v760
        %vm842 = vcmp.eq.f32.partialorder %v841, 8.507059e+37
        %v843 = vand.u32 %v760, 2147483648
        %v844 = vor.u32 1.1754944e-38, %v843
        %v845 = vsel %vm842, %v844, %v840
        %v846 = vmul.f32 1.0, %v845
        %v847 = vrcp.pop %v761
        %v848 = vmul.f32 %v761, %v847
        %v849 = vsub.f32 1.0, %v848
        %v850 = vmul.f32 %v847, %v849
        %v851 = vadd.f32 %v847, %v850
        %vm852 = vweird.f32 %v761
        %vm853 = vweird.f32 %v847
        %vm854 = vmor %vm852, %vm853
        %v855 = vsel %vm854, %v847, %v851
        %v856 = vand.u32 2147483647, %v761
        %vm857 = vcmp.eq.f32.partialorder %v856, 8.507059e+37
        %v858 = vand.u32 %v761, 2147483648
        %v859 = vor.u32 1.1754944e-38, %v858
        %v860 = vsel %vm857, %v859, %v855
        %v861 = vmul.f32 1.0, %v860
        %v862 = vrcp.pop %v762
        %v863 = vmul.f32 %v762, %v862
        %v864 = vsub.f32 1.0, %v863
        %v865 = vmul.f32 %v862, %v864
        %v866 = vadd.f32 %v862, %v865
        %vm867 = vweird.f32 %v762
        %vm868 = vweird.f32 %v862
        %vm869 = vmor %vm867, %vm868
        %v870 = vsel %vm869, %v862, %v866
        %v871 = vand.u32 2147483647, %v762
        %vm872 = vcmp.eq.f32.partialorder %v871, 8.507059e+37
        %v873 = vand.u32 %v762, 2147483648
        %v874 = vor.u32 1.1754944e-38, %v873
        %v875 = vsel %vm872, %v874, %v870
        %v876 = vmul.f32 1.0, %v875
        %v877 = vrcp.pop %v763
        %v878 = vmul.f32 %v763, %v877
        %v879 = vsub.f32 1.0, %v878
        %v880 = vmul.f32 %v877, %v879
        %v881 = vadd.f32 %v877, %v880
        %vm882 = vweird.f32 %v763
        %vm883 = vweird.f32 %v877
        %vm884 = vmor %vm882, %vm883
        %v885 = vsel %vm884, %v877, %v881
        %v886 = vand.u32 2147483647, %v763
        %vm887 = vcmp.eq.f32.partialorder %v886, 8.507059e+37
        %v888 = vand.u32 %v763, 2147483648
        %v889 = vor.u32 1.1754944e-38, %v888
        %v890 = vsel %vm887, %v889, %v885
        %v891 = vmul.f32 1.0, %v890
        %v892 = vrcp.pop %v764
        %v893 = vmul.f32 %v764, %v892
        %v894 = vsub.f32 1.0, %v893
        %v895 = vmul.f32 %v892, %v894
        %v896 = vadd.f32 %v892, %v895
        %vm897 = vweird.f32 %v764
        %vm898 = vweird.f32 %v892
        %vm899 = vmor %vm897, %vm898
        %v900 = vsel %vm899, %v892, %v896
        %v901 = vand.u32 2147483647, %v764
        %vm902 = vcmp.eq.f32.partialorder %v901, 8.507059e+37
        %v903 = vand.u32 %v764, 2147483648
        %v904 = vor.u32 1.1754944e-38, %v903
        %v905 = vsel %vm902, %v904, %v900
        %v906 = vmul.f32 1.0, %v905
        %v907 = vrcp.pop %v765
        %v908 = vmul.f32 %v765, %v907
        %v909 = vsub.f32 1.0, %v908
        %v910 = vmul.f32 %v907, %v909
        %v911 = vadd.f32 %v907, %v910
        %vm912 = vweird.f32 %v765
        %vm913 = vweird.f32 %v907
        %vm914 = vmor %vm912, %vm913
        %v915 = vsel %vm914, %v907, %v911
        %v916 = vand.u32 2147483647, %v765
        %vm917 = vcmp.eq.f32.partialorder %v916, 8.507059e+37
        %v918 = vand.u32 %v765, 2147483648
        %v919 = vor.u32 1.1754944e-38, %v918
        %v920 = vsel %vm917, %v919, %v915
        %v921 = vmul.f32 1.0, %v920
        %v922 = vrcp.pop %v766
        %v923 = vmul.f32 %v766, %v922
        %v924 = vsub.f32 1.0, %v923
        %v925 = vmul.f32 %v922, %v924
        %v926 = vadd.f32 %v922, %v925
        %vm927 = vweird.f32 %v766
        %vm928 = vweird.f32 %v922
        %vm929 = vmor %vm927, %vm928
        %v930 = vsel %vm929, %v922, %v926
        %v931 = vand.u32 2147483647, %v766
        %vm932 = vcmp.eq.f32.partialorder %v931, 8.507059e+37
        %v933 = vand.u32 %v766, 2147483648
        %v934 = vor.u32 1.1754944e-38, %v933
        %v935 = vsel %vm932, %v934, %v930
        %v936 = vmul.f32 1.0, %v935
        %v937 = vrcp.pop %v767
        %v938 = vmul.f32 %v767, %v937
        %v939 = vsub.f32 1.0, %v938
        %v940 = vmul.f32 %v937, %v939
        %v941 = vadd.f32 %v937, %v940
        %vm942 = vweird.f32 %v767
        %vm943 = vweird.f32 %v937
        %vm944 = vmor %vm942, %vm943
        %v945 = vsel %vm944, %v937, %v941
        %v946 = vand.u32 2147483647, %v767
        %vm947 = vcmp.eq.f32.partialorder %v946, 8.507059e+37
        %v948 = vand.u32 %v767, 2147483648
        %v949 = vor.u32 1.1754944e-38, %v948
        %v950 = vsel %vm947, %v949, %v945
        %v951 = vmul.f32 1.0, %v950
        %v952 = vrcp.pop %v768
        %v953 = vmul.f32 %v768, %v952
        %v954 = vsub.f32 1.0, %v953
        %v955 = vmul.f32 %v952, %v954
        %v956 = vadd.f32 %v952, %v955
        %vm957 = vweird.f32 %v768
        %vm958 = vweird.f32 %v952
        %vm959 = vmor %vm957, %vm958
        %v960 = vsel %vm959, %v952, %v956
        %v961 = vand.u32 2147483647, %v768
        %vm962 = vcmp.eq.f32.partialorder %v961, 8.507059e+37
        %v963 = vand.u32 %v768, 2147483648
        %v964 = vor.u32 1.1754944e-38, %v963
        %v965 = vsel %vm962, %v964, %v960
        %v966 = vmul.f32 1.0, %v965
        %v967 = vrcp.pop %v769
        %v968 = vmul.f32 %v769, %v967
        %v969 = vsub.f32 1.0, %v968
        %v970 = vmul.f32 %v967, %v969
        %v971 = vadd.f32 %v967, %v970
        %vm972 = vweird.f32 %v769
        %vm973 = vweird.f32 %v967
        %vm974 = vmor %vm972, %vm973
        %v975 = vsel %vm974, %v967, %v971
        %v976 = vand.u32 2147483647, %v769
        %vm977 = vcmp.eq.f32.partialorder %v976, 8.507059e+37
        %v978 = vand.u32 %v769, 2147483648
        %v979 = vor.u32 1.1754944e-38, %v978
        %v980 = vsel %vm977, %v979, %v975
        %v981 = vmul.f32 1.0, %v980
        %v982 = vrcp.pop %v770
        %v983 = vmul.f32 %v770, %v982
        %v984 = vsub.f32 1.0, %v983
        %v985 = vmul.f32 %v982, %v984
        %v986 = vadd.f32 %v982, %v985
        %vm987 = vweird.f32 %v770
        %vm988 = vweird.f32 %v982
        %vm989 = vmor %vm987, %vm988
        %v990 = vsel %vm989, %v982, %v986
        %v991 = vand.u32 2147483647, %v770
        %vm992 = vcmp.eq.f32.partialorder %v991, 8.507059e+37
        %v993 = vand.u32 %v770, 2147483648
        %v994 = vor.u32 1.1754944e-38, %v993
        %v995 = vsel %vm992, %v994, %v990
        %v996 = vmul.f32 1.0, %v995
        %v997 = vrcp.pop %v771
        %v998 = vmul.f32 %v771, %v997
        %v999 = vsub.f32 1.0, %v998
        %v1000 = vmul.f32 %v997, %v999
        %v1001 = vadd.f32 %v997, %v1000
        %vm1002 = vweird.f32 %v771
        %vm1003 = vweird.f32 %v997
        %vm1004 = vmor %vm1002, %vm1003
        %v1005 = vsel %vm1004, %v997, %v1001
        %v1006 = vand.u32 2147483647, %v771
        %vm1007 = vcmp.eq.f32.partialorder %v1006, 8.507059e+37
        %v1008 = vand.u32 %v771, 2147483648
        %v1009 = vor.u32 1.1754944e-38, %v1008
        %v1010 = vsel %vm1007, %v1009, %v1005
        %v1011 = vmul.f32 1.0, %v1010
        %v1012 = vmul.f32 %v786, 1.0614054
        %v1013 = vmul.f32 %v801, 1.0614054
        %v1014 = vmul.f32 %v816, 1.0614054
        %v1015 = vmul.f32 %v831, 1.0614054
        %v1016 = vmul.f32 %v846, 1.0614054
        %v1017 = vmul.f32 %v861, 1.0614054
        %v1018 = vmul.f32 %v876, 1.0614054
        %v1019 = vmul.f32 %v891, 1.0614054
        %v1020 = vmul.f32 %v906, 1.0614054
        %v1021 = vmul.f32 %v921, 1.0614054
        %v1022 = vmul.f32 %v936, 1.0614054
        %v1023 = vmul.f32 %v951, 1.0614054
        %v1024 = vmul.f32 %v966, 1.0614054
        %v1025 = vmul.f32 %v981, 1.0614054
        %v1026 = vmul.f32 %v996, 1.0614054
        %v1027 = vmul.f32 %v1011, 1.0614054
        %v1028 = vadd.f32 %v1012, -1.4531521
        %v1029 = vadd.f32 %v1013, -1.4531521
        %v1030 = vadd.f32 %v1014, -1.4531521
        %v1031 = vadd.f32 %v1015, -1.4531521
        %v1032 = vadd.f32 %v1016, -1.4531521
        %v1033 = vadd.f32 %v1017, -1.4531521
        %v1034 = vadd.f32 %v1018, -1.4531521
        %v1035 = vadd.f32 %v1019, -1.4531521
        %v1036 = vadd.f32 %v1020, -1.4531521
        %v1037 = vadd.f32 %v1021, -1.4531521
        %v1038 = vadd.f32 %v1022, -1.4531521
        %v1039 = vadd.f32 %v1023, -1.4531521
        %v1040 = vadd.f32 %v1024, -1.4531521
        %v1041 = vadd.f32 %v1025, -1.4531521
        %v1042 = vadd.f32 %v1026, -1.4531521
        %v1043 = vadd.f32 %v1027, -1.4531521
        %v1044 = vmul.f32 %v1028, %v786
        %v1045 = vmul.f32 %v1029, %v801
        %v1046 = vmul.f32 %v1030, %v816
        %v1047 = vmul.f32 %v1031, %v831
        %v1048 = vmul.f32 %v1032, %v846
        %v1049 = vmul.f32 %v1033, %v861
        %v1050 = vmul.f32 %v1034, %v876
        %v1051 = vmul.f32 %v1035, %v891
        %v1052 = vmul.f32 %v1036, %v906
        %v1053 = vmul.f32 %v1037, %v921
        %v1054 = vmul.f32 %v1038, %v936
        %v1055 = vmul.f32 %v1039, %v951
        %v1056 = vmul.f32 %v1040, %v966
        %v1057 = vmul.f32 %v1041, %v981
        %v1058 = vmul.f32 %v1042, %v996
        %v1059 = vmul.f32 %v1043, %v1011
        %v1060 = vadd.f32 %v1044, 1.4214138
        %v1061 = vadd.f32 %v1045, 1.4214138
        %v1062 = vadd.f32 %v1046, 1.4214138
        %v1063 = vadd.f32 %v1047, 1.4214138
        %v1064 = vadd.f32 %v1048, 1.4214138
        %v1065 = vadd.f32 %v1049, 1.4214138
        %v1066 = vadd.f32 %v1050, 1.4214138
        %v1067 = vadd.f32 %v1051, 1.4214138
        %v1068 = vadd.f32 %v1052, 1.4214138
        %v1069 = vadd.f32 %v1053, 1.4214138
        %v1070 = vadd.f32 %v1054, 1.4214138
        %v1071 = vadd.f32 %v1055, 1.4214138
        %v1072 = vadd.f32 %v1056, 1.4214138
        %v1073 = vadd.f32 %v1057, 1.4214138
        %v1074 = vadd.f32 %v1058, 1.4214138
        %v1075 = vadd.f32 %v1059, 1.4214138
        %v1076 = vmul.f32 %v1060, %v786
        %v1077 = vmul.f32 %v1061, %v801
        %v1078 = vmul.f32 %v1062, %v816
        %v1079 = vmul.f32 %v1063, %v831
        %v1080 = vmul.f32 %v1064, %v846
        %v1081 = vmul.f32 %v1065, %v861
        %v1082 = vmul.f32 %v1066, %v876
        %v1083 = vmul.f32 %v1067, %v891
        %v1084 = vmul.f32 %v1068, %v906
        %v1085 = vmul.f32 %v1069, %v921
        %v1086 = vmul.f32 %v1070, %v936
        %v1087 = vmul.f32 %v1071, %v951
        %v1088 = vmul.f32 %v1072, %v966
        %v1089 = vmul.f32 %v1073, %v981
        %v1090 = vmul.f32 %v1074, %v996
        %v1091 = vmul.f32 %v1075, %v1011
        %v1092 = vadd.f32 %v1076, -0.28449672
        %v1093 = vadd.f32 %v1077, -0.28449672
        %v1094 = vadd.f32 %v1078, -0.28449672
        %v1095 = vadd.f32 %v1079, -0.28449672
        %v1096 = vadd.f32 %v1080, -0.28449672
        %v1097 = vadd.f32 %v1081, -0.28449672
        %v1098 = vadd.f32 %v1082, -0.28449672
        %v1099 = vadd.f32 %v1083, -0.28449672
        %v1100 = vadd.f32 %v1084, -0.28449672
        %v1101 = vadd.f32 %v1085, -0.28449672
        %v1102 = vadd.f32 %v1086, -0.28449672
        %v1103 = vadd.f32 %v1087, -0.28449672
        %v1104 = vadd.f32 %v1088, -0.28449672
        %v1105 = vadd.f32 %v1089, -0.28449672
        %v1106 = vadd.f32 %v1090, -0.28449672
        %v1107 = vadd.f32 %v1091, -0.28449672
        %v1108 = vmul.f32 %v1092, %v786
        %v1109 = vmul.f32 %v1093, %v801
        %v1110 = vmul.f32 %v1094, %v816
        %v1111 = vmul.f32 %v1095, %v831
        %v1112 = vmul.f32 %v1096, %v846
        %v1113 = vmul.f32 %v1097, %v861
        %v1114 = vmul.f32 %v1098, %v876
        %v1115 = vmul.f32 %v1099, %v891
        %v1116 = vmul.f32 %v1100, %v906
        %v1117 = vmul.f32 %v1101, %v921
        %v1118 = vmul.f32 %v1102, %v936
        %v1119 = vmul.f32 %v1103, %v951
        %v1120 = vmul.f32 %v1104, %v966
        %v1121 = vmul.f32 %v1105, %v981
        %v1122 = vmul.f32 %v1106, %v996
        %v1123 = vmul.f32 %v1107, %v1011
        %v1124 = vadd.f32 %v1108, 0.2548296
        %v1125 = vadd.f32 %v1109, 0.2548296
        %v1126 = vadd.f32 %v1110, 0.2548296
        %v1127 = vadd.f32 %v1111, 0.2548296
        %v1128 = vadd.f32 %v1112, 0.2548296
        %v1129 = vadd.f32 %v1113, 0.2548296
        %v1130 = vadd.f32 %v1114, 0.2548296
        %v1131 = vadd.f32 %v1115, 0.2548296
        %v1132 = vadd.f32 %v1116, 0.2548296
        %v1133 = vadd.f32 %v1117, 0.2548296
        %v1134 = vadd.f32 %v1118, 0.2548296
        %v1135 = vadd.f32 %v1119, 0.2548296
        %v1136 = vadd.f32 %v1120, 0.2548296
        %v1137 = vadd.f32 %v1121, 0.2548296
        %v1138 = vadd.f32 %v1122, 0.2548296
        %v1139 = vadd.f32 %v1123, 0.2548296
        %v1140 = vmul.f32 %v1124, %v786
        %v1141 = vmul.f32 %v1125, %v801
        %v1142 = vmul.f32 %v1126, %v816
        %v1143 = vmul.f32 %v1127, %v831
        %v1144 = vmul.f32 %v1128, %v846
        %v1145 = vmul.f32 %v1129, %v861
        %v1146 = vmul.f32 %v1130, %v876
        %v1147 = vmul.f32 %v1131, %v891
        %v1148 = vmul.f32 %v1132, %v906
        %v1149 = vmul.f32 %v1133, %v921
        %v1150 = vmul.f32 %v1134, %v936
        %v1151 = vmul.f32 %v1135, %v951
        %v1152 = vmul.f32 %v1136, %v966
        %v1153 = vmul.f32 %v1137, %v981
        %v1154 = vmul.f32 %v1138, %v996
        %v1155 = vmul.f32 %v1139, %v1011
        %v1156 = vsub.f32 0.0, %v724
        %v1157 = vsub.f32 0.0, %v725
        %v1158 = vsub.f32 0.0, %v726
        %v1159 = vsub.f32 0.0, %v727
        %v1160 = vsub.f32 0.0, %v728
        %v1161 = vsub.f32 0.0, %v729
        %v1162 = vsub.f32 0.0, %v730
        %v1163 = vsub.f32 0.0, %v731
        %v1164 = vsub.f32 0.0, %v732
        %v1165 = vsub.f32 0.0, %v733
        %v1166 = vsub.f32 0.0, %v734
        %v1167 = vsub.f32 0.0, %v735
        %v1168 = vsub.f32 0.0, %v736
        %v1169 = vsub.f32 0.0, %v737
        %v1170 = vsub.f32 0.0, %v738
        %v1171 = vsub.f32 0.0, %v739
        %v1172 = vmul.f32 %v1156, %v724
        %v1173 = vmul.f32 %v1157, %v725
        %v1174 = vmul.f32 %v1158, %v726
        %v1175 = vmul.f32 %v1159, %v727
        %v1176 = vmul.f32 %v1160, %v728
        %v1177 = vmul.f32 %v1161, %v729
        %v1178 = vmul.f32 %v1162, %v730
        %v1179 = vmul.f32 %v1163, %v731
        %v1180 = vmul.f32 %v1164, %v732
        %v1181 = vmul.f32 %v1165, %v733
        %v1182 = vmul.f32 %v1166, %v734
        %v1183 = vmul.f32 %v1167, %v735
        %v1184 = vmul.f32 %v1168, %v736
        %v1185 = vmul.f32 %v1169, %v737
        %v1186 = vmul.f32 %v1170, %v738
        %v1187 = vmul.f32 %v1171, %v739
        %v1188 = vmul.f32 %v1172, 1.442695
        %v1189 = vpow.pop %v1188
        %v1190 = vmul.f32 %v1173, 1.442695
        %v1191 = vpow.pop %v1190
        %v1192 = vmul.f32 %v1174, 1.442695
        %v1193 = vpow.pop %v1192
        %v1194 = vmul.f32 %v1175, 1.442695
        %v1195 = vpow.pop %v1194
        %v1196 = vmul.f32 %v1176, 1.442695
        %v1197 = vpow.pop %v1196
        %v1198 = vmul.f32 %v1177, 1.442695
        %v1199 = vpow.pop %v1198
        %v1200 = vmul.f32 %v1178, 1.442695
        %v1201 = vpow.pop %v1200
        %v1202 = vmul.f32 %v1179, 1.442695
        %v1203 = vpow.pop %v1202
        %v1204 = vmul.f32 %v1180, 1.442695
        %v1205 = vpow.pop %v1204
        %v1206 = vmul.f32 %v1181, 1.442695
        %v1207 = vpow.pop %v1206
        %v1208 = vmul.f32 %v1182, 1.442695
        %v1209 = vpow.pop %v1208
        %v1210 = vmul.f32 %v1183, 1.442695
        %v1211 = vpow.pop %v1210
        %v1212 = vmul.f32 %v1184, 1.442695
        %v1213 = vpow.pop %v1212
        %v1214 = vmul.f32 %v1185, 1.442695
        %v1215 = vpow.pop %v1214
        %v1216 = vmul.f32 %v1186, 1.442695
        %v1217 = vpow.pop %v1216
        %v1218 = vmul.f32 %v1187, 1.442695
        %v1219 = vpow.pop %v1218
        %v1220 = vmul.f32 %v1140, %v1189
        %v1221 = vmul.f32 %v1141, %v1191
        %v1222 = vmul.f32 %v1142, %v1193
        %v1223 = vmul.f32 %v1143, %v1195
        %v1224 = vmul.f32 %v1144, %v1197
        %v1225 = vmul.f32 %v1145, %v1199
        %v1226 = vmul.f32 %v1146, %v1201
        %v1227 = vmul.f32 %v1147, %v1203
        %v1228 = vmul.f32 %v1148, %v1205
        %v1229 = vmul.f32 %v1149, %v1207
        %v1230 = vmul.f32 %v1150, %v1209
        %v1231 = vmul.f32 %v1151, %v1211
        %v1232 = vmul.f32 %v1152, %v1213
        %v1233 = vmul.f32 %v1153, %v1215
        %v1234 = vmul.f32 %v1154, %v1217
        %v1235 = vmul.f32 %v1155, %v1219
        %v1236 = vsub.f32 1.0, %v1220
        %v1237 = vsub.f32 1.0, %v1221
        %v1238 = vsub.f32 1.0, %v1222
        %v1239 = vsub.f32 1.0, %v1223
        %v1240 = vsub.f32 1.0, %v1224
        %v1241 = vsub.f32 1.0, %v1225
        %v1242 = vsub.f32 1.0, %v1226
        %v1243 = vsub.f32 1.0, %v1227
        %v1244 = vsub.f32 1.0, %v1228
        %v1245 = vsub.f32 1.0, %v1229
        %v1246 = vsub.f32 1.0, %v1230
        %v1247 = vsub.f32 1.0, %v1231
        %v1248 = vsub.f32 1.0, %v1232
        %v1249 = vsub.f32 1.0, %v1233
        %v1250 = vsub.f32 1.0, %v1234
        %v1251 = vsub.f32 1.0, %v1235
        %v1252 = vmul.f32 %v708, %v1236
        %v1253 = vmul.f32 %v709, %v1237
        %v1254 = vmul.f32 %v710, %v1238
        %v1255 = vmul.f32 %v711, %v1239
        %v1256 = vmul.f32 %v712, %v1240
        %v1257 = vmul.f32 %v713, %v1241
        %v1258 = vmul.f32 %v714, %v1242
        %v1259 = vmul.f32 %v715, %v1243
        %v1260 = vmul.f32 %v716, %v1244
        %v1261 = vmul.f32 %v717, %v1245
        %v1262 = vmul.f32 %v718, %v1246
        %v1263 = vmul.f32 %v719, %v1247
        %v1264 = vmul.f32 %v720, %v1248
        %v1265 = vmul.f32 %v721, %v1249
        %v1266 = vmul.f32 %v722, %v1250
        %v1267 = vmul.f32 %v723, %v1251
        %v1268 = vadd.f32 %v1252, 1.0
        %v1269 = vadd.f32 %v1253, 1.0
        %v1270 = vadd.f32 %v1254, 1.0
        %v1271 = vadd.f32 %v1255, 1.0
        %v1272 = vadd.f32 %v1256, 1.0
        %v1273 = vadd.f32 %v1257, 1.0
        %v1274 = vadd.f32 %v1258, 1.0
        %v1275 = vadd.f32 %v1259, 1.0
        %v1276 = vadd.f32 %v1260, 1.0
        %v1277 = vadd.f32 %v1261, 1.0
        %v1278 = vadd.f32 %v1262, 1.0
        %v1279 = vadd.f32 %v1263, 1.0
        %v1280 = vadd.f32 %v1264, 1.0
        %v1281 = vadd.f32 %v1265, 1.0
        %v1282 = vadd.f32 %v1266, 1.0
        %v1283 = vadd.f32 %v1267, 1.0
        %v1284 = vmul.f32 %v660, %v1268
        %v1285 = vmul.f32 %v661, %v1269
        %v1286 = vmul.f32 %v662, %v1270
        %v1287 = vmul.f32 %v663, %v1271
        %v1288 = vmul.f32 %v664, %v1272
        %v1289 = vmul.f32 %v665, %v1273
        %v1290 = vmul.f32 %v666, %v1274
        %v1291 = vmul.f32 %v667, %v1275
        %v1292 = vmul.f32 %v668, %v1276
        %v1293 = vmul.f32 %v669, %v1277
        %v1294 = vmul.f32 %v670, %v1278
        %v1295 = vmul.f32 %v671, %v1279
        %v1296 = vmul.f32 %v672, %v1280
        %v1297 = vmul.f32 %v673, %v1281
        %v1298 = vmul.f32 %v674, %v1282
        %v1299 = vmul.f32 %v675, %v1283
        %v1300 = vpack.c.bf16 %v1285, %v1284
        %v1301 = vpack.c.bf16 %v1287, %v1286
        %v1302 = vpack.c.bf16 %v1289, %v1288
        %v1303 = vpack.c.bf16 %v1291, %v1290
        %v1304 = vpack.c.bf16 %v1293, %v1292
        %v1305 = vpack.c.bf16 %v1295, %v1294
        %v1306 = vpack.c.bf16 %v1297, %v1296
        %v1307 = vpack.c.bf16 %v1299, %v1298
        %1308 = vst [vmem:[%s304] sm:$0xff] %v1300
        %1309 = vst [vmem:[%s304 + $0x8] sm:$0xff] %v1301
        %1310 = vst [vmem:[%s304 + $0x10] sm:$0xff] %v1302
        %1311 = vst [vmem:[%s304 + $0x18] sm:$0xff] %v1303
        %1312 = vst [vmem:[%s304 + $0x20] sm:$0xff] %v1304
        %1313 = vst [vmem:[%s304 + $0x28] sm:$0xff] %v1305
        %1314 = vst [vmem:[%s304 + $0x30] sm:$0xff] %v1306
        %1315 = vst [vmem:[%s304 + $0x38] sm:$0xff] %v1307
        %s1316 = sand.u32 %s172, 1
        %s1317 = sand.u32 %s172, 1
        %s1318 = smul.addr %s1317, 64
        %s1319 = scalar_lea.vmem [#allocation5], %s1318
        // Predicated region
        $region49: #{vision_transformer.13} parent=39 // pred_check
          %p1320 = pneg %p182
        $region50: #{vision_transformer.13} parent=39 // pred_check_branch
          %1322 = sbr.rel (%p1320) target = $region52
        $region51: #{vision_transformer.13} parent=39 // pred_region
          %s1323 = smul.u32 4, %s24
          %s1324 = smul.u32 4, %s25
          %s1325 = smul.addr %s1323, 16
          %s1326 = sadd.s32 %s1324, %s1325
          %s1327 = smul.addr %s1326, 4
          %s1328 = scalar_lea.vmem %s5, %s1327
          // Predicated region
          $region53: #{vision_transformer.13} parent=51 // pred_check
            _
          $region54: #{vision_transformer.13} parent=51 // pred_check_branch
            %1330 = sbr.rel (0) target = $region56
          $region55: #{vision_transformer.13} parent=51 // pred_region
            // Predicated region
            $region57: #{vision_transformer.13} parent=55 // pred_check
              _
            $region58: #{vision_transformer.13} parent=55 // pred_check_branch
              %1332 = sbr.rel (0) target = $region60
            $region59: #{vision_transformer.13} parent=55 // pred_region
              loop: start=0, step=1, limit=1
              $region61: #{vision_transformer.13} parent=59 // loop_pre_header
                _
              $region62: #{vision_transformer.13} parent=59 // loop_header
                %s1334 = sphi 0, %s1338
                %p1335 = scmp.ge.s32.totalorder %s1334, 1
                %s1339 = sphi %s1319, %s1319
                %s1340 = sphi %s1328, %s1328
              $region63: #{vision_transformer.13} parent=59 // loop_header_branch
                %1337 = sbr.rel (%p1335) target = $region67
              $region64: #{vision_transformer.13} parent=59 // loop_body
                %v1341 = vld [vmem:[%s1339] sm:$0xff]
                %1342 = vst [vmem:[%s1340] sm:$0xff] %v1341
                %v1343 = vld [vmem:[%s1339 + $0x8] sm:$0xff]
                %1344 = vst [vmem:[%s1340 + $0x8] sm:$0xff] %v1343
                %v1345 = vld [vmem:[%s1339 + $0x10] sm:$0xff]
                %1346 = vst [vmem:[%s1340 + $0x40] sm:$0xff] %v1345
                %v1347 = vld [vmem:[%s1339 + $0x18] sm:$0xff]
                %1348 = vst [vmem:[%s1340 + $0x48] sm:$0xff] %v1347
                %v1349 = vld [vmem:[%s1339 + $0x20] sm:$0xff]
                %1350 = vst [vmem:[%s1340 + $0x80] sm:$0xff] %v1349
                %v1351 = vld [vmem:[%s1339 + $0x28] sm:$0xff]
                %1352 = vst [vmem:[%s1340 + $0x88] sm:$0xff] %v1351
                %v1353 = vld [vmem:[%s1339 + $0x30] sm:$0xff]
                %1354 = vst [vmem:[%s1340 + $0xc0] sm:$0xff] %v1353
                %v1355 = vld [vmem:[%s1339 + $0x38] sm:$0xff]
                %1356 = vst [vmem:[%s1340 + $0xc8] sm:$0xff] %v1355
              $region65: #{vision_transformer.13} parent=59 // loop_footer
                %s1338 = sadd.s32 1, %s1334
              $region66: #{vision_transformer.13} parent=59 // loop_footer_branch
                %1333 = sbr.rel target = $region62
              $region67: #{vision_transformer.13} parent=59 // loop_exit
                _
            $region60: #{vision_transformer.13} parent=55 // pred_fallthru
              _
            // Predicated region
            $region68: #{vision_transformer.13} parent=55 // pred_check
              _
            $region69: #{vision_transformer.13} parent=55 // pred_check_branch
              %1358 = sbr.rel target = $region71
            $region70: #{vision_transformer.13} parent=55 // pred_region
              _
            $region71: #{vision_transformer.13} parent=55 // pred_fallthru
              _
          $region56: #{vision_transformer.13} parent=51 // pred_fallthru
            _
          %1359 = vnop
        $region52: #{vision_transformer.13} parent=39 // pred_fallthru
          _
      $region40: #{vision_transformer.13} parent=5 // pred_fallthru
        _
      %p1360 = scmp.le.s32.totalorder 2, %s14
      // Predicated region
      $region72: #{vision_transformer.13} parent=5 // pred_check
        %p1361 = pneg %p1360
      $region73: #{vision_transformer.13} parent=5 // pred_check_branch
        %1363 = sbr.rel (%p1361) target = $region75
      $region74: #{vision_transformer.13} parent=5 // pred_region
        %s1364 = ssub.s32 %s14, 2
        // Predicated region
        $region76: #{vision_transformer.13} parent=74 // pred_check
          %p1365 = pneg %p188
        $region77: #{vision_transformer.13} parent=74 // pred_check_branch
          %1367 = sbr.rel (%p1365) target = $region79
        $region78: #{vision_transformer.13} parent=74 // pred_region
          %s1368 = sand.u32 %s173, 1
          %s1369 = sand.u32 %s173, 1
          %s1370 = smul.addr %s1369, 64
          %s1371 = scalar_lea.vmem [#allocation5], %s1370
        $region79: #{vision_transformer.13} parent=74 // pred_fallthru
          _
      $region75: #{vision_transformer.13} parent=5 // pred_fallthru
        _
    $region6: #{vision_transformer.13} parent=1 // loop_footer
      %s18 = sadd.s32 1, %s14
    $region7: #{vision_transformer.13} parent=1 // loop_footer_branch
      %13 = sbr.rel target = $region3
    $region8: #{vision_transformer.13} parent=1 // loop_exit
      _
    %1372 = vsyncpa [#allocation4], 1
    %s1373 = scalar_lea.sflag [#allocation4], 1
    %1374 = vsyncpa %s1373, 1

// kernel: vision_transformer.14
$region0: #{vision_transformer.14}
  #allocation0 [shape = 'u32[]', space=smem, size = 0x4, offset = 0x4, fixed_abs, tag = 'smem constant byte address 0x4 - core index']
  #allocation1 [shape = 'u32[72,128]{1,0:T(1,128)}', space=vmem, size = 0x9000, scoped, tag = 'internal scratch']
  #allocation2 [shape = 'f32[32,64]{1,0:T(8,128)}', space=vmem, size = 0x4000, scoped, tag = 'scratch operand']
  %s0 = inlined_call_operand.vmem [shape: bf16[32,2048], index: 0, kind: input, shape index: {}]
  %s1 = inlined_call_operand.vmem [shape: bf16[2048,64], index: 1, kind: input, shape index: {}]
  %s2 = inlined_call_operand.vmem [shape: f32[1,64], index: 2, kind: input, shape index: {}]
  %s3 = inlined_call_operand.vmem [shape: bf16[32,64], index: 3, kind: input, shape index: {}]
  %s4 = inlined_call_operand.vmem [shape: bf16[32,64], index: 4, kind: output, shape index: {}]
  %s5 = sld [smem:[#allocation0]]
  $region80: #{vision_transformer.14} parent=0
    _
  %s7 = ssub.s32 1, %s5
  %s8 = scalar_select 0, %s7, %s5
  $region1: #{vision_transformer.14} parent=0
    #allocation3 [shape = 'u8[65536]{0}', space=vmem, size = 0x10000, scoped, tag = 'input window, operand 0']
    loop: start=0, step=1, limit=6
    $region2: #{vision_transformer.14} parent=1 // loop_pre_header
      _
    $region3: #{vision_transformer.14} parent=1 // loop_header
      %s10 = sphi 0, %s14
      %p11 = scmp.ge.s32.totalorder %s10, 6
      %s17 = sphi 0, %s36
      %s18 = sphi 0, %s32
      %s19 = sphi 0, %s28
      %s20 = sphi 0, %s17
      %s21 = sphi 0, %s18
      %s22 = sphi 0, %s19
      %s23 = sphi 0, %s20
      %s24 = sphi 0, %s21
      %s25 = sphi 0, %s22
      %s41 = sphi 0, %s43
      %s44 = sphi 0, %s41
      %s45 = sphi 0, %s44
      %s61 = sphi 0, %s45
      %s69 = sphi 0, %s71
      %s72 = sphi 0, %s69
      %s73 = sphi 0, %s72
      %s89 = sphi 0, %s73
      %s95 = sphi 0, %s97
      %s98 = sphi 0, %s95
      %s99 = sphi 0, %s98
      %s115 = sphi 0, %s99
      %s123 = sphi 0, %s125
      %s126 = sphi 0, %s123
      %s127 = sphi 0, %s126
      %s143 = sphi 0, %s127
      %s151 = sphi 0, %s153
      %s154 = sphi 0, %s151
      %s155 = sphi 0, %s154
      %s171 = sphi 0, %s155
    $region4: #{vision_transformer.14} parent=1 // loop_header_branch
      %13 = sbr.rel (%p11) target = $region8
    $region5: #{vision_transformer.14} parent=1 // loop_body
      %s15 = ssub.s32 %s10, 1
      %s16 = ssub.s32 %s10, 2
      %s26 = sadd.s32 1, %s19
      %p27 = scmp.ge.s32.totalorder %s26, 4
      %s28 = scalar_select %p27, 0, %s26
      %s29 = sadd.s32 1, %s18
      %s30 = scalar_select %p27, %s29, %s18
      %p31 = scmp.ge.s32.totalorder %s30, 1
      %s32 = scalar_select %p31, 0, %s30
      %s33 = sadd.s32 1, %s17
      %s34 = scalar_select %p31, %s33, %s17
      %p35 = scmp.ge.s32.totalorder %s34, 1
      %s36 = scalar_select %p35, 0, %s34
      %s37 = ssub.s32 %s17, %s36
      %s38 = ssub.s32 %s19, %s28
      %s39 = sor.u32 %s37, %s38
      %p40 = scmp.eq.s32.totalorder %s39, 0
      %s42 = sadd.s32 %s41, 1
      %s43 = scalar_select %p40, %s41, %s42
      %p46 = pneg %p40
      %p47 = scmp.eq.s32.totalorder %s10, 3
      %p48 = por %p46, %p47
      %p49 = scmp.ne.s32.totalorder %s41, %s44
      %p50 = scmp.eq.s32.totalorder %s10, 0
      %p51 = por %p49, %p50
      %p52 = scmp.ne.s32.totalorder %s41, %s44
      %p53 = scmp.eq.s32.totalorder %s15, 3
      %p54 = por %p52, %p53
      %p55 = scmp.ne.s32.totalorder %s44, %s45
      %p56 = scmp.eq.s32.totalorder %s15, 0
      %p57 = por %p55, %p56
      %p58 = scmp.ne.s32.totalorder %s44, %s45
      %p59 = scmp.eq.s32.totalorder %s16, 3
      %p60 = por %p58, %p59
      %p62 = scmp.ne.s32.totalorder %s45, %s61
      %p63 = scmp.eq.s32.totalorder %s16, 0
      %p64 = por %p62, %p63
      %s65 = ssub.s32 %s19, %s28
      %s66 = ssub.s32 %s18, %s32
      %s67 = sor.u32 %s65, %s66
      %p68 = scmp.eq.s32.totalorder %s67, 0
      %s70 = sadd.s32 %s69, 1
      %s71 = scalar_select %p68, %s69, %s70
      %p74 = pneg %p68
      %p75 = scmp.eq.s32.totalorder %s10, 3
      %p76 = por %p74, %p75
      %p77 = scmp.ne.s32.totalorder %s69, %s72
      %p78 = scmp.eq.s32.totalorder %s10, 0
      %p79 = por %p77, %p78
      %p80 = scmp.ne.s32.totalorder %s69, %s72
      %p81 = scmp.eq.s32.totalorder %s15, 3
      %p82 = por %p80, %p81
      %p83 = scmp.ne.s32.totalorder %s72, %s73
      %p84 = scmp.eq.s32.totalorder %s15, 0
      %p85 = por %p83, %p84
      %p86 = scmp.ne.s32.totalorder %s72, %s73
      %p87 = scmp.eq.s32.totalorder %s16, 3
      %p88 = por %p86, %p87
      %p90 = scmp.ne.s32.totalorder %s73, %s89
      %p91 = scmp.eq.s32.totalorder %s16, 0
      %p92 = por %p90, %p91
      %s93 = ssub.s32 %s18, %s32
      %p94 = scmp.eq.s32.totalorder %s93, 0
      %s96 = sadd.s32 %s95, 1
      %s97 = scalar_select %p94, %s95, %s96
      %p100 = pneg %p94
      %p101 = scmp.eq.s32.totalorder %s10, 3
      %p102 = por %p100, %p101
      %p103 = scmp.ne.s32.totalorder %s95, %s98
      %p104 = scmp.eq.s32.totalorder %s10, 0
      %p105 = por %p103, %p104
      %p106 = scmp.ne.s32.totalorder %s95, %s98
      %p107 = scmp.eq.s32.totalorder %s15, 3
      %p108 = por %p106, %p107
      %p109 = scmp.ne.s32.totalorder %s98, %s99
      %p110 = scmp.eq.s32.totalorder %s15, 0
      %p111 = por %p109, %p110
      %p112 = scmp.ne.s32.totalorder %s98, %s99
      %p113 = scmp.eq.s32.totalorder %s16, 3
      %p114 = por %p112, %p113
      %p116 = scmp.ne.s32.totalorder %s99, %s115
      %p117 = scmp.eq.s32.totalorder %s16, 0
      %p118 = por %p116, %p117
      %s119 = ssub.s32 %s17, %s36
      %s120 = ssub.s32 %s18, %s32
      %s121 = sor.u32 %s119, %s120
      %p122 = scmp.eq.s32.totalorder %s121, 0
      %s124 = sadd.s32 %s123, 1
      %s125 = scalar_select %p122, %s123, %s124
      %p128 = pneg %p122
      %p129 = scmp.eq.s32.totalorder %s10, 3
      %p130 = por %p128, %p129
      %p131 = scmp.ne.s32.totalorder %s123, %s126
      %p132 = scmp.eq.s32.totalorder %s10, 0
      %p133 = por %p131, %p132
      %p134 = scmp.ne.s32.totalorder %s123, %s126
      %p135 = scmp.eq.s32.totalorder %s15, 3
      %p136 = por %p134, %p135
      %p137 = scmp.ne.s32.totalorder %s126, %s127
      %p138 = scmp.eq.s32.totalorder %s15, 0
      %p139 = por %p137, %p138
      %p140 = scmp.ne.s32.totalorder %s126, %s127
      %p141 = scmp.eq.s32.totalorder %s16, 3
      %p142 = por %p140, %p141
      %p144 = scmp.ne.s32.totalorder %s127, %s143
      %p145 = scmp.eq.s32.totalorder %s16, 0
      %p146 = por %p144, %p145
      %s147 = ssub.s32 %s17, %s36
      %s148 = ssub.s32 %s18, %s32
      %s149 = sor.u32 %s147, %s148
      %p150 = scmp.eq.s32.totalorder %s149, 0
      %s152 = sadd.s32 %s151, 1
      %s153 = scalar_select %p150, %s151, %s152
      %p156 = pneg %p150
      %p157 = scmp.eq.s32.totalorder %s10, 3
      %p158 = por %p156, %p157
      %p159 = scmp.ne.s32.totalorder %s151, %s154
      %p160 = scmp.eq.s32.totalorder %s10, 0
      %p161 = por %p159, %p160
      %p162 = scmp.ne.s32.totalorder %s151, %s154
      %p163 = scmp.eq.s32.totalorder %s15, 3
      %p164 = por %p162, %p163
      %p165 = scmp.ne.s32.totalorder %s154, %s155
      %p166 = scmp.eq.s32.totalorder %s15, 0
      %p167 = por %p165, %p166
      %p168 = scmp.ne.s32.totalorder %s154, %s155
      %p169 = scmp.eq.s32.totalorder %s16, 3
      %p170 = por %p168, %p169
      %p172 = scmp.ne.s32.totalorder %s155, %s171
      %p173 = scmp.eq.s32.totalorder %s16, 0
      %p174 = por %p172, %p173
      %p175 = scmp.le.s32.totalorder 1, %s10
      %p176 = scmp.lt.s32.totalorder %s10, 5
      %p177 = pnand %p175, %p176
      %p178 = pneg %p177
      // Predicated region
      $region9: #{vision_transformer.14} parent=5 // pred_check
        _
      $region10: #{vision_transformer.14} parent=5 // pred_check_branch
        %180 = sbr.rel (%p177) target = $region12
      $region11: #{vision_transformer.14} parent=5 // pred_region
        %s181 = ssub.s32 %s10, 1
        // Predicated region
        $region13: #{vision_transformer.14} parent=11 // pred_check
          %p182 = pneg %p111
        $region14: #{vision_transformer.14} parent=11 // pred_check_branch
          %184 = sbr.rel (%p182) target = $region16
        $region15: #{vision_transformer.14} parent=11 // pred_region
          %p185 = scmp.lt.s32.totalorder %s21, 0
          %s186 = scalar_select %p185, %s21, 0
          %s187 = scalar_lea.vmem %s2, %s186
        $region16: #{vision_transformer.14} parent=11 // pred_fallthru
          _
        // Predicated region
        $region17: #{vision_transformer.14} parent=11 // pred_check
          %p188 = pneg %p139
        $region18: #{vision_transformer.14} parent=11 // pred_check_branch
          %190 = sbr.rel (%p188) target = $region20
        $region19: #{vision_transformer.14} parent=11 // pred_region
          %s191 = smul.u32 4, %s20
          %p192 = scmp.lt.s32.totalorder %s191, 3
          %s193 = scalar_select %p192, %s191, 3
          %p194 = scmp.lt.s32.totalorder %s21, 0
          %s195 = scalar_select %p194, %s21, 0
          %s196 = sadd.s32 %s195, %s193
          %s197 = smul.addr %s196, 4
          %s198 = scalar_lea.vmem %s3, %s197
          %s199 = smul.u32 4, %s20
        $region20: #{vision_transformer.14} parent=11 // pred_fallthru
          _
      $region12: #{vision_transformer.14} parent=5 // pred_fallthru
        _
      %p200 = scmp.lt.s32.totalorder %s10, 4
      // Predicated region
      $region21: #{vision_transformer.14} parent=5 // pred_check
        %p201 = pneg %p200
      $region22: #{vision_transformer.14} parent=5 // pred_check_branch
        %203 = sbr.rel (%p201) target = $region24
      $region23: #{vision_transformer.14} parent=5 // pred_region
        // Predicated region
        $region25: #{vision_transformer.14} parent=23 // pred_check
          %p204 = pneg %p51
        $region26: #{vision_transformer.14} parent=23 // pred_check_branch
          %206 = sbr.rel (%p204) target = $region28
        $region27: #{vision_transformer.14} parent=23 // pred_region
          %s207 = sand.u32 %s41, 1
          %s208 = sand.u32 %s41, 1
          %s209 = smul.addr %s208, 64
          %s210 = scalar_lea.vmem [#allocation3], %s209
          %s211 = smul.u32 4, %s17
          %s212 = smul.u32 4, %s19
          %s213 = smul.addr %s211, 16
          %s214 = sadd.s32 %s212, %s213
          %s215 = smul.addr %s214, 4
          %s216 = scalar_lea.vmem %s0, %s215
          // Predicated region
          $region29: #{vision_transformer.14} parent=27 // pred_check
            _
          $region30: #{vision_transformer.14} parent=27 // pred_check_branch
            %218 = sbr.rel (0) target = $region32
          $region31: #{vision_transformer.14} parent=27 // pred_region
            // Predicated region
            $region33: #{vision_transformer.14} parent=31 // pred_check
              _
            $region34: #{vision_transformer.14} parent=31 // pred_check_branch
              %220 = sbr.rel (0) target = $region36
            $region35: #{vision_transformer.14} parent=31 // pred_region
              loop: start=0, step=1, limit=1
              $region37: #{vision_transformer.14} parent=35 // loop_pre_header
                _
              $region38: #{vision_transformer.14} parent=35 // loop_header
                %s222 = sphi 0, %s226
                %p223 = scmp.ge.s32.totalorder %s222, 1
                %s227 = sphi %s216, %s216
                %s228 = sphi %s210, %s210
              $region39: #{vision_transformer.14} parent=35 // loop_header_branch
                %225 = sbr.rel (%p223) target = $region43
              $region40: #{vision_transformer.14} parent=35 // loop_body
                %v229 = vld [vmem:[%s227] sm:$0xff]
                %230 = vst [vmem:[%s228] sm:$0xff] %v229
                %v231 = vld [vmem:[%s227 + $0x8] sm:$0xff]
                %232 = vst [vmem:[%s228 + $0x8] sm:$0xff] %v231
                %v233 = vld [vmem:[%s227 + $0x40] sm:$0xff]
                %234 = vst [vmem:[%s228 + $0x10] sm:$0xff] %v233
                %v235 = vld [vmem:[%s227 + $0x48] sm:$0xff]
                %236 = vst [vmem:[%s228 + $0x18] sm:$0xff] %v235
                %v237 = vld [vmem:[%s227 + $0x80] sm:$0xff]
                %238 = vst [vmem:[%s228 + $0x20] sm:$0xff] %v237
                %v239 = vld [vmem:[%s227 + $0x88] sm:$0xff]
                %240 = vst [vmem:[%s228 + $0x28] sm:$0xff] %v239
                %v241 = vld [vmem:[%s227 + $0xc0] sm:$0xff]
                %242 = vst [vmem:[%s228 + $0x30] sm:$0xff] %v241
                %v243 = vld [vmem:[%s227 + $0xc8] sm:$0xff]
                %244 = vst [vmem:[%s228 + $0x38] sm:$0xff] %v243
              $region41: #{vision_transformer.14} parent=35 // loop_footer
                %s226 = sadd.s32 1, %s222
              $region42: #{vision_transformer.14} parent=35 // loop_footer_branch
                %221 = sbr.rel target = $region38
              $region43: #{vision_transformer.14} parent=35 // loop_exit
                _
            $region36: #{vision_transformer.14} parent=31 // pred_fallthru
              _
            // Predicated region
            $region44: #{vision_transformer.14} parent=31 // pred_check
              _
            $region45: #{vision_transformer.14} parent=31 // pred_check_branch
              %246 = sbr.rel target = $region47
            $region46: #{vision_transformer.14} parent=31 // pred_region
              _
            $region47: #{vision_transformer.14} parent=31 // pred_fallthru
              _
          $region32: #{vision_transformer.14} parent=27 // pred_fallthru
            _
          %247 = vnop
        $region28: #{vision_transformer.14} parent=23 // pred_fallthru
          _
        // Predicated region
        $region48: #{vision_transformer.14} parent=23 // pred_check
          %p248 = pneg %p79
        $region49: #{vision_transformer.14} parent=23 // pred_check_branch
          %250 = sbr.rel (%p248) target = $region51
        $region50: #{vision_transformer.14} parent=23 // pred_region
          %s251 = smul.u32 64, %s19
          %p252 = scmp.lt.s32.totalorder %s251, 255
          %s253 = scalar_select %p252, %s251, 255
          %p254 = scmp.lt.s32.totalorder %s18, 0
          %s255 = scalar_select %p254, %s18, 0
          %s256 = sadd.s32 %s255, %s253
          %s257 = smul.addr %s256, 4
          %s258 = scalar_lea.vmem %s1, %s257
          %s259 = smul.u32 64, %s19
        $region51: #{vision_transformer.14} parent=23 // pred_fallthru
          _
      $region24: #{vision_transformer.14} parent=5 // pred_fallthru
        _
      %p260 = scmp.le.s32.totalorder 1, %s10
      %p261 = scmp.lt.s32.totalorder %s10, 5
      %p262 = pnand %p260, %p261
      %p263 = pneg %p262
      // Predicated region
      $region52: #{vision_transformer.14} parent=5 // pred_check
        _
      $region53: #{vision_transformer.14} parent=5 // pred_check_branch
        %265 = sbr.rel (%p262) target = $region55
      $region54: #{vision_transformer.14} parent=5 // pred_region
        %s266 = ssub.s32 %s10, 1
        %s267 = sand.u32 %s44, 1
        %s268 = sand.u32 %s44, 1
        %s269 = smul.addr %s268, 64
        %s270 = scalar_lea.vmem [#allocation3], %s269
        // Predicated region
        $region56: #{vision_transformer.14} parent=54 // pred_check
          %p271 = pneg %p57
        $region57: #{vision_transformer.14} parent=54 // pred_check_branch
          %273 = sbr.rel (%p271) target = $region59
        $region58: #{vision_transformer.14} parent=54 // pred_region
          _
        $region59: #{vision_transformer.14} parent=54 // pred_fallthru
          _
        %s274 = sand.u32 %s44, 1
        %s275 = sand.u32 %s44, 1
        %s276 = smul.addr %s275, 64
        %s277 = scalar_lea.vmem [#allocation3], %s276
        %p278 = pneg %p57
        %p279 = pneg %p54
        %s280 = smul.u32 64, %s22
        %p281 = scmp.lt.s32.totalorder %s280, 255
        %s282 = scalar_select %p281, %s280, 255
        %p283 = scmp.lt.s32.totalorder %s21, 0
        %s284 = scalar_select %p283, %s21, 0
        %s285 = sadd.s32 %s284, %s282
        %s286 = smul.addr %s285, 4
        %s287 = scalar_lea.vmem %s1, %s286
        %p288 = pneg %p85
        %p289 = pneg %p82
        %p290 = scmp.lt.s32.totalorder %s21, 0
        %s291 = scalar_select %p290, %s21, 0
        %s292 = scalar_lea.vmem %s2, %s291
        %p293 = pneg %p111
        %p294 = pneg %p108
        %s295 = smul.u32 4, %s20
        %p296 = scmp.lt.s32.totalorder %s295, 3
        %s297 = scalar_select %p296, %s295, 3
        %p298 = scmp.lt.s32.totalorder %s21, 0
        %s299 = scalar_select %p298, %s21, 0
        %s300 = sadd.s32 %s299, %s297
        %s301 = smul.addr %s300, 4
        %s302 = scalar_lea.vmem %s3, %s301
        %p303 = pneg %p139
        %p304 = pneg %p136
        %p305 = pneg %p167
        %p306 = pneg %p164
        %s307 = smul.u32 4, %s20
        %p308 = scmp.lt.s32.totalorder %s307, 3
        %s309 = scalar_select %p308, %s307, 3
        %p310 = scmp.lt.s32.totalorder %s21, 0
        %s311 = scalar_select %p310, %s21, 0
        %s312 = sadd.s32 %s311, %s309
        %s313 = smul.addr %s312, 4
        %s314 = scalar_lea.vmem %s4, %s313
        %s315 = smul.u32 4, %s20
        %s316 = smul.u32 4, %s22
        %s317 = smul.u32 64, %s22
        %p318 = scmp.lt.s32.totalorder %s317, 255
        %s319 = scalar_select %p318, %s317, 255
        %p320 = scmp.lt.s32.totalorder %s21, 0
        %s321 = scalar_select %p320, %s21, 0
        %s322 = sadd.s32 %s321, %s319
        %s323 = smul.addr %s322, 4
        %s324 = scalar_lea.vmem %s1, %s323
        %s325 = smul.u32 64, %s22
        %p326 = scmp.lt.s32.totalorder %s21, 0
        %s327 = scalar_select %p326, %s21, 0
        %s328 = scalar_lea.vmem %s2, %s327
        %s329 = smul.u32 4, %s20
        %p330 = scmp.lt.s32.totalorder %s329, 3
        %s331 = scalar_select %p330, %s329, 3
        %p332 = scmp.lt.s32.totalorder %s21, 0
        %s333 = scalar_select %p332, %s21, 0
        %s334 = sadd.s32 %s333, %s331
        %s335 = smul.addr %s334, 4
        %s336 = scalar_lea.vmem %s3, %s335
        %s337 = smul.u32 4, %s20
        %s338 = smul.u32 4, %s20
        %p339 = scmp.lt.s32.totalorder %s338, 3
        %s340 = scalar_select %p339, %s338, 3
        %p341 = scmp.lt.s32.totalorder %s21, 0
        %s342 = scalar_select %p341, %s21, 0
        %s343 = sadd.s32 %s342, %s340
        %s344 = smul.addr %s343, 4
        %s345 = scalar_lea.vmem %s4, %s344
        %s346 = smul.u32 4, %s20
        %v347 = vld [vmem:[%s270] sm:$0xff]
        %v348 = vld [vmem:[%s270 + $0x8] sm:$0xff]
        %v349 = vld [vmem:[%s270 + $0x10] sm:$0xff]
        %v350 = vld [vmem:[%s270 + $0x18] sm:$0xff]
        %v351 = vld [vmem:[%s270 + $0x20] sm:$0xff]
        %v352 = vld [vmem:[%s270 + $0x28] sm:$0xff]
        %v353 = vld [vmem:[%s270 + $0x30] sm:$0xff]
        %v354 = vld [vmem:[%s270 + $0x38] sm:$0xff]
        %p355 = scmp.eq.s32.totalorder %s22, 0
        // Predicated region
        $region60: #{vision_transformer.14} parent=54 // pred_check
          %p356 = pneg %p355
        $region61: #{vision_transformer.14} parent=54 // pred_check_branch
          %358 = sbr.rel (%p356) target = $region63
        $region62: #{vision_transformer.14} parent=54 // pred_region
          %vm359 = vcmask 523264
          %360 = vst.msk [vmem:[#allocation2] sm:$0xff] %vm359, 0.0
          %361 = vst.msk [vmem:[#allocation2 + $0x8] sm:$0xff] %vm359, 0.0
          %362 = vst.msk [vmem:[#allocation2 + $0x10] sm:$0xff] %vm359, 0.0
          %363 = vst.msk [vmem:[#allocation2 + $0x18] sm:$0xff] %vm359, 0.0
        $region63: #{vision_transformer.14} parent=54 // pred_fallthru
          _
        %v364 = vld [vmem:[#allocation2] sm:$0xff]
        %v365 = vld [vmem:[#allocation2 + $0x8] sm:$0xff]
        %v366 = vld [vmem:[#allocation2 + $0x10] sm:$0xff]
        %v367 = vld [vmem:[#allocation2 + $0x18] sm:$0xff]
        %v368 = vld [vmem:[%s324] sm:$0xf]
        %v369 = vld [vmem:[%s324 + $0x4] sm:$0xf]
        %v370 = vld [vmem:[%s324 + $0x8] sm:$0xf]
        %v371 = vld [vmem:[%s324 + $0xc] sm:$0xf]
        %v372 = vld [vmem:[%s324 + $0x10] sm:$0xf]
        %v373 = vld [vmem:[%s324 + $0x14] sm:$0xf]
        %v374 = vld [vmem:[%s324 + $0x18] sm:$0xf]
        %v375 = vld [vmem:[%s324 + $0x1c] sm:$0xf]
        %v376 = vld [vmem:[%s324 + $0x20] sm:$0xf]
        %v377 = vld [vmem:[%s324 + $0x24] sm:$0xf]
        %v378 = vld [vmem:[%s324 + $0x28] sm:$0xf]
        %v379 = vld [vmem:[%s324 + $0x2c] sm:$0xf]
        %v380 = vld [vmem:[%s324 + $0x30] sm:$0xf]
        %v381 = vld [vmem:[%s324 + $0x34] sm:$0xf]
        %v382 = vld [vmem:[%s324 + $0x38] sm:$0xf]
        %v383 = vld [vmem:[%s324 + $0x3c] sm:$0xf]
        %v384 = vld [vmem:[%s324 + $0x40] sm:$0xf]
        %v385 = vld [vmem:[%s324 + $0x44] sm:$0xf]
        %v386 = vld [vmem:[%s324 + $0x48] sm:$0xf]
        %v387 = vld [vmem:[%s324 + $0x4c] sm:$0xf]
        %v388 = vld [vmem:[%s324 + $0x50] sm:$0xf]
        %v389 = vld [vmem:[%s324 + $0x54] sm:$0xf]
        %v390 = vld [vmem:[%s324 + $0x58] sm:$0xf]
        %v391 = vld [vmem:[%s324 + $0x5c] sm:$0xf]
        %v392 = vld [vmem:[%s324 + $0x60] sm:$0xf]
        %v393 = vld [vmem:[%s324 + $0x64] sm:$0xf]
        %v394 = vld [vmem:[%s324 + $0x68] sm:$0xf]
        %v395 = vld [vmem:[%s324 + $0x6c] sm:$0xf]
        %v396 = vld [vmem:[%s324 + $0x70] sm:$0xf]
        %v397 = vld [vmem:[%s324 + $0x74] sm:$0xf]
        %v398 = vld [vmem:[%s324 + $0x78] sm:$0xf]
        %v399 = vld [vmem:[%s324 + $0x7c] sm:$0xf]
        %v400 = vld [vmem:[%s324 + $0x80] sm:$0xf]
        %v401 = vld [vmem:[%s324 + $0x84] sm:$0xf]
        %v402 = vld [vmem:[%s324 + $0x88] sm:$0xf]
        %v403 = vld [vmem:[%s324 + $0x8c] sm:$0xf]
        %v404 = vld [vmem:[%s324 + $0x90] sm:$0xf]
        %v405 = vld [vmem:[%s324 + $0x94] sm:$0xf]
        %v406 = vld [vmem:[%s324 + $0x98] sm:$0xf]
        %v407 = vld [vmem:[%s324 + $0x9c] sm:$0xf]
        %v408 = vld [vmem:[%s324 + $0xa0] sm:$0xf]
        %v409 = vld [vmem:[%s324 + $0xa4] sm:$0xf]
        %v410 = vld [vmem:[%s324 + $0xa8] sm:$0xf]
        %v411 = vld [vmem:[%s324 + $0xac] sm:$0xf]
        %v412 = vld [vmem:[%s324 + $0xb0] sm:$0xf]
        %v413 = vld [vmem:[%s324 + $0xb4] sm:$0xf]
        %v414 = vld [vmem:[%s324 + $0xb8] sm:$0xf]
        %v415 = vld [vmem:[%s324 + $0xbc] sm:$0xf]
        %v416 = vld [vmem:[%s324 + $0xc0] sm:$0xf]
        %v417 = vld [vmem:[%s324 + $0xc4] sm:$0xf]
        %v418 = vld [vmem:[%s324 + $0xc8] sm:$0xf]
        %v419 = vld [vmem:[%s324 + $0xcc] sm:$0xf]
        %v420 = vld [vmem:[%s324 + $0xd0] sm:$0xf]
        %v421 = vld [vmem:[%s324 + $0xd4] sm:$0xf]
        %v422 = vld [vmem:[%s324 + $0xd8] sm:$0xf]
        %v423 = vld [vmem:[%s324 + $0xdc] sm:$0xf]
        %v424 = vld [vmem:[%s324 + $0xe0] sm:$0xf]
        %v425 = vld [vmem:[%s324 + $0xe4] sm:$0xf]
        %v426 = vld [vmem:[%s324 + $0xe8] sm:$0xf]
        %v427 = vld [vmem:[%s324 + $0xec] sm:$0xf]
        %v428 = vld [vmem:[%s324 + $0xf0] sm:$0xf]
        %v429 = vld [vmem:[%s324 + $0xf4] sm:$0xf]
        %v430 = vld [vmem:[%s324 + $0xf8] sm:$0xf]
        %v431 = vld [vmem:[%s324 + $0xfc] sm:$0xf]
        %v440 = vunpack.c.l.b16 %v347
        %v441 = vunpack.c.h.b16 %v347
        %v442 = vunpack.c.l.b16 %v348
        %v443 = vunpack.c.h.b16 %v348
        %v444 = vunpack.c.l.b16 %v349
        %v445 = vunpack.c.h.b16 %v349
        %v446 = vunpack.c.l.b16 %v350
        %v447 = vunpack.c.h.b16 %v350
        %v448 = vunpack.c.l.b16 %v351
        %v449 = vunpack.c.h.b16 %v351
        %v450 = vunpack.c.l.b16 %v352
        %v451 = vunpack.c.h.b16 %v352
        %v452 = vunpack.c.l.b16 %v353
        %v453 = vunpack.c.h.b16 %v353
        %v454 = vunpack.c.l.b16 %v354
        %v455 = vunpack.c.h.b16 %v354
        %v456 = vpack.c.b16 %v444, %v440
        %v457 = vpack.c.b16 %v445, %v441
        %v458 = vpack.c.b16 %v446, %v442
        %v459 = vpack.c.b16 %v447, %v443
        %v460 = vpack.c.b16 %v452, %v448
        %v461 = vpack.c.b16 %v453, %v449
        %v462 = vpack.c.b16 %v454, %v450
        %v463 = vpack.c.b16 %v455, %v451
        %v536 = vunpack.c.l.b16 %v368
        %v537 = vunpack.c.l.b16 %v369
        %v538 = vunpack.c.l.b16 %v370
        %v539 = vunpack.c.l.b16 %v371
        %v540 = vunpack.c.l.b16 %v372
        %v541 = vunpack.c.l.b16 %v373
        %v542 = vunpack.c.l.b16 %v374
        %v543 = vunpack.c.l.b16 %v375
        %v544 = vunpack.c.l.b16 %v376
        %v545 = vunpack.c.l.b16 %v377
        %v546 = vunpack.c.l.b16 %v378
        %v547 = vunpack.c.l.b16 %v379
        %v548 = vunpack.c.l.b16 %v380
        %v549 = vunpack.c.l.b16 %v381
        %v550 = vunpack.c.l.b16 %v382
        %v551 = vunpack.c.l.b16 %v383
        %v552 = vunpack.c.l.b16 %v384
        %v553 = vunpack.c.l.b16 %v385
        %v554 = vunpack.c.l.b16 %v386
        %v555 = vunpack.c.l.b16 %v387
        %v556 = vunpack.c.l.b16 %v388
        %v557 = vunpack.c.l.b16 %v389
        %v558 = vunpack.c.l.b16 %v390
        %v559 = vunpack.c.l.b16 %v391
        %v560 = vunpack.c.l.b16 %v392
        %v561 = vunpack.c.l.b16 %v393
        %v562 = vunpack.c.l.b16 %v394
        %v563 = vunpack.c.l.b16 %v395
        %v564 = vunpack.c.l.b16 %v396
        %v565 = vunpack.c.l.b16 %v397
        %v566 = vunpack.c.l.b16 %v398
        %v567 = vunpack.c.l.b16 %v399
        %v568 = vunpack.c.l.b16 %v400
        %v569 = vunpack.c.l.b16 %v401
        %v570 = vunpack.c.l.b16 %v402
        %v571 = vunpack.c.l.b16 %v403
        %v572 = vunpack.c.l.b16 %v404
        %v573 = vunpack.c.l.b16 %v405
        %v574 = vunpack.c.l.b16 %v406
        %v575 = vunpack.c.l.b16 %v407
        %v576 = vunpack.c.l.b16 %v408
        %v577 = vunpack.c.l.b16 %v409
        %v578 = vunpack.c.l.b16 %v410
        %v579 = vunpack.c.l.b16 %v411
        %v580 = vunpack.c.l.b16 %v412
        %v581 = vunpack.c.l.b16 %v413
        %v582 = vunpack.c.l.b16 %v414
        %v583 = vunpack.c.l.b16 %v415
        %v584 = vunpack.c.l.b16 %v416
        %v585 = vunpack.c.l.b16 %v417
        %v586 = vunpack.c.l.b16 %v418
        %v587 = vunpack.c.l.b16 %v419
        %v588 = vunpack.c.l.b16 %v420
        %v589 = vunpack.c.l.b16 %v421
        %v590 = vunpack.c.l.b16 %v422
        %v591 = vunpack.c.l.b16 %v423
        %v592 = vunpack.c.l.b16 %v424
        %v593 = vunpack.c.l.b16 %v425
        %v594 = vunpack.c.l.b16 %v426
        %v595 = vunpack.c.l.b16 %v427
        %v596 = vunpack.c.l.b16 %v428
        %v597 = vunpack.c.l.b16 %v429
        %v598 = vunpack.c.l.b16 %v430
        %v599 = vunpack.c.l.b16 %v431
        %v600 = vpack.c.b16 %v537, %v536
        %v601 = vpack.c.b16 %v539, %v538
        %v602 = vpack.c.b16 %v541, %v540
        %v603 = vpack.c.b16 %v543, %v542
        %v604 = vpack.c.b16 %v545, %v544
        %v605 = vpack.c.b16 %v547, %v546
        %v606 = vpack.c.b16 %v549, %v548
        %v607 = vpack.c.b16 %v551, %v550
        %v608 = vpack.c.b16 %v553, %v552
        %v609 = vpack.c.b16 %v555, %v554
        %v610 = vpack.c.b16 %v557, %v556
        %v611 = vpack.c.b16 %v559, %v558
        %v612 = vpack.c.b16 %v561, %v560
        %v613 = vpack.c.b16 %v563, %v562
        %v614 = vpack.c.b16 %v565, %v564
        %v615 = vpack.c.b16 %v567, %v566
        %v616 = vpack.c.b16 %v569, %v568
        %v617 = vpack.c.b16 %v571, %v570
        %v618 = vpack.c.b16 %v573, %v572
        %v619 = vpack.c.b16 %v575, %v574
        %v620 = vpack.c.b16 %v577, %v576
        %v621 = vpack.c.b16 %v579, %v578
        %v622 = vpack.c.b16 %v581, %v580
        %v623 = vpack.c.b16 %v583, %v582
        %v624 = vpack.c.b16 %v585, %v584
        %v625 = vpack.c.b16 %v587, %v586
        %v626 = vpack.c.b16 %v589, %v588
        %v627 = vpack.c.b16 %v591, %v590
        %v628 = vpack.c.b16 %v593, %v592
        %v629 = vpack.c.b16 %v595, %v594
        %v630 = vpack.c.b16 %v597, %v596
        %v631 = vpack.c.b16 %v599, %v598
        %664 = vmatpush.bf16.msra.mxu0 %v607
        %665 = vmatpush.bf16.msra.mxu0 %v606
        %666 = vmatpush.bf16.msra.mxu0 %v605
        %667 = vmatpush.bf16.msra.mxu0 %v604
        %668 = vmatpush.bf16.msra.mxu0 %v603
        %669 = vmatpush.bf16.msra.mxu0 %v602
        %670 = vmatpush.bf16.msra.mxu0 %v601
        %671 = vmatpush.bf16.msra.mxu0 %v600
        %672 = vmatmul.bf16.gmra.mxu0 %v456
        %v673 = vpop.f32.mrf.mxu0
        %v674 = vadd.f32 0.0, %v673
        %v675 = vpop.f32.mrf.mxu0
        %v676 = vadd.f32 0.0, %v675
        %677 = vmatmul.bf16.gmra.mxu0 %v460
        %v678 = vpop.f32.mrf.mxu0
        %v679 = vadd.f32 0.0, %v678
        %v680 = vpop.f32.mrf.mxu0
        %v681 = vadd.f32 0.0, %v680
        %682 = vdwg.mxu0
        %683 = vmatpush.bf16.msra.mxu0 %v615
        %684 = vmatpush.bf16.msra.mxu0 %v614
        %685 = vmatpush.bf16.msra.mxu0 %v613
        %686 = vmatpush.bf16.msra.mxu0 %v612
        %687 = vmatpush.bf16.msra.mxu0 %v611
        %688 = vmatpush.bf16.msra.mxu0 %v610
        %689 = vmatpush.bf16.msra.mxu0 %v609
        %690 = vmatpush.bf16.msra.mxu0 %v608
        %691 = vmatmul.bf16.gmra.mxu0 %v457
        %v692 = vpop.f32.mrf.mxu0
        %v693 = vadd.f32 %v674, %v692
        %v694 = vpop.f32.mrf.mxu0
        %v695 = vadd.f32 %v676, %v694
        %696 = vmatmul.bf16.gmra.mxu0 %v461
        %v697 = vpop.f32.mrf.mxu0
        %v698 = vadd.f32 %v679, %v697
        %v699 = vpop.f32.mrf.mxu0
        %v700 = vadd.f32 %v681, %v699
        %701 = vdwg.mxu0
        %702 = vmatpush.bf16.msra.mxu0 %v623
        %703 = vmatpush.bf16.msra.mxu0 %v622
        %704 = vmatpush.bf16.msra.mxu0 %v621
        %705 = vmatpush.bf16.msra.mxu0 %v620
        %706 = vmatpush.bf16.msra.mxu0 %v619
        %707 = vmatpush.bf16.msra.mxu0 %v618
        %708 = vmatpush.bf16.msra.mxu0 %v617
        %709 = vmatpush.bf16.msra.mxu0 %v616
        %710 = vmatmul.bf16.gmra.mxu0 %v458
        %v711 = vpop.f32.mrf.mxu0
        %v712 = vadd.f32 %v693, %v711
        %v713 = vpop.f32.mrf.mxu0
        %v714 = vadd.f32 %v695, %v713
        %715 = vmatmul.bf16.gmra.mxu0 %v462
        %v716 = vpop.f32.mrf.mxu0
        %v717 = vadd.f32 %v698, %v716
        %v718 = vpop.f32.mrf.mxu0
        %v719 = vadd.f32 %v700, %v718
        %720 = vdwg.mxu0
        %721 = vmatpush.bf16.msra.mxu0 %v631
        %722 = vmatpush.bf16.msra.mxu0 %v630
        %723 = vmatpush.bf16.msra.mxu0 %v629
        %724 = vmatpush.bf16.msra.mxu0 %v628
        %725 = vmatpush.bf16.msra.mxu0 %v627
        %726 = vmatpush.bf16.msra.mxu0 %v626
        %727 = vmatpush.bf16.msra.mxu0 %v625
        %728 = vmatpush.bf16.msra.mxu0 %v624
        %729 = vmatmul.bf16.gmra.mxu0 %v459
        %v730 = vpop.f32.mrf.mxu0
        %v731 = vadd.f32 %v712, %v730
        %v732 = vpop.f32.mrf.mxu0
        %v733 = vadd.f32 %v714, %v732
        %734 = vmatmul.bf16.gmra.mxu0 %v463
        %v735 = vpop.f32.mrf.mxu0
        %v736 = vadd.f32 %v717, %v735
        %v737 = vpop.f32.mrf.mxu0
        %v738 = vadd.f32 %v719, %v737
        %739 = vdwg.mxu0
        %v740 = vadd.f32 %v364, %v731
        %v741 = vadd.f32 %v365, %v733
        %v742 = vadd.f32 %v366, %v736
        %v743 = vadd.f32 %v367, %v738
        %vm744 = vcmask 523264
        %745 = vst.msk [vmem:[#allocation2] sm:$0xff] %vm744, %v740
        %746 = vst.msk [vmem:[#allocation2 + $0x8] sm:$0xff] %vm744, %v741
        %747 = vst.msk [vmem:[#allocation2 + $0x10] sm:$0xff] %vm744, %v742
        %748 = vst.msk [vmem:[#allocation2 + $0x18] sm:$0xff] %vm744, %v743
        %p749 = scmp.eq.s32.totalorder %s22, 3
        // Predicated region
        $region64: #{vision_transformer.14} parent=54 // pred_check
          %p750 = pneg %p749
        $region65: #{vision_transformer.14} parent=54 // pred_check_branch
          %752 = sbr.rel (%p750) target = $region67
        $region66: #{vision_transformer.14} parent=54 // pred_region
          %v753 = vld [vmem:[#allocation2] sm:$0xff]
          %v754 = vld [vmem:[#allocation2 + $0x8] sm:$0xff]
          %v755 = vld [vmem:[#allocation2 + $0x10] sm:$0xff]
          %v756 = vld [vmem:[#allocation2 + $0x18] sm:$0xff]
          %v757 = vld [vmem:[%s328] sm:$0x1]
          %v759 = vperm.slane %v757, 0
          %v761 = vadd.f32 %v753, %v759
          %v762 = vadd.f32 %v754, %v759
          %v763 = vadd.f32 %v755, %v759
          %v764 = vadd.f32 %v756, %v759
          %v765 = vld [vmem:[%s336] sm:$0xf]
          %v766 = vld [vmem:[%s336 + $0x4] sm:$0xf]
          %v767 = vld [vmem:[%s336 + $0x8] sm:$0xf]
          %v768 = vld [vmem:[%s336 + $0xc] sm:$0xf]
          %v769 = vunpack.c.l.bf16 %v765
          %v770 = vunpack.c.l.bf16 %v766
          %v771 = vunpack.c.l.bf16 %v767
          %v772 = vunpack.c.l.bf16 %v768
          %v773 = vadd.f32 %v761, %v769
          %v774 = vadd.f32 %v762, %v770
          %v775 = vadd.f32 %v763, %v771
          %v776 = vadd.f32 %v764, %v772
          %v777 = vpack.c.bf16 %v773, %v773
          %v778 = vpack.c.bf16 %v774, %v774
          %v779 = vpack.c.bf16 %v775, %v775
          %v780 = vpack.c.bf16 %v776, %v776
          %vm781 = vcmask 519168
          %782 = vst.msk [vmem:[%s345] sm:$0xf] %vm781, %v777
          %783 = vst.msk [vmem:[%s345 + $0x4] sm:$0xf] %vm781, %v778
          %784 = vst.msk [vmem:[%s345 + $0x8] sm:$0xf] %vm781, %v779
          %785 = vst.msk [vmem:[%s345 + $0xc] sm:$0xf] %vm781, %v780
        $region67: #{vision_transformer.14} parent=54 // pred_fallthru
          _
        %s786 = smul.u32 4, %s20
        %p787 = scmp.lt.s32.totalorder %s786, 3
        %s788 = scalar_select %p787, %s786, 3
        %p789 = scmp.lt.s32.totalorder %s21, 0
        %s790 = scalar_select %p789, %s21, 0
        %s791 = sadd.s32 %s790, %s788
        %s792 = smul.addr %s791, 4
        %s793 = scalar_lea.vmem %s4, %s792
        // Predicated region
        $region68: #{vision_transformer.14} parent=54 // pred_check
          %p794 = pneg %p164
        $region69: #{vision_transformer.14} parent=54 // pred_check_branch
          %796 = sbr.rel (%p794) target = $region71
        $region70: #{vision_transformer.14} parent=54 // pred_region
          %s797 = smul.u32 4, %s20
        $region71: #{vision_transformer.14} parent=54 // pred_fallthru
          _
        // Predicated region
        $region72: #{vision_transformer.14} parent=54 // pred_check
          %p798 = pneg %p164
        $region73: #{vision_transformer.14} parent=54 // pred_check_branch
          %800 = sbr.rel (%p798) target = $region75
        $region74: #{vision_transformer.14} parent=54 // pred_region
          %s801 = smul.u32 4, %s20
          %p802 = scmp.lt.s32.totalorder %s801, 3
          %s803 = scalar_select %p802, %s801, 3
          %p804 = scmp.lt.s32.totalorder %s21, 0
          %s805 = scalar_select %p804, %s21, 0
          %s806 = sadd.s32 %s805, %s803
          %s807 = smul.addr %s806, 4
          %s808 = scalar_lea.vmem %s4, %s807
        $region75: #{vision_transformer.14} parent=54 // pred_fallthru
          _
      $region55: #{vision_transformer.14} parent=5 // pred_fallthru
        _
      %p809 = scmp.le.s32.totalorder 2, %s10
      // Predicated region
      $region76: #{vision_transformer.14} parent=5 // pred_check
        %p810 = pneg %p809
      $region77: #{vision_transformer.14} parent=5 // pred_check_branch
        %812 = sbr.rel (%p810) target = $region79
      $region78: #{vision_transformer.14} parent=5 // pred_region
        %s813 = ssub.s32 %s10, 2
      $region79: #{vision_transformer.14} parent=5 // pred_fallthru
        _
    $region6: #{vision_transformer.14} parent=1 // loop_footer
      %s14 = sadd.s32 1, %s10
    $region7: #{vision_transformer.14} parent=1 // loop_footer_branch
      %9 = sbr.rel target = $region3
    $region8: #{vision_transformer.14} parent=1 // loop_exit
      _

// kernel: vision_transformer.17
$region0: #{vision_transformer.17}
  #allocation0 [shape = 'u32[]', space=smem, size = 0x4, offset = 0x4, fixed_abs, tag = 'smem constant byte address 0x4 - core index']
  #allocation1 [shape = 'u32[72,128]{1,0:T(1,128)}', space=vmem, size = 0x9000, scoped, tag = 'internal scratch']
  #allocation2 [shape = 'bf16[32,64]{1,0:T(8,128)(2,1)}', space=vmem, size = 0x2000, scoped, tag = 'scratch operand']
  %s0 = inlined_call_operand.vmem [shape: bf16[32,64], index: 0, kind: input, shape index: {}]
  %s1 = inlined_call_operand.vmem [shape: bf16[64,2048], index: 1, kind: input, shape index: {}]
  %s2 = inlined_call_operand.vmem [shape: f32[1,2048], index: 2, kind: input, shape index: {}]
  %s3 = inlined_call_operand.vmem [shape: f32[1,64], index: 3, kind: input, shape index: {}]
  %s4 = inlined_call_operand.vmem [shape: f32[1,64], index: 4, kind: input, shape index: {}]
  %s5 = inlined_call_operand.vmem [shape: bf16[32,2048], index: 5, kind: output, shape index: {}]
  %s6 = sld [smem:[#allocation0]]
  $region99: #{vision_transformer.17} parent=0
    _
  %s8 = ssub.s32 1, %s6
  %s9 = scalar_select 0, %s8, %s6
  $region1: #{vision_transformer.17} parent=0
    #allocation3 [shape = 'u8[131072]{0}', space=vmem, size = 0x20000, scoped, tag = 'input window, operand 1']
    #allocation4 [shape = 'u8[65536]{0}', space=vmem, size = 0x10000, scoped, tag = 'output window, operand 0']
    loop: start=0, step=1, limit=6
    $region2: #{vision_transformer.17} parent=1 // loop_pre_header
      _
    $region3: #{vision_transformer.17} parent=1 // loop_header
      %s11 = sphi 0, %s15
      %p12 = scmp.ge.s32.totalorder %s11, 6
      %s18 = sphi 0, %s37
      %s19 = sphi 0, %s33
      %s20 = sphi 0, %s29
      %s21 = sphi 0, %s18
      %s22 = sphi 0, %s19
      %s23 = sphi 0, %s20
      %s24 = sphi 0, %s21
      %s25 = sphi 0, %s22
      %s26 = sphi 0, %s23
      %s42 = sphi 0, %s44
      %s45 = sphi 0, %s42
      %s46 = sphi 0, %s45
      %s62 = sphi 0, %s46
      %s70 = sphi 0, %s72
      %s73 = sphi 0, %s70
      %s74 = sphi 0, %s73
      %s90 = sphi 0, %s74
      %s96 = sphi 0, %s98
      %s99 = sphi 0, %s96
      %s100 = sphi 0, %s99
      %s116 = sphi 0, %s100
      %s120 = sphi 0, %s120
      %s122 = sphi 0, %s120
      %s123 = sphi 0, %s122
      %s137 = sphi 0, %s123
      %s141 = sphi 0, %s141
      %s143 = sphi 0, %s141
      %s144 = sphi 0, %s143
      %s158 = sphi 0, %s144
      %s166 = sphi 0, %s168
      %s169 = sphi 0, %s166
      %s170 = sphi 0, %s169
      %s186 = sphi 0, %s170
    $region4: #{vision_transformer.17} parent=1 // loop_header_branch
      %14 = sbr.rel (%p12) target = $region8
    $region5: #{vision_transformer.17} parent=1 // loop_body
      %s16 = ssub.s32 %s11, 1
      %s17 = ssub.s32 %s11, 2
      %s27 = sadd.s32 1, %s20
      %p28 = scmp.ge.s32.totalorder %s27, 1
      %s29 = scalar_select %p28, 0, %s27
      %s30 = sadd.s32 1, %s19
      %s31 = scalar_select %p28, %s30, %s19
      %p32 = scmp.ge.s32.totalorder %s31, 4
      %s33 = scalar_select %p32, 0, %s31
      %s34 = sadd.s32 1, %s18
      %s35 = scalar_select %p32, %s34, %s18
      %p36 = scmp.ge.s32.totalorder %s35, 1
      %s37 = scalar_select %p36, 0, %s35
      %s38 = ssub.s32 %s18, %s37
      %s39 = ssub.s32 %s20, %s29
      %s40 = sor.u32 %s38, %s39
      %p41 = scmp.eq.s32.totalorder %s40, 0
      %s43 = sadd.s32 %s42, 1
      %s44 = scalar_select %p41, %s42, %s43
      %p47 = pneg %p41
      %p48 = scmp.eq.s32.totalorder %s11, 3
      %p49 = por %p47, %p48
      %p50 = scmp.ne.s32.totalorder %s42, %s45
      %p51 = scmp.eq.s32.totalorder %s11, 0
      %p52 = por %p50, %p51
      %p53 = scmp.ne.s32.totalorder %s42, %s45
      %p54 = scmp.eq.s32.totalorder %s16, 3
      %p55 = por %p53, %p54
      %p56 = scmp.ne.s32.totalorder %s45, %s46
      %p57 = scmp.eq.s32.totalorder %s16, 0
      %p58 = por %p56, %p57
      %p59 = scmp.ne.s32.totalorder %s45, %s46
      %p60 = scmp.eq.s32.totalorder %s17, 3
      %p61 = por %p59, %p60
      %p63 = scmp.ne.s32.totalorder %s46, %s62
      %p64 = scmp.eq.s32.totalorder %s17, 0
      %p65 = por %p63, %p64
      %s66 = ssub.s32 %s20, %s29
      %s67 = ssub.s32 %s19, %s33
      %s68 = sor.u32 %s66, %s67
      %p69 = scmp.eq.s32.totalorder %s68, 0
      %s71 = sadd.s32 %s70, 1
      %s72 = scalar_select %p69, %s70, %s71
      %p75 = pneg %p69
      %p76 = scmp.eq.s32.totalorder %s11, 3
      %p77 = por %p75, %p76
      %p78 = scmp.ne.s32.totalorder %s70, %s73
      %p79 = scmp.eq.s32.totalorder %s11, 0
      %p80 = por %p78, %p79
      %p81 = scmp.ne.s32.totalorder %s70, %s73
      %p82 = scmp.eq.s32.totalorder %s16, 3
      %p83 = por %p81, %p82
      %p84 = scmp.ne.s32.totalorder %s73, %s74
      %p85 = scmp.eq.s32.totalorder %s16, 0
      %p86 = por %p84, %p85
      %p87 = scmp.ne.s32.totalorder %s73, %s74
      %p88 = scmp.eq.s32.totalorder %s17, 3
      %p89 = por %p87, %p88
      %p91 = scmp.ne.s32.totalorder %s74, %s90
      %p92 = scmp.eq.s32.totalorder %s17, 0
      %p93 = por %p91, %p92
      %s94 = ssub.s32 %s19, %s33
      %p95 = scmp.eq.s32.totalorder %s94, 0
      %s97 = sadd.s32 %s96, 1
      %s98 = scalar_select %p95, %s96, %s97
      %p101 = pneg %p95
      %p102 = scmp.eq.s32.totalorder %s11, 3
      %p103 = por %p101, %p102
      %p104 = scmp.ne.s32.totalorder %s96, %s99
      %p105 = scmp.eq.s32.totalorder %s11, 0
      %p106 = por %p104, %p105
      %p107 = scmp.ne.s32.totalorder %s96, %s99
      %p108 = scmp.eq.s32.totalorder %s16, 3
      %p109 = por %p107, %p108
      %p110 = scmp.ne.s32.totalorder %s99, %s100
      %p111 = scmp.eq.s32.totalorder %s16, 0
      %p112 = por %p110, %p111
      %p113 = scmp.ne.s32.totalorder %s99, %s100
      %p114 = scmp.eq.s32.totalorder %s17, 3
      %p115 = por %p113, %p114
      %p117 = scmp.ne.s32.totalorder %s100, %s116
      %p118 = scmp.eq.s32.totalorder %s17, 0
      %p119 = por %p117, %p118
      %s121 = sadd.s32 %s120, 1
      %p124 = scmp.eq.s32.totalorder %s11, 3
      %p125 = scmp.ne.s32.totalorder %s120, %s122
      %p126 = scmp.eq.s32.totalorder %s11, 0
      %p127 = por %p125, %p126
      %p128 = scmp.ne.s32.totalorder %s120, %s122
      %p129 = scmp.eq.s32.totalorder %s16, 3
      %p130 = por %p128, %p129
      %p131 = scmp.ne.s32.totalorder %s122, %s123
      %p132 = scmp.eq.s32.totalorder %s16, 0
      %p133 = por %p131, %p132
      %p134 = scmp.ne.s32.totalorder %s122, %s123
      %p135 = scmp.eq.s32.totalorder %s17, 3
      %p136 = por %p134, %p135
      %p138 = scmp.ne.s32.totalorder %s123, %s137
      %p139 = scmp.eq.s32.totalorder %s17, 0
      %p140 = por %p138, %p139
      %s142 = sadd.s32 %s141, 1
      %p145 = scmp.eq.s32.totalorder %s11, 3
      %p146 = scmp.ne.s32.totalorder %s141, %s143
      %p147 = scmp.eq.s32.totalorder %s11, 0
      %p148 = por %p146, %p147
      %p149 = scmp.ne.s32.totalorder %s141, %s143
      %p150 = scmp.eq.s32.totalorder %s16, 3
      %p151 = por %p149, %p150
      %p152 = scmp.ne.s32.totalorder %s143, %s144
      %p153 = scmp.eq.s32.totalorder %s16, 0
      %p154 = por %p152, %p153
      %p155 = scmp.ne.s32.totalorder %s143, %s144
      %p156 = scmp.eq.s32.totalorder %s17, 3
      %p157 = por %p155, %p156
      %p159 = scmp.ne.s32.totalorder %s144, %s158
      %p160 = scmp.eq.s32.totalorder %s17, 0
      %p161 = por %p159, %p160
      %s162 = ssub.s32 %s18, %s37
      %s163 = ssub.s32 %s19, %s33
      %s164 = sor.u32 %s162, %s163
      %p165 = scmp.eq.s32.totalorder %s164, 0
      %s167 = sadd.s32 %s166, 1
      %s168 = scalar_select %p165, %s166, %s167
      %p171 = pneg %p165
      %p172 = scmp.eq.s32.totalorder %s11, 3
      %p173 = por %p171, %p172
      %p174 = scmp.ne.s32.totalorder %s166, %s169
      %p175 = scmp.eq.s32.totalorder %s11, 0
      %p176 = por %p174, %p175
      %p177 = scmp.ne.s32.totalorder %s166, %s169
      %p178 = scmp.eq.s32.totalorder %s16, 3
      %p179 = por %p177, %p178
      %p180 = scmp.ne.s32.totalorder %s169, %s170
      %p181 = scmp.eq.s32.totalorder %s16, 0
      %p182 = por %p180, %p181
      %p183 = scmp.ne.s32.totalorder %s169, %s170
      %p184 = scmp.eq.s32.totalorder %s17, 3
      %p185 = por %p183, %p184
      %p187 = scmp.ne.s32.totalorder %s170, %s186
      %p188 = scmp.eq.s32.totalorder %s17, 0
      %p189 = por %p187, %p188
      %p190 = scmp.le.s32.totalorder 1, %s11
      %p191 = scmp.lt.s32.totalorder %s11, 5
      %p192 = pnand %p190, %p191
      %p193 = pneg %p192
      // Predicated region
      $region9: #{vision_transformer.17} parent=5 // pred_check
        _
      $region10: #{vision_transformer.17} parent=5 // pred_check_branch
        %195 = sbr.rel (%p192) target = $region12
      $region11: #{vision_transformer.17} parent=5 // pred_region
        %s196 = ssub.s32 %s11, 1
        // Predicated region
        $region13: #{vision_transformer.17} parent=11 // pred_check
          %p197 = pneg %p58
        $region14: #{vision_transformer.17} parent=11 // pred_check_branch
          %199 = sbr.rel (%p197) target = $region16
        $region15: #{vision_transformer.17} parent=11 // pred_region
          %s200 = smul.u32 4, %s21
          %p201 = scmp.lt.s32.totalorder %s200, 3
          %s202 = scalar_select %p201, %s200, 3
          %p203 = scmp.lt.s32.totalorder %s23, 0
          %s204 = scalar_select %p203, %s23, 0
          %s205 = sadd.s32 %s204, %s202
          %s206 = smul.addr %s205, 4
          %s207 = scalar_lea.vmem %s0, %s206
          %s208 = smul.u32 4, %s21
        $region16: #{vision_transformer.17} parent=11 // pred_fallthru
          _
        // Predicated region
        $region17: #{vision_transformer.17} parent=11 // pred_check
          %p209 = pneg %p133
        $region18: #{vision_transformer.17} parent=11 // pred_check_branch
          %211 = sbr.rel (%p209) target = $region20
        $region19: #{vision_transformer.17} parent=11 // pred_region
          _
        $region20: #{vision_transformer.17} parent=11 // pred_fallthru
          _
        // Predicated region
        $region21: #{vision_transformer.17} parent=11 // pred_check
          %p212 = pneg %p154
        $region22: #{vision_transformer.17} parent=11 // pred_check_branch
          %214 = sbr.rel (%p212) target = $region24
        $region23: #{vision_transformer.17} parent=11 // pred_region
          _
        $region24: #{vision_transformer.17} parent=11 // pred_fallthru
          _
      $region12: #{vision_transformer.17} parent=5 // pred_fallthru
        _
      %p215 = scmp.lt.s32.totalorder %s11, 4
      // Predicated region
      $region25: #{vision_transformer.17} parent=5 // pred_check
        %p216 = pneg %p215
      $region26: #{vision_transformer.17} parent=5 // pred_check_branch
        %218 = sbr.rel (%p216) target = $region28
      $region27: #{vision_transformer.17} parent=5 // pred_region
        // Predicated region
        $region29: #{vision_transformer.17} parent=27 // pred_check
          %p219 = pneg %p80
        $region30: #{vision_transformer.17} parent=27 // pred_check_branch
          %221 = sbr.rel (%p219) target = $region32
        $region31: #{vision_transformer.17} parent=27 // pred_region
          %s222 = sand.u32 %s70, 1
          %s223 = sand.u32 %s70, 1
          %s224 = smul.addr %s223, 128
          %s225 = scalar_lea.vmem [#allocation3], %s224
          %s226 = smul.u32 8, %s20
          %s227 = smul.u32 4, %s19
          %s228 = smul.addr %s226, 16
          %s229 = sadd.s32 %s227, %s228
          %s230 = smul.addr %s229, 4
          %s231 = scalar_lea.vmem %s1, %s230
          // Predicated region
          $region33: #{vision_transformer.17} parent=31 // pred_check
            _
          $region34: #{vision_transformer.17} parent=31 // pred_check_branch
            %233 = sbr.rel (0) target = $region36
          $region35: #{vision_transformer.17} parent=31 // pred_region
            // Predicated region
            $region37: #{vision_transformer.17} parent=35 // pred_check
              _
            $region38: #{vision_transformer.17} parent=35 // pred_check_branch
              %235 = sbr.rel (0) target = $region40
            $region39: #{vision_transformer.17} parent=35 // pred_region
              loop: start=0, step=1, limit=1
              $region41: #{vision_transformer.17} parent=39 // loop_pre_header
                _
              $region42: #{vision_transformer.17} parent=39 // loop_header
                %s237 = sphi 0, %s241
                %p238 = scmp.ge.s32.totalorder %s237, 1
                %s242 = sphi %s231, %s231
                %s243 = sphi %s225, %s225
              $region43: #{vision_transformer.17} parent=39 // loop_header_branch
                %240 = sbr.rel (%p238) target = $region47
              $region44: #{vision_transformer.17} parent=39 // loop_body
                %v244 = vld [vmem:[%s242] sm:$0xff]
                %245 = vst [vmem:[%s243] sm:$0xff] %v244
                %v246 = vld [vmem:[%s242 + $0x8] sm:$0xff]
                %247 = vst [vmem:[%s243 + $0x8] sm:$0xff] %v246
                %v248 = vld [vmem:[%s242 + $0x40] sm:$0xff]
                %249 = vst [vmem:[%s243 + $0x10] sm:$0xff] %v248
                %v250 = vld [vmem:[%s242 + $0x48] sm:$0xff]
                %251 = vst [vmem:[%s243 + $0x18] sm:$0xff] %v250
                %v252 = vld [vmem:[%s242 + $0x80] sm:$0xff]
                %253 = vst [vmem:[%s243 + $0x20] sm:$0xff] %v252
                %v254 = vld [vmem:[%s242 + $0x88] sm:$0xff]
                %255 = vst [vmem:[%s243 + $0x28] sm:$0xff] %v254
                %v256 = vld [vmem:[%s242 + $0xc0] sm:$0xff]
                %257 = vst [vmem:[%s243 + $0x30] sm:$0xff] %v256
                %v258 = vld [vmem:[%s242 + $0xc8] sm:$0xff]
                %259 = vst [vmem:[%s243 + $0x38] sm:$0xff] %v258
                %v260 = vld [vmem:[%s242 + $0x100] sm:$0xff]
                %261 = vst [vmem:[%s243 + $0x40] sm:$0xff] %v260
                %v262 = vld [vmem:[%s242 + $0x108] sm:$0xff]
                %263 = vst [vmem:[%s243 + $0x48] sm:$0xff] %v262
                %v264 = vld [vmem:[%s242 + $0x140] sm:$0xff]
                %265 = vst [vmem:[%s243 + $0x50] sm:$0xff] %v264
                %v266 = vld [vmem:[%s242 + $0x148] sm:$0xff]
                %267 = vst [vmem:[%s243 + $0x58] sm:$0xff] %v266
                %v268 = vld [vmem:[%s242 + $0x180] sm:$0xff]
                %269 = vst [vmem:[%s243 + $0x60] sm:$0xff] %v268
                %v270 = vld [vmem:[%s242 + $0x188] sm:$0xff]
                %271 = vst [vmem:[%s243 + $0x68] sm:$0xff] %v270
                %v272 = vld [vmem:[%s242 + $0x1c0] sm:$0xff]
                %273 = vst [vmem:[%s243 + $0x70] sm:$0xff] %v272
                %v274 = vld [vmem:[%s242 + $0x1c8] sm:$0xff]
                %275 = vst [vmem:[%s243 + $0x78] sm:$0xff] %v274
              $region45: #{vision_transformer.17} parent=39 // loop_footer
                %s241 = sadd.s32 1, %s237
              $region46: #{vision_transformer.17} parent=39 // loop_footer_branch
                %236 = sbr.rel target = $region42
              $region47: #{vision_transformer.17} parent=39 // loop_exit
                _
            $region40: #{vision_transformer.17} parent=35 // pred_fallthru
              _
            // Predicated region
            $region48: #{vision_transformer.17} parent=35 // pred_check
              _
            $region49: #{vision_transformer.17} parent=35 // pred_check_branch
              %277 = sbr.rel target = $region51
            $region50: #{vision_transformer.17} parent=35 // pred_region
              _
            $region51: #{vision_transformer.17} parent=35 // pred_fallthru
              _
          $region36: #{vision_transformer.17} parent=31 // pred_fallthru
            _
          %278 = vnop
        $region32: #{vision_transformer.17} parent=27 // pred_fallthru
          _
        // Predicated region
        $region52: #{vision_transformer.17} parent=27 // pred_check
          %p279 = pneg %p106
        $region53: #{vision_transformer.17} parent=27 // pred_check_branch
          %281 = sbr.rel (%p279) target = $region55
        $region54: #{vision_transformer.17} parent=27 // pred_region
          %s282 = smul.u32 4, %s19
          %p283 = scmp.lt.s32.totalorder %s282, 15
          %s284 = scalar_select %p283, %s282, 15
          %s285 = scalar_lea.vmem %s2, %s284
          %s286 = smul.u32 4, %s19
        $region55: #{vision_transformer.17} parent=27 // pred_fallthru
          _
      $region28: #{vision_transformer.17} parent=5 // pred_fallthru
        _
      %p287 = scmp.le.s32.totalorder 1, %s11
      %p288 = scmp.lt.s32.totalorder %s11, 5
      %p289 = pnand %p287, %p288
      %p290 = pneg %p289
      // Predicated region
      $region56: #{vision_transformer.17} parent=5 // pred_check
        _
      $region57: #{vision_transformer.17} parent=5 // pred_check_branch
        %292 = sbr.rel (%p289) target = $region59
      $region58: #{vision_transformer.17} parent=5 // pred_region
        %s293 = ssub.s32 %s11, 1
        %s294 = sand.u32 %s73, 1
        %s295 = sand.u32 %s73, 1
        %s296 = smul.addr %s295, 128
        %s297 = scalar_lea.vmem [#allocation3], %s296
        // Predicated region
        $region60: #{vision_transformer.17} parent=58 // pred_check
          %p298 = pneg %p86
        $region61: #{vision_transformer.17} parent=58 // pred_check_branch
          %300 = sbr.rel (%p298) target = $region63
        $region62: #{vision_transformer.17} parent=58 // pred_region
          _
        $region63: #{vision_transformer.17} parent=58 // pred_fallthru
          _
        %s301 = smul.u32 4, %s21
        %p302 = scmp.lt.s32.totalorder %s301, 3
        %s303 = scalar_select %p302, %s301, 3
        %p304 = scmp.lt.s32.totalorder %s23, 0
        %s305 = scalar_select %p304, %s23, 0
        %s306 = sadd.s32 %s305, %s303
        %s307 = smul.addr %s306, 4
        %s308 = scalar_lea.vmem %s0, %s307
        %p309 = pneg %p58
        %p310 = pneg %p55
        %s311 = sand.u32 %s73, 1
        %s312 = sand.u32 %s73, 1
        %s313 = smul.addr %s312, 128
        %s314 = scalar_lea.vmem [#allocation3], %s313
        %p315 = pneg %p86
        %p316 = pneg %p83
        %s317 = smul.u32 4, %s22
        %p318 = scmp.lt.s32.totalorder %s317, 15
        %s319 = scalar_select %p318, %s317, 15
        %s320 = scalar_lea.vmem %s2, %s319
        %p321 = pneg %p112
        %p322 = pneg %p109
        %p323 = pneg %p133
        %p324 = pneg %p130
        %p325 = pneg %p154
        %p326 = pneg %p151
        %p327 = pneg %p182
        %p328 = pneg %p179
        %s329 = sand.u32 %s169, 1
        %s330 = sand.u32 %s169, 1
        %s331 = smul.addr %s330, 64
        %s332 = scalar_lea.vmem [#allocation4], %s331
        %s333 = smul.u32 4, %s21
        %p334 = scmp.lt.s32.totalorder %s333, 3
        %s335 = scalar_select %p334, %s333, 3
        %p336 = scmp.lt.s32.totalorder %s23, 0
        %s337 = scalar_select %p336, %s23, 0
        %s338 = sadd.s32 %s337, %s335
        %s339 = smul.addr %s338, 4
        %s340 = scalar_lea.vmem %s0, %s339
        %s341 = smul.u32 4, %s21
        %s342 = smul.u32 8, %s23
        %s343 = smul.u32 4, %s22
        %s344 = smul.u32 4, %s22
        %p345 = scmp.lt.s32.totalorder %s344, 15
        %s346 = scalar_select %p345, %s344, 15
        %s347 = scalar_lea.vmem %s2, %s346
        %s348 = smul.u32 4, %s22
        %s349 = smul.u32 4, %s21
        %s350 = smul.u32 4, %s22
        %p352 = scmp.eq.s32.totalorder %s22, 0
        // Predicated region
        $region64: #{vision_transformer.17} parent=58 // pred_check
          %p353 = pneg %p352
        $region65: #{vision_transformer.17} parent=58 // pred_check_branch
          %355 = sbr.rel (%p353) target = $region67
        $region66: #{vision_transformer.17} parent=58 // pred_region
          %v356 = vld [vmem:[%s340] sm:$0xf]
          %v357 = vld [vmem:[%s340 + $0x4] sm:$0xf]
          %v358 = vld [vmem:[%s340 + $0x8] sm:$0xf]
          %v359 = vld [vmem:[%s340 + $0xc] sm:$0xf]
          %v360 = vunpack.c.l.bf16 %v356
          %v361 = vunpack.c.l.bf16 %v357
          %v362 = vunpack.c.l.bf16 %v358
          %v363 = vunpack.c.l.bf16 %v359
          %vm364 = vcmask 523264
          %v365 = vsel %vm364, %v360, 0.0
          %366 = vadd.xlane.f32.xlu0 %v365
          %v367 = vpop.xlane.xlu0 %366
          %v368 = vsel %vm364, %v361, 0.0
          %369 = vadd.xlane.f32.xlu0 %v368
          %v370 = vpop.xlane.xlu0 %369
          %v371 = vsel %vm364, %v362, 0.0
          %372 = vadd.xlane.f32.xlu0 %v371
          %v373 = vpop.xlane.xlu0 %372
          %v374 = vsel %vm364, %v363, 0.0
          %375 = vadd.xlane.f32.xlu0 %v374
          %v376 = vpop.xlane.xlu0 %375
          %v377 = vrcp.pop 64.0
          %v378 = vmul.f32 64.0, %v377
          %v379 = vsub.f32 1.0, %v378
          %v380 = vmul.f32 %v377, %v379
          %v381 = vadd.f32 %v377, %v380
          %vm382 = vweird.f32 %v377
          %v383 = vsel %vm382, %v377, %v381
          %v384 = vmul.f32 %v367, %v383
          %v385 = vmul.f32 %v370, %v383
          %v386 = vmul.f32 %v373, %v383
          %v387 = vmul.f32 %v376, %v383
          %v388 = vsub.f32 %v360, %v384
          %v389 = vsub.f32 %v361, %v385
          %v390 = vsub.f32 %v362, %v386
          %v391 = vsub.f32 %v363, %v387
          %v392 = vmul.f32 %v388, %v388
          %v393 = vmul.f32 %v389, %v389
          %v394 = vmul.f32 %v390, %v390
          %v395 = vmul.f32 %v391, %v391
          %v396 = vsel %vm364, %v392, 0.0
          %397 = vadd.xlane.f32.xlu0 %v396
          %v398 = vpop.xlane.xlu0 %397
          %v399 = vsel %vm364, %v393, 0.0
          %400 = vadd.xlane.f32.xlu0 %v399
          %v401 = vpop.xlane.xlu0 %400
          %v402 = vsel %vm364, %v394, 0.0
          %403 = vadd.xlane.f32.xlu0 %v402
          %v404 = vpop.xlane.xlu0 %403
          %v405 = vsel %vm364, %v395, 0.0
          %406 = vadd.xlane.f32.xlu0 %v405
          %v407 = vpop.xlane.xlu0 %406
          %v408 = vmul.f32 %v398, %v383
          %v409 = vmul.f32 %v401, %v383
          %v410 = vmul.f32 %v404, %v383
          %v411 = vmul.f32 %v407, %v383
          %v412 = vadd.f32 %v408, 1e-05
          %v413 = vadd.f32 %v409, 1e-05
          %v414 = vadd.f32 %v410, 1e-05
          %v415 = vadd.f32 %v411, 1e-05
          %v416 = vrsqrt.pop %v412
          %v417 = vmul.f32 %v416, %v412
          %v418 = vmul.f32 %v417, %v416
          %v419 = vmul.f32 0.5, %v418
          %v420 = vsub.f32 1.5, %v419
          %v421 = vmul.f32 %v416, %v420
          %vm422 = vweird.f32 %v412
          %vm423 = vweird.f32 %v416
          %vm424 = vmor %vm422, %vm423
          %v425 = vsel %vm424, %v416, %v421
          %v426 = vrsqrt.pop %v413
          %v427 = vmul.f32 %v426, %v413
          %v428 = vmul.f32 %v427, %v426
          %v429 = vmul.f32 0.5, %v428
          %v430 = vsub.f32 1.5, %v429
          %v431 = vmul.f32 %v426, %v430
          %vm432 = vweird.f32 %v413
          %vm433 = vweird.f32 %v426
          %vm434 = vmor %vm432, %vm433
          %v435 = vsel %vm434, %v426, %v431
          %v436 = vrsqrt.pop %v414
          %v437 = vmul.f32 %v436, %v414
          %v438 = vmul.f32 %v437, %v436
          %v439 = vmul.f32 0.5, %v438
          %v440 = vsub.f32 1.5, %v439
          %v441 = vmul.f32 %v436, %v440
          %vm442 = vweird.f32 %v414
          %vm443 = vweird.f32 %v436
          %vm444 = vmor %vm442, %vm443
          %v445 = vsel %vm444, %v436, %v441
          %v446 = vrsqrt.pop %v415
          %v447 = vmul.f32 %v446, %v415
          %v448 = vmul.f32 %v447, %v446
          %v449 = vmul.f32 0.5, %v448
          %v450 = vsub.f32 1.5, %v449
          %v451 = vmul.f32 %v446, %v450
          %vm452 = vweird.f32 %v415
          %vm453 = vweird.f32 %v446
          %vm454 = vmor %vm452, %vm453
          %v455 = vsel %vm454, %v446, %v451
          %v456 = vmul.f32 %v388, %v425
          %v457 = vmul.f32 %v389, %v435
          %v458 = vmul.f32 %v390, %v445
          %v459 = vmul.f32 %v391, %v455
          %v460 = vld [vmem:[%s3] sm:$0x1]
          %v462 = vperm.slane %v460, 0
          %v464 = vmul.f32 %v456, %v462
          %v465 = vmul.f32 %v457, %v462
          %v466 = vmul.f32 %v458, %v462
          %v467 = vmul.f32 %v459, %v462
          %v468 = vld [vmem:[%s4] sm:$0x1]
          %v470 = vperm.slane %v468, 0
          %v472 = vadd.f32 %v464, %v470
          %v473 = vadd.f32 %v465, %v470
          %v474 = vadd.f32 %v466, %v470
          %v475 = vadd.f32 %v467, %v470
          %v476 = vpack.c.bf16 %v472, %v472
          %v477 = vpack.c.bf16 %v473, %v473
          %v478 = vpack.c.bf16 %v474, %v474
          %v479 = vpack.c.bf16 %v475, %v475
          %vm480 = vcmask 519168
          %481 = vst.msk [vmem:[#allocation2] sm:$0xf] %vm480, %v476
          %482 = vst.msk [vmem:[#allocation2 + $0x4] sm:$0xf] %vm480, %v477
          %483 = vst.msk [vmem:[#allocation2 + $0x8] sm:$0xf] %vm480, %v478
          %484 = vst.msk [vmem:[#allocation2 + $0xc] sm:$0xf] %vm480, %v479
        $region67: #{vision_transformer.17} parent=58 // pred_fallthru
          _
        %v485 = vld [vmem:[#allocation2] sm:$0xf]
        %v486 = vld [vmem:[#allocation2 + $0x4] sm:$0xf]
        %v487 = vld [vmem:[#allocation2 + $0x8] sm:$0xf]
        %v488 = vld [vmem:[#allocation2 + $0xc] sm:$0xf]
        %v489 = vld [vmem:[%s297] sm:$0xff]
        %v490 = vld [vmem:[%s297 + $0x8] sm:$0xff]
        %v491 = vld [vmem:[%s297 + $0x10] sm:$0xff]
        %v492 = vld [vmem:[%s297 + $0x18] sm:$0xff]
        %v493 = vld [vmem:[%s297 + $0x20] sm:$0xff]
        %v494 = vld [vmem:[%s297 + $0x28] sm:$0xff]
        %v495 = vld [vmem:[%s297 + $0x30] sm:$0xff]
        %v496 = vld [vmem:[%s297 + $0x38] sm:$0xff]
        %v497 = vld [vmem:[%s297 + $0x40] sm:$0xff]
        %v498 = vld [vmem:[%s297 + $0x48] sm:$0xff]
        %v499 = vld [vmem:[%s297 + $0x50] sm:$0xff]
        %v500 = vld [vmem:[%s297 + $0x58] sm:$0xff]
        %v501 = vld [vmem:[%s297 + $0x60] sm:$0xff]
        %v502 = vld [vmem:[%s297 + $0x68] sm:$0xff]
        %v503 = vld [vmem:[%s297 + $0x70] sm:$0xff]
        %v504 = vld [vmem:[%s297 + $0x78] sm:$0xff]
        %v505 = vld [vmem:[%s347] sm:$0xf]
        %v507 = vperm.slane %v505, 0
        %v508 = vperm.slane %v505, 1
        %v509 = vperm.slane %v505, 2
        %v510 = vperm.slane %v505, 3
        %v519 = vunpack.c.l.b16 %v485
        %v520 = vunpack.c.l.b16 %v486
        %v521 = vunpack.c.l.b16 %v487
        %v522 = vunpack.c.l.b16 %v488
        %v523 = vpack.c.b16 %v520, %v519
        %v524 = vpack.c.b16 %v522, %v521
        %v541 = vunpack.c.l.b16 %v489
        %v542 = vunpack.c.h.b16 %v489
        %v543 = vunpack.c.l.b16 %v490
        %v544 = vunpack.c.h.b16 %v490
        %v545 = vunpack.c.l.b16 %v491
        %v546 = vunpack.c.h.b16 %v491
        %v547 = vunpack.c.l.b16 %v492
        %v548 = vunpack.c.h.b16 %v492
        %v549 = vunpack.c.l.b16 %v493
        %v550 = vunpack.c.h.b16 %v493
        %v551 = vunpack.c.l.b16 %v494
        %v552 = vunpack.c.h.b16 %v494
        %v553 = vunpack.c.l.b16 %v495
        %v554 = vunpack.c.h.b16 %v495
        %v555 = vunpack.c.l.b16 %v496
        %v556 = vunpack.c.h.b16 %v496
        %v557 = vunpack.c.l.b16 %v497
        %v558 = vunpack.c.h.b16 %v497
        %v559 = vunpack.c.l.b16 %v498
        %v560 = vunpack.c.h.b16 %v498
        %v561 = vunpack.c.l.b16 %v499
        %v562 = vunpack.c.h.b16 %v499
        %v563 = vunpack.c.l.b16 %v500
        %v564 = vunpack.c.h.b16 %v500
        %v565 = vunpack.c.l.b16 %v501
        %v566 = vunpack.c.h.b16 %v501
        %v567 = vunpack.c.l.b16 %v502
        %v568 = vunpack.c.h.b16 %v502
        %v569 = vunpack.c.l.b16 %v503
        %v570 = vunpack.c.h.b16 %v503
        %v571 = vunpack.c.l.b16 %v504
        %v572 = vunpack.c.h.b16 %v504
        %v573 = vpack.c.b16 %v545, %v541
        %v574 = vpack.c.b16 %v546, %v542
        %v575 = vpack.c.b16 %v547, %v543
        %v576 = vpack.c.b16 %v548, %v544
        %v577 = vpack.c.b16 %v553, %v549
        %v578 = vpack.c.b16 %v554, %v550
        %v579 = vpack.c.b16 %v555, %v551
        %v580 = vpack.c.b16 %v556, %v552
        %v581 = vpack.c.b16 %v561, %v557
        %v582 = vpack.c.b16 %v562, %v558
        %v583 = vpack.c.b16 %v563, %v559
        %v584 = vpack.c.b16 %v564, %v560
        %v585 = vpack.c.b16 %v569, %v565
        %v586 = vpack.c.b16 %v570, %v566
        %v587 = vpack.c.b16 %v571, %v567
        %v588 = vpack.c.b16 %v572, %v568
        %vm605 = vcmask 523264
        %v607 = vsel %vm605, %v523, 0
        %v610 = vsel %vm605, %v524, 0
        %612 = vmatpush.bf16.msra.mxu0 0
        %613 = vmatpush.bf16.msra.mxu0 0
        %614 = vmatpush.bf16.msra.mxu0 0
        %615 = vmatpush.bf16.msra.mxu0 0
        %616 = vmatpush.bf16.msra.mxu0 %v585
        %617 = vmatpush.bf16.msra.mxu0 %v581
        %618 = vmatpush.bf16.msra.mxu0 %v577
        %619 = vmatpush.bf16.msra.mxu0 %v573
        %620 = vmatmul.bf16.gmra.mxu0 %v607
        %v621 = vpop.f32.mrf.mxu0
        %v622 = vadd.f32 %v507, %v621
        %v623 = vpop.f32.mrf.mxu0
        %v624 = vadd.f32 %v507, %v623
        %625 = vmatmul.bf16.gmra.mxu0 %v610
        %v626 = vpop.f32.mrf.mxu0
        %v627 = vadd.f32 %v507, %v626
        %v628 = vpop.f32.mrf.mxu0
        %v629 = vadd.f32 %v507, %v628
        %630 = vdwg.mxu0
        %631 = vmatpush.bf16.msra.mxu0 0
        %632 = vmatpush.bf16.msra.mxu0 0
        %633 = vmatpush.bf16.msra.mxu0 0
        %634 = vmatpush.bf16.msra.mxu0 0
        %635 = vmatpush.bf16.msra.mxu0 %v586
        %636 = vmatpush.bf16.msra.mxu0 %v582
        %637 = vmatpush.bf16.msra.mxu0 %v578
        %638 = vmatpush.bf16.msra.mxu0 %v574
        %639 = vmatmul.bf16.gmra.mxu0 %v607
        %v640 = vpop.f32.mrf.mxu0
        %v641 = vadd.f32 %v508, %v640
        %v642 = vpop.f32.mrf.mxu0
        %v643 = vadd.f32 %v508, %v642
        %644 = vmatmul.bf16.gmra.mxu0 %v610
        %v645 = vpop.f32.mrf.mxu0
        %v646 = vadd.f32 %v508, %v645
        %v647 = vpop.f32.mrf.mxu0
        %v648 = vadd.f32 %v508, %v647
        %649 = vdwg.mxu0
        %650 = vmatpush.bf16.msra.mxu0 0
        %651 = vmatpush.bf16.msra.mxu0 0
        %652 = vmatpush.bf16.msra.mxu0 0
        %653 = vmatpush.bf16.msra.mxu0 0
        %654 = vmatpush.bf16.msra.mxu0 %v587
        %655 = vmatpush.bf16.msra.mxu0 %v583
        %656 = vmatpush.bf16.msra.mxu0 %v579
        %657 = vmatpush.bf16.msra.mxu0 %v575
        %658 = vmatmul.bf16.gmra.mxu0 %v607
        %v659 = vpop.f32.mrf.mxu0
        %v660 = vadd.f32 %v509, %v659
        %v661 = vpop.f32.mrf.mxu0
        %v662 = vadd.f32 %v509, %v661
        %663 = vmatmul.bf16.gmra.mxu0 %v610
        %v664 = vpop.f32.mrf.mxu0
        %v665 = vadd.f32 %v509, %v664
        %v666 = vpop.f32.mrf.mxu0
        %v667 = vadd.f32 %v509, %v666
        %668 = vdwg.mxu0
        %669 = vmatpush.bf16.msra.mxu0 0
        %670 = vmatpush.bf16.msra.mxu0 0
        %671 = vmatpush.bf16.msra.mxu0 0
        %672 = vmatpush.bf16.msra.mxu0 0
        %673 = vmatpush.bf16.msra.mxu0 %v588
        %674 = vmatpush.bf16.msra.mxu0 %v584
        %675 = vmatpush.bf16.msra.mxu0 %v580
        %676 = vmatpush.bf16.msra.mxu0 %v576
        %677 = vmatmul.bf16.gmra.mxu0 %v607
        %v678 = vpop.f32.mrf.mxu0
        %v679 = vadd.f32 %v510, %v678
        %v680 = vpop.f32.mrf.mxu0
        %v681 = vadd.f32 %v510, %v680
        %682 = vmatmul.bf16.gmra.mxu0 %v610
        %v683 = vpop.f32.mrf.mxu0
        %v684 = vadd.f32 %v510, %v683
        %v685 = vpop.f32.mrf.mxu0
        %v686 = vadd.f32 %v510, %v685
        %687 = vdwg.mxu0
        %v688 = vmul.f32 %v622, 0.5
        %v689 = vmul.f32 %v641, 0.5
        %v690 = vmul.f32 %v660, 0.5
        %v691 = vmul.f32 %v679, 0.5
        %v692 = vmul.f32 %v624, 0.5
        %v693 = vmul.f32 %v643, 0.5
        %v694 = vmul.f32 %v662, 0.5
        %v695 = vmul.f32 %v681, 0.5
        %v696 = vmul.f32 %v627, 0.5
        %v697 = vmul.f32 %v646, 0.5
        %v698 = vmul.f32 %v665, 0.5
        %v699 = vmul.f32 %v684, 0.5
        %v700 = vmul.f32 %v629, 0.5
        %v701 = vmul.f32 %v648, 0.5
        %v702 = vmul.f32 %v667, 0.5
        %v703 = vmul.f32 %v686, 0.5
        %v704 = vmul.f32 %v622, 0.70710677
        %v705 = vmul.f32 %v641, 0.70710677
        %v706 = vmul.f32 %v660, 0.70710677
        %v707 = vmul.f32 %v679, 0.70710677
        %v708 = vmul.f32 %v624, 0.70710677
        %v709 = vmul.f32 %v643, 0.70710677
        %v710 = vmul.f32 %v662, 0.70710677
        %v711 = vmul.f32 %v681, 0.70710677
        %v712 = vmul.f32 %v627, 0.70710677
        %v713 = vmul.f32 %v646, 0.70710677
        %v714 = vmul.f32 %v665, 0.70710677
        %v715 = vmul.f32 %v684, 0.70710677
        %v716 = vmul.f32 %v629, 0.70710677
        %v717 = vmul.f32 %v648, 0.70710677
        %v718 = vmul.f32 %v667, 0.70710677
        %v719 = vmul.f32 %v686, 0.70710677
        %vm720 = vcmp.ge.f32.partialorder %v704, 0.0
        %vm721 = vcmp.ge.f32.partialorder %v705, 0.0
        %vm722 = vcmp.ge.f32.partialorder %v706, 0.0
        %vm723 = vcmp.ge.f32.partialorder %v707, 0.0
        %vm724 = vcmp.ge.f32.partialorder %v708, 0.0
        %vm725 = vcmp.ge.f32.partialorder %v709, 0.0
        %vm726 = vcmp.ge.f32.partialorder %v710, 0.0
        %vm727 = vcmp.ge.f32.partialorder %v711, 0.0
        %vm728 = vcmp.ge.f32.partialorder %v712, 0.0
        %vm729 = vcmp.ge.f32.partialorder %v713, 0.0
        %vm730 = vcmp.ge.f32.partialorder %v714, 0.0
        %vm731 = vcmp.ge.f32.partialorder %v715, 0.0
        %vm732 = vcmp.ge.f32.partialorder %v716, 0.0
        %vm733 = vcmp.ge.f32.partialorder %v717, 0.0
        %vm734 = vcmp.ge.f32.partialorder %v718, 0.0
        %vm735 = vcmp.ge.f32.partialorder %v719, 0.0
        %v736 = vsel %vm720, 1.0, -1.0
        %v737 = vsel %vm721, 1.0, -1.0
        %v738 = vsel %vm722, 1.0, -1.0
        %v739 = vsel %vm723, 1.0, -1.0
        %v740 = vsel %vm724, 1.0, -1.0
        %v741 = vsel %vm725, 1.0, -1.0
        %v742 = vsel %vm726, 1.0, -1.0
        %v743 = vsel %vm727, 1.0, -1.0
        %v744 = vsel %vm728, 1.0, -1.0
        %v745 = vsel %vm729, 1.0, -1.0
        %v746 = vsel %vm730, 1.0, -1.0
        %v747 = vsel %vm731, 1.0, -1.0
        %v748 = vsel %vm732, 1.0, -1.0
        %v749 = vsel %vm733, 1.0, -1.0
        %v750 = vsel %vm734, 1.0, -1.0
        %v751 = vsel %vm735, 1.0, -1.0
        %v752 = vand.u32 2147483647, %v704
        %v753 = vand.u32 2147483647, %v705
        %v754 = vand.u32 2147483647, %v706
        %v755 = vand.u32 2147483647, %v707
        %v756 = vand.u32 2147483647, %v708
        %v757 = vand.u32 2147483647, %v709
        %v758 = vand.u32 2147483647, %v710
        %v759 = vand.u32 2147483647, %v711
        %v760 = vand.u32 2147483647, %v712
        %v761 = vand.u32 2147483647, %v713
        %v762 = vand.u32 2147483647, %v714
        %v763 = vand.u32 2147483647, %v715
        %v764 = vand.u32 2147483647, %v716
        %v765 = vand.u32 2147483647, %v717
        %v766 = vand.u32 2147483647, %v718
        %v767 = vand.u32 2147483647, %v719
        %v768 = vmul.f32 %v752, 0.3275911
        %v769 = vmul.f32 %v753, 0.3275911
        %v770 = vmul.f32 %v754, 0.3275911
        %v771 = vmul.f32 %v755, 0.3275911
        %v772 = vmul.f32 %v756, 0.3275911
        %v773 = vmul.f32 %v757, 0.3275911
        %v774 = vmul.f32 %v758, 0.3275911
        %v775 = vmul.f32 %v759, 0.3275911
        %v776 = vmul.f32 %v760, 0.3275911
        %v777 = vmul.f32 %v761, 0.3275911
        %v778 = vmul.f32 %v762, 0.3275911
        %v779 = vmul.f32 %v763, 0.3275911
        %v780 = vmul.f32 %v764, 0.3275911
        %v781 = vmul.f32 %v765, 0.3275911
        %v782 = vmul.f32 %v766, 0.3275911
        %v783 = vmul.f32 %v767, 0.3275911
        %v784 = vadd.f32 %v768, 1.0
        %v785 = vadd.f32 %v769, 1.0
        %v786 = vadd.f32 %v770, 1.0
        %v787 = vadd.f32 %v771, 1.0
        %v788 = vadd.f32 %v772, 1.0
        %v789 = vadd.f32 %v773, 1.0
        %v790 = vadd.f32 %v774, 1.0
        %v791 = vadd.f32 %v775, 1.0
        %v792 = vadd.f32 %v776, 1.0
        %v793 = vadd.f32 %v777, 1.0
        %v794 = vadd.f32 %v778, 1.0
        %v795 = vadd.f32 %v779, 1.0
        %v796 = vadd.f32 %v780, 1.0
        %v797 = vadd.f32 %v781, 1.0
        %v798 = vadd.f32 %v782, 1.0
        %v799 = vadd.f32 %v783, 1.0
        %v800 = vrcp.pop %v784
        %v801 = vmul.f32 %v784, %v800
        %v802 = vsub.f32 1.0, %v801
        %v803 = vmul.f32 %v800, %v802
        %v804 = vadd.f32 %v800, %v803
        %vm805 = vweird.f32 %v784
        %vm806 = vweird.f32 %v800
        %vm807 = vmor %vm805, %vm806
        %v808 = vsel %vm807, %v800, %v804
        %v809 = vand.u32 2147483647, %v784
        %vm810 = vcmp.eq.f32.partialorder %v809, 8.507059e+37
        %v811 = vand.u32 %v784, 2147483648
        %v812 = vor.u32 1.1754944e-38, %v811
        %v813 = vsel %vm810, %v812, %v808
        %v814 = vmul.f32 1.0, %v813
        %v815 = vrcp.pop %v785
        %v816 = vmul.f32 %v785, %v815
        %v817 = vsub.f32 1.0, %v816
        %v818 = vmul.f32 %v815, %v817
        %v819 = vadd.f32 %v815, %v818
        %vm820 = vweird.f32 %v785
        %vm821 = vweird.f32 %v815
        %vm822 = vmor %vm820, %vm821
        %v823 = vsel %vm822, %v815, %v819
        %v824 = vand.u32 2147483647, %v785
        %vm825 = vcmp.eq.f32.partialorder %v824, 8.507059e+37
        %v826 = vand.u32 %v785, 2147483648
        %v827 = vor.u32 1.1754944e-38, %v826
        %v828 = vsel %vm825, %v827, %v823
        %v829 = vmul.f32 1.0, %v828
        %v830 = vrcp.pop %v786
        %v831 = vmul.f32 %v786, %v830
        %v832 = vsub.f32 1.0, %v831
        %v833 = vmul.f32 %v830, %v832
        %v834 = vadd.f32 %v830, %v833
        %vm835 = vweird.f32 %v786
        %vm836 = vweird.f32 %v830
        %vm837 = vmor %vm835, %vm836
        %v838 = vsel %vm837, %v830, %v834
        %v839 = vand.u32 2147483647, %v786
        %vm840 = vcmp.eq.f32.partialorder %v839, 8.507059e+37
        %v841 = vand.u32 %v786, 2147483648
        %v842 = vor.u32 1.1754944e-38, %v841
        %v843 = vsel %vm840, %v842, %v838
        %v844 = vmul.f32 1.0, %v843
        %v845 = vrcp.pop %v787
        %v846 = vmul.f32 %v787, %v845
        %v847 = vsub.f32 1.0, %v846
        %v848 = vmul.f32 %v845, %v847
        %v849 = vadd.f32 %v845, %v848
        %vm850 = vweird.f32 %v787
        %vm851 = vweird.f32 %v845
        %vm852 = vmor %vm850, %vm851
        %v853 = vsel %vm852, %v845, %v849
        %v854 = vand.u32 2147483647, %v787
        %vm855 = vcmp.eq.f32.partialorder %v854, 8.507059e+37
        %v856 = vand.u32 %v787, 2147483648
        %v857 = vor.u32 1.1754944e-38, %v856
        %v858 = vsel %vm855, %v857, %v853
        %v859 = vmul.f32 1.0, %v858
        %v860 = vrcp.pop %v788
        %v861 = vmul.f32 %v788, %v860
        %v862 = vsub.f32 1.0, %v861
        %v863 = vmul.f32 %v860, %v862
        %v864 = vadd.f32 %v860, %v863
        %vm865 = vweird.f32 %v788
        %vm866 = vweird.f32 %v860
        %vm867 = vmor %vm865, %vm866
        %v868 = vsel %vm867, %v860, %v864
        %v869 = vand.u32 2147483647, %v788
        %vm870 = vcmp.eq.f32.partialorder %v869, 8.507059e+37
        %v871 = vand.u32 %v788, 2147483648
        %v872 = vor.u32 1.1754944e-38, %v871
        %v873 = vsel %vm870, %v872, %v868
        %v874 = vmul.f32 1.0, %v873
        %v875 = vrcp.pop %v789
        %v876 = vmul.f32 %v789, %v875
        %v877 = vsub.f32 1.0, %v876
        %v878 = vmul.f32 %v875, %v877
        %v879 = vadd.f32 %v875, %v878
        %vm880 = vweird.f32 %v789
        %vm881 = vweird.f32 %v875
        %vm882 = vmor %vm880, %vm881
        %v883 = vsel %vm882, %v875, %v879
        %v884 = vand.u32 2147483647, %v789
        %vm885 = vcmp.eq.f32.partialorder %v884, 8.507059e+37
        %v886 = vand.u32 %v789, 2147483648
        %v887 = vor.u32 1.1754944e-38, %v886
        %v888 = vsel %vm885, %v887, %v883
        %v889 = vmul.f32 1.0, %v888
        %v890 = vrcp.pop %v790
        %v891 = vmul.f32 %v790, %v890
        %v892 = vsub.f32 1.0, %v891
        %v893 = vmul.f32 %v890, %v892
        %v894 = vadd.f32 %v890, %v893
        %vm895 = vweird.f32 %v790
        %vm896 = vweird.f32 %v890
        %vm897 = vmor %vm895, %vm896
        %v898 = vsel %vm897, %v890, %v894
        %v899 = vand.u32 2147483647, %v790
        %vm900 = vcmp.eq.f32.partialorder %v899, 8.507059e+37
        %v901 = vand.u32 %v790, 2147483648
        %v902 = vor.u32 1.1754944e-38, %v901
        %v903 = vsel %vm900, %v902, %v898
        %v904 = vmul.f32 1.0, %v903
        %v905 = vrcp.pop %v791
        %v906 = vmul.f32 %v791, %v905
        %v907 = vsub.f32 1.0, %v906
        %v908 = vmul.f32 %v905, %v907
        %v909 = vadd.f32 %v905, %v908
        %vm910 = vweird.f32 %v791
        %vm911 = vweird.f32 %v905
        %vm912 = vmor %vm910, %vm911
        %v913 = vsel %vm912, %v905, %v909
        %v914 = vand.u32 2147483647, %v791
        %vm915 = vcmp.eq.f32.partialorder %v914, 8.507059e+37
        %v916 = vand.u32 %v791, 2147483648
        %v917 = vor.u32 1.1754944e-38, %v916
        %v918 = vsel %vm915, %v917, %v913
        %v919 = vmul.f32 1.0, %v918
        %v920 = vrcp.pop %v792
        %v921 = vmul.f32 %v792, %v920
        %v922 = vsub.f32 1.0, %v921
        %v923 = vmul.f32 %v920, %v922
        %v924 = vadd.f32 %v920, %v923
        %vm925 = vweird.f32 %v792
        %vm926 = vweird.f32 %v920
        %vm927 = vmor %vm925, %vm926
        %v928 = vsel %vm927, %v920, %v924
        %v929 = vand.u32 2147483647, %v792
        %vm930 = vcmp.eq.f32.partialorder %v929, 8.507059e+37
        %v931 = vand.u32 %v792, 2147483648
        %v932 = vor.u32 1.1754944e-38, %v931
        %v933 = vsel %vm930, %v932, %v928
        %v934 = vmul.f32 1.0, %v933
        %v935 = vrcp.pop %v793
        %v936 = vmul.f32 %v793, %v935
        %v937 = vsub.f32 1.0, %v936
        %v938 = vmul.f32 %v935, %v937
        %v939 = vadd.f32 %v935, %v938
        %vm940 = vweird.f32 %v793
        %vm941 = vweird.f32 %v935
        %vm942 = vmor %vm940, %vm941
        %v943 = vsel %vm942, %v935, %v939
        %v944 = vand.u32 2147483647, %v793
        %vm945 = vcmp.eq.f32.partialorder %v944, 8.507059e+37
        %v946 = vand.u32 %v793, 2147483648
        %v947 = vor.u32 1.1754944e-38, %v946
        %v948 = vsel %vm945, %v947, %v943
        %v949 = vmul.f32 1.0, %v948
        %v950 = vrcp.pop %v794
        %v951 = vmul.f32 %v794, %v950
        %v952 = vsub.f32 1.0, %v951
        %v953 = vmul.f32 %v950, %v952
        %v954 = vadd.f32 %v950, %v953
        %vm955 = vweird.f32 %v794
        %vm956 = vweird.f32 %v950
        %vm957 = vmor %vm955, %vm956
        %v958 = vsel %vm957, %v950, %v954
        %v959 = vand.u32 2147483647, %v794
        %vm960 = vcmp.eq.f32.partialorder %v959, 8.507059e+37
        %v961 = vand.u32 %v794, 2147483648
        %v962 = vor.u32 1.1754944e-38, %v961
        %v963 = vsel %vm960, %v962, %v958
        %v964 = vmul.f32 1.0, %v963
        %v965 = vrcp.pop %v795
        %v966 = vmul.f32 %v795, %v965
        %v967 = vsub.f32 1.0, %v966
        %v968 = vmul.f32 %v965, %v967
        %v969 = vadd.f32 %v965, %v968
        %vm970 = vweird.f32 %v795
        %vm971 = vweird.f32 %v965
        %vm972 = vmor %vm970, %vm971
        %v973 = vsel %vm972, %v965, %v969
        %v974 = vand.u32 2147483647, %v795
        %vm975 = vcmp.eq.f32.partialorder %v974, 8.507059e+37
        %v976 = vand.u32 %v795, 2147483648
        %v977 = vor.u32 1.1754944e-38, %v976
        %v978 = vsel %vm975, %v977, %v973
        %v979 = vmul.f32 1.0, %v978
        %v980 = vrcp.pop %v796
        %v981 = vmul.f32 %v796, %v980
        %v982 = vsub.f32 1.0, %v981
        %v983 = vmul.f32 %v980, %v982
        %v984 = vadd.f32 %v980, %v983
        %vm985 = vweird.f32 %v796
        %vm986 = vweird.f32 %v980
        %vm987 = vmor %vm985, %vm986
        %v988 = vsel %vm987, %v980, %v984
        %v989 = vand.u32 2147483647, %v796
        %vm990 = vcmp.eq.f32.partialorder %v989, 8.507059e+37
        %v991 = vand.u32 %v796, 2147483648
        %v992 = vor.u32 1.1754944e-38, %v991
        %v993 = vsel %vm990, %v992, %v988
        %v994 = vmul.f32 1.0, %v993
        %v995 = vrcp.pop %v797
        %v996 = vmul.f32 %v797, %v995
        %v997 = vsub.f32 1.0, %v996
        %v998 = vmul.f32 %v995, %v997
        %v999 = vadd.f32 %v995, %v998
        %vm1000 = vweird.f32 %v797
        %vm1001 = vweird.f32 %v995
        %vm1002 = vmor %vm1000, %vm1001
        %v1003 = vsel %vm1002, %v995, %v999
        %v1004 = vand.u32 2147483647, %v797
        %vm1005 = vcmp.eq.f32.partialorder %v1004, 8.507059e+37
        %v1006 = vand.u32 %v797, 2147483648
        %v1007 = vor.u32 1.1754944e-38, %v1006
        %v1008 = vsel %vm1005, %v1007, %v1003
        %v1009 = vmul.f32 1.0, %v1008
        %v1010 = vrcp.pop %v798
        %v1011 = vmul.f32 %v798, %v1010
        %v1012 = vsub.f32 1.0, %v1011
        %v1013 = vmul.f32 %v1010, %v1012
        %v1014 = vadd.f32 %v1010, %v1013
        %vm1015 = vweird.f32 %v798
        %vm1016 = vweird.f32 %v1010
        %vm1017 = vmor %vm1015, %vm1016
        %v1018 = vsel %vm1017, %v1010, %v1014
        %v1019 = vand.u32 2147483647, %v798
        %vm1020 = vcmp.eq.f32.partialorder %v1019, 8.507059e+37
        %v1021 = vand.u32 %v798, 2147483648
        %v1022 = vor.u32 1.1754944e-38, %v1021
        %v1023 = vsel %vm1020, %v1022, %v1018
        %v1024 = vmul.f32 1.0, %v1023
        %v1025 = vrcp.pop %v799
        %v1026 = vmul.f32 %v799, %v1025
        %v1027 = vsub.f32 1.0, %v1026
        %v1028 = vmul.f32 %v1025, %v1027
        %v1029 = vadd.f32 %v1025, %v1028
        %vm1030 = vweird.f32 %v799
        %vm1031 = vweird.f32 %v1025
        %vm1032 = vmor %vm1030, %vm1031
        %v1033 = vsel %vm1032, %v1025, %v1029
        %v1034 = vand.u32 2147483647, %v799
        %vm1035 = vcmp.eq.f32.partialorder %v1034, 8.507059e+37
        %v1036 = vand.u32 %v799, 2147483648
        %v1037 = vor.u32 1.1754944e-38, %v1036
        %v1038 = vsel %vm1035, %v1037, %v1033
        %v1039 = vmul.f32 1.0, %v1038
        %v1040 = vmul.f32 %v814, 1.0614054
        %v1041 = vmul.f32 %v829, 1.0614054
        %v1042 = vmul.f32 %v844, 1.0614054
        %v1043 = vmul.f32 %v859, 1.0614054
        %v1044 = vmul.f32 %v874, 1.0614054
        %v1045 = vmul.f32 %v889, 1.0614054
        %v1046 = vmul.f32 %v904, 1.0614054
        %v1047 = vmul.f32 %v919, 1.0614054
        %v1048 = vmul.f32 %v934, 1.0614054
        %v1049 = vmul.f32 %v949, 1.0614054
        %v1050 = vmul.f32 %v964, 1.0614054
        %v1051 = vmul.f32 %v979, 1.0614054
        %v1052 = vmul.f32 %v994, 1.0614054
        %v1053 = vmul.f32 %v1009, 1.0614054
        %v1054 = vmul.f32 %v1024, 1.0614054
        %v1055 = vmul.f32 %v1039, 1.0614054
        %v1056 = vadd.f32 %v1040, -1.4531521
        %v1057 = vadd.f32 %v1041, -1.4531521
        %v1058 = vadd.f32 %v1042, -1.4531521
        %v1059 = vadd.f32 %v1043, -1.4531521
        %v1060 = vadd.f32 %v1044, -1.4531521
        %v1061 = vadd.f32 %v1045, -1.4531521
        %v1062 = vadd.f32 %v1046, -1.4531521
        %v1063 = vadd.f32 %v1047, -1.4531521
        %v1064 = vadd.f32 %v1048, -1.4531521
        %v1065 = vadd.f32 %v1049, -1.4531521
        %v1066 = vadd.f32 %v1050, -1.4531521
        %v1067 = vadd.f32 %v1051, -1.4531521
        %v1068 = vadd.f32 %v1052, -1.4531521
        %v1069 = vadd.f32 %v1053, -1.4531521
        %v1070 = vadd.f32 %v1054, -1.4531521
        %v1071 = vadd.f32 %v1055, -1.4531521
        %v1072 = vmul.f32 %v1056, %v814
        %v1073 = vmul.f32 %v1057, %v829
        %v1074 = vmul.f32 %v1058, %v844
        %v1075 = vmul.f32 %v1059, %v859
        %v1076 = vmul.f32 %v1060, %v874
        %v1077 = vmul.f32 %v1061, %v889
        %v1078 = vmul.f32 %v1062, %v904
        %v1079 = vmul.f32 %v1063, %v919
        %v1080 = vmul.f32 %v1064, %v934
        %v1081 = vmul.f32 %v1065, %v949
        %v1082 = vmul.f32 %v1066, %v964
        %v1083 = vmul.f32 %v1067, %v979
        %v1084 = vmul.f32 %v1068, %v994
        %v1085 = vmul.f32 %v1069, %v1009
        %v1086 = vmul.f32 %v1070, %v1024
        %v1087 = vmul.f32 %v1071, %v1039
        %v1088 = vadd.f32 %v1072, 1.4214138
        %v1089 = vadd.f32 %v1073, 1.4214138
        %v1090 = vadd.f32 %v1074, 1.4214138
        %v1091 = vadd.f32 %v1075, 1.4214138
        %v1092 = vadd.f32 %v1076, 1.4214138
        %v1093 = vadd.f32 %v1077, 1.4214138
        %v1094 = vadd.f32 %v1078, 1.4214138
        %v1095 = vadd.f32 %v1079, 1.4214138
        %v1096 = vadd.f32 %v1080, 1.4214138
        %v1097 = vadd.f32 %v1081, 1.4214138
        %v1098 = vadd.f32 %v1082, 1.4214138
        %v1099 = vadd.f32 %v1083, 1.4214138
        %v1100 = vadd.f32 %v1084, 1.4214138
        %v1101 = vadd.f32 %v1085, 1.4214138
        %v1102 = vadd.f32 %v1086, 1.4214138
        %v1103 = vadd.f32 %v1087, 1.4214138
        %v1104 = vmul.f32 %v1088, %v814
        %v1105 = vmul.f32 %v1089, %v829
        %v1106 = vmul.f32 %v1090, %v844
        %v1107 = vmul.f32 %v1091, %v859
        %v1108 = vmul.f32 %v1092, %v874
        %v1109 = vmul.f32 %v1093, %v889
        %v1110 = vmul.f32 %v1094, %v904
        %v1111 = vmul.f32 %v1095, %v919
        %v1112 = vmul.f32 %v1096, %v934
        %v1113 = vmul.f32 %v1097, %v949
        %v1114 = vmul.f32 %v1098, %v964
        %v1115 = vmul.f32 %v1099, %v979
        %v1116 = vmul.f32 %v1100, %v994
        %v1117 = vmul.f32 %v1101, %v1009
        %v1118 = vmul.f32 %v1102, %v1024
        %v1119 = vmul.f32 %v1103, %v1039
        %v1120 = vadd.f32 %v1104, -0.28449672
        %v1121 = vadd.f32 %v1105, -0.28449672
        %v1122 = vadd.f32 %v1106, -0.28449672
        %v1123 = vadd.f32 %v1107, -0.28449672
        %v1124 = vadd.f32 %v1108, -0.28449672
        %v1125 = vadd.f32 %v1109, -0.28449672
        %v1126 = vadd.f32 %v1110, -0.28449672
        %v1127 = vadd.f32 %v1111, -0.28449672
        %v1128 = vadd.f32 %v1112, -0.28449672
        %v1129 = vadd.f32 %v1113, -0.28449672
        %v1130 = vadd.f32 %v1114, -0.28449672
        %v1131 = vadd.f32 %v1115, -0.28449672
        %v1132 = vadd.f32 %v1116, -0.28449672
        %v1133 = vadd.f32 %v1117, -0.28449672
        %v1134 = vadd.f32 %v1118, -0.28449672
        %v1135 = vadd.f32 %v1119, -0.28449672
        %v1136 = vmul.f32 %v1120, %v814
        %v1137 = vmul.f32 %v1121, %v829
        %v1138 = vmul.f32 %v1122, %v844
        %v1139 = vmul.f32 %v1123, %v859
        %v1140 = vmul.f32 %v1124, %v874
        %v1141 = vmul.f32 %v1125, %v889
        %v1142 = vmul.f32 %v1126, %v904
        %v1143 = vmul.f32 %v1127, %v919
        %v1144 = vmul.f32 %v1128, %v934
        %v1145 = vmul.f32 %v1129, %v949
        %v1146 = vmul.f32 %v1130, %v964
        %v1147 = vmul.f32 %v1131, %v979
        %v1148 = vmul.f32 %v1132, %v994
        %v1149 = vmul.f32 %v1133, %v1009
        %v1150 = vmul.f32 %v1134, %v1024
        %v1151 = vmul.f32 %v1135, %v1039
        %v1152 = vadd.f32 %v1136, 0.2548296
        %v1153 = vadd.f32 %v1137, 0.2548296
        %v1154 = vadd.f32 %v1138, 0.2548296
        %v1155 = vadd.f32 %v1139, 0.2548296
        %v1156 = vadd.f32 %v1140, 0.2548296
        %v1157 = vadd.f32 %v1141, 0.2548296
        %v1158 = vadd.f32 %v1142, 0.2548296
        %v1159 = vadd.f32 %v1143, 0.2548296
        %v1160 = vadd.f32 %v1144, 0.2548296
        %v1161 = vadd.f32 %v1145, 0.2548296
        %v1162 = vadd.f32 %v1146, 0.2548296
        %v1163 = vadd.f32 %v1147, 0.2548296
        %v1164 = vadd.f32 %v1148, 0.2548296
        %v1165 = vadd.f32 %v1149, 0.2548296
        %v1166 = vadd.f32 %v1150, 0.2548296
        %v1167 = vadd.f32 %v1151, 0.2548296
        %v1168 = vmul.f32 %v1152, %v814
        %v1169 = vmul.f32 %v1153, %v829
        %v1170 = vmul.f32 %v1154, %v844
        %v1171 = vmul.f32 %v1155, %v859
        %v1172 = vmul.f32 %v1156, %v874
        %v1173 = vmul.f32 %v1157, %v889
        %v1174 = vmul.f32 %v1158, %v904
        %v1175 = vmul.f32 %v1159, %v919
        %v1176 = vmul.f32 %v1160, %v934
        %v1177 = vmul.f32 %v1161, %v949
        %v1178 = vmul.f32 %v1162, %v964
        %v1179 = vmul.f32 %v1163, %v979
        %v1180 = vmul.f32 %v1164, %v994
        %v1181 = vmul.f32 %v1165, %v1009
        %v1182 = vmul.f32 %v1166, %v1024
        %v1183 = vmul.f32 %v1167, %v1039
        %v1184 = vsub.f32 0.0, %v752
        %v1185 = vsub.f32 0.0, %v753
        %v1186 = vsub.f32 0.0, %v754
        %v1187 = vsub.f32 0.0, %v755
        %v1188 = vsub.f32 0.0, %v756
        %v1189 = vsub.f32 0.0, %v757
        %v1190 = vsub.f32 0.0, %v758
        %v1191 = vsub.f32 0.0, %v759
        %v1192 = vsub.f32 0.0, %v760
        %v1193 = vsub.f32 0.0, %v761
        %v1194 = vsub.f32 0.0, %v762
        %v1195 = vsub.f32 0.0, %v763
        %v1196 = vsub.f32 0.0, %v764
        %v1197 = vsub.f32 0.0, %v765
        %v1198 = vsub.f32 0.0, %v766
        %v1199 = vsub.f32 0.0, %v767
        %v1200 = vmul.f32 %v1184, %v752
        %v1201 = vmul.f32 %v1185, %v753
        %v1202 = vmul.f32 %v1186, %v754
        %v1203 = vmul.f32 %v1187, %v755
        %v1204 = vmul.f32 %v1188, %v756
        %v1205 = vmul.f32 %v1189, %v757
        %v1206 = vmul.f32 %v1190, %v758
        %v1207 = vmul.f32 %v1191, %v759
        %v1208 = vmul.f32 %v1192, %v760
        %v1209 = vmul.f32 %v1193, %v761
        %v1210 = vmul.f32 %v1194, %v762
        %v1211 = vmul.f32 %v1195, %v763
        %v1212 = vmul.f32 %v1196, %v764
        %v1213 = vmul.f32 %v1197, %v765
        %v1214 = vmul.f32 %v1198, %v766
        %v1215 = vmul.f32 %v1199, %v767
        %v1216 = vmul.f32 %v1200, 1.442695
        %v1217 = vpow.pop %v1216
        %v1218 = vmul.f32 %v1201, 1.442695
        %v1219 = vpow.pop %v1218
        %v1220 = vmul.f32 %v1202, 1.442695
        %v1221 = vpow.pop %v1220
        %v1222 = vmul.f32 %v1203, 1.442695
        %v1223 = vpow.pop %v1222
        %v1224 = vmul.f32 %v1204, 1.442695
        %v1225 = vpow.pop %v1224
        %v1226 = vmul.f32 %v1205, 1.442695
        %v1227 = vpow.pop %v1226
        %v1228 = vmul.f32 %v1206, 1.442695
        %v1229 = vpow.pop %v1228
        %v1230 = vmul.f32 %v1207, 1.442695
        %v1231 = vpow.pop %v1230
        %v1232 = vmul.f32 %v1208, 1.442695
        %v1233 = vpow.pop %v1232
        %v1234 = vmul.f32 %v1209, 1.442695
        %v1235 = vpow.pop %v1234
        %v1236 = vmul.f32 %v1210, 1.442695
        %v1237 = vpow.pop %v1236
        %v1238 = vmul.f32 %v1211, 1.442695
        %v1239 = vpow.pop %v1238
        %v1240 = vmul.f32 %v1212, 1.442695
        %v1241 = vpow.pop %v1240
        %v1242 = vmul.f32 %v1213, 1.442695
        %v1243 = vpow.pop %v1242
        %v1244 = vmul.f32 %v1214, 1.442695
        %v1245 = vpow.pop %v1244
        %v1246 = vmul.f32 %v1215, 1.442695
        %v1247 = vpow.pop %v1246
        %v1248 = vmul.f32 %v1168, %v1217
        %v1249 = vmul.f32 %v1169, %v1219
        %v1250 = vmul.f32 %v1170, %v1221
        %v1251 = vmul.f32 %v1171, %v1223
        %v1252 = vmul.f32 %v1172, %v1225
        %v1253 = vmul.f32 %v1173, %v1227
        %v1254 = vmul.f32 %v1174, %v1229
        %v1255 = vmul.f32 %v1175, %v1231
        %v1256 = vmul.f32 %v1176, %v1233
        %v1257 = vmul.f32 %v1177, %v1235
        %v1258 = vmul.f32 %v1178, %v1237
        %v1259 = vmul.f32 %v1179, %v1239
        %v1260 = vmul.f32 %v1180, %v1241
        %v1261 = vmul.f32 %v1181, %v1243
        %v1262 = vmul.f32 %v1182, %v1245
        %v1263 = vmul.f32 %v1183, %v1247
        %v1264 = vsub.f32 1.0, %v1248
        %v1265 = vsub.f32 1.0, %v1249
        %v1266 = vsub.f32 1.0, %v1250
        %v1267 = vsub.f32 1.0, %v1251
        %v1268 = vsub.f32 1.0, %v1252
        %v1269 = vsub.f32 1.0, %v1253
        %v1270 = vsub.f32 1.0, %v1254
        %v1271 = vsub.f32 1.0, %v1255
        %v1272 = vsub.f32 1.0, %v1256
        %v1273 = vsub.f32 1.0, %v1257
        %v1274 = vsub.f32 1.0, %v1258
        %v1275 = vsub.f32 1.0, %v1259
        %v1276 = vsub.f32 1.0, %v1260
        %v1277 = vsub.f32 1.0, %v1261
        %v1278 = vsub.f32 1.0, %v1262
        %v1279 = vsub.f32 1.0, %v1263
        %v1280 = vmul.f32 %v736, %v1264
        %v1281 = vmul.f32 %v737, %v1265
        %v1282 = vmul.f32 %v738, %v1266
        %v1283 = vmul.f32 %v739, %v1267
        %v1284 = vmul.f32 %v740, %v1268
        %v1285 = vmul.f32 %v741, %v1269
        %v1286 = vmul.f32 %v742, %v1270
        %v1287 = vmul.f32 %v743, %v1271
        %v1288 = vmul.f32 %v744, %v1272
        %v1289 = vmul.f32 %v745, %v1273
        %v1290 = vmul.f32 %v746, %v1274
        %v1291 = vmul.f32 %v747, %v1275
        %v1292 = vmul.f32 %v748, %v1276
        %v1293 = vmul.f32 %v749, %v1277
        %v1294 = vmul.f32 %v750, %v1278
        %v1295 = vmul.f32 %v751, %v1279
        %v1296 = vadd.f32 %v1280, 1.0
        %v1297 = vadd.f32 %v1281, 1.0
        %v1298 = vadd.f32 %v1282, 1.0
        %v1299 = vadd.f32 %v1283, 1.0
        %v1300 = vadd.f32 %v1284, 1.0
        %v1301 = vadd.f32 %v1285, 1.0
        %v1302 = vadd.f32 %v1286, 1.0
        %v1303 = vadd.f32 %v1287, 1.0
        %v1304 = vadd.f32 %v1288, 1.0
        %v1305 = vadd.f32 %v1289, 1.0
        %v1306 = vadd.f32 %v1290, 1.0
        %v1307 = vadd.f32 %v1291, 1.0
        %v1308 = vadd.f32 %v1292, 1.0
        %v1309 = vadd.f32 %v1293, 1.0
        %v1310 = vadd.f32 %v1294, 1.0
        %v1311 = vadd.f32 %v1295, 1.0
        %v1312 = vmul.f32 %v688, %v1296
        %v1313 = vmul.f32 %v689, %v1297
        %v1314 = vmul.f32 %v690, %v1298
        %v1315 = vmul.f32 %v691, %v1299
        %v1316 = vmul.f32 %v692, %v1300
        %v1317 = vmul.f32 %v693, %v1301
        %v1318 = vmul.f32 %v694, %v1302
        %v1319 = vmul.f32 %v695, %v1303
        %v1320 = vmul.f32 %v696, %v1304
        %v1321 = vmul.f32 %v697, %v1305
        %v1322 = vmul.f32 %v698, %v1306
        %v1323 = vmul.f32 %v699, %v1307
        %v1324 = vmul.f32 %v700, %v1308
        %v1325 = vmul.f32 %v701, %v1309
        %v1326 = vmul.f32 %v702, %v1310
        %v1327 = vmul.f32 %v703, %v1311
        %v1328 = vpack.c.bf16 %v1313, %v1312
        %v1329 = vpack.c.bf16 %v1315, %v1314
        %v1330 = vpack.c.bf16 %v1317, %v1316
        %v1331 = vpack.c.bf16 %v1319, %v1318
        %v1332 = vpack.c.bf16 %v1321, %v1320
        %v1333 = vpack.c.bf16 %v1323, %v1322
        %v1334 = vpack.c.bf16 %v1325, %v1324
        %v1335 = vpack.c.bf16 %v1327, %v1326
        %1336 = vst [vmem:[%s332] sm:$0xff] %v1328
        %1337 = vst [vmem:[%s332 + $0x8] sm:$0xff] %v1329
        %1338 = vst [vmem:[%s332 + $0x10] sm:$0xff] %v1330
        %1339 = vst [vmem:[%s332 + $0x18] sm:$0xff] %v1331
        %1340 = vst [vmem:[%s332 + $0x20] sm:$0xff] %v1332
        %1341 = vst [vmem:[%s332 + $0x28] sm:$0xff] %v1333
        %1342 = vst [vmem:[%s332 + $0x30] sm:$0xff] %v1334
        %1343 = vst [vmem:[%s332 + $0x38] sm:$0xff] %v1335
        %s1344 = sand.u32 %s169, 1
        %s1345 = sand.u32 %s169, 1
        %s1346 = smul.addr %s1345, 64
        %s1347 = scalar_lea.vmem [#allocation4], %s1346
        // Predicated region
        $region68: #{vision_transformer.17} parent=58 // pred_check
          %p1348 = pneg %p179
        $region69: #{vision_transformer.17} parent=58 // pred_check_branch
          %1350 = sbr.rel (%p1348) target = $region71
        $region70: #{vision_transformer.17} parent=58 // pred_region
          %s1351 = smul.u32 4, %s21
          %s1352 = smul.u32 4, %s22
          %s1353 = smul.addr %s1351, 16
          %s1354 = sadd.s32 %s1352, %s1353
          %s1355 = smul.addr %s1354, 4
          %s1356 = scalar_lea.vmem %s5, %s1355
          // Predicated region
          $region72: #{vision_transformer.17} parent=70 // pred_check
            _
          $region73: #{vision_transformer.17} parent=70 // pred_check_branch
            %1358 = sbr.rel (0) target = $region75
          $region74: #{vision_transformer.17} parent=70 // pred_region
            // Predicated region
            $region76: #{vision_transformer.17} parent=74 // pred_check
              _
            $region77: #{vision_transformer.17} parent=74 // pred_check_branch
              %1360 = sbr.rel (0) target = $region79
            $region78: #{vision_transformer.17} parent=74 // pred_region
              loop: start=0, step=1, limit=1
              $region80: #{vision_transformer.17} parent=78 // loop_pre_header
                _
              $region81: #{vision_transformer.17} parent=78 // loop_header
                %s1362 = sphi 0, %s1366
                %p1363 = scmp.ge.s32.totalorder %s1362, 1
                %s1367 = sphi %s1347, %s1347
                %s1368 = sphi %s1356, %s1356
              $region82: #{vision_transformer.17} parent=78 // loop_header_branch
                %1365 = sbr.rel (%p1363) target = $region86
              $region83: #{vision_transformer.17} parent=78 // loop_body
                %v1369 = vld [vmem:[%s1367] sm:$0xff]
                %1370 = vst [vmem:[%s1368] sm:$0xff] %v1369
                %v1371 = vld [vmem:[%s1367 + $0x8] sm:$0xff]
                %1372 = vst [vmem:[%s1368 + $0x8] sm:$0xff] %v1371
                %v1373 = vld [vmem:[%s1367 + $0x10] sm:$0xff]
                %1374 = vst [vmem:[%s1368 + $0x40] sm:$0xff] %v1373
                %v1375 = vld [vmem:[%s1367 + $0x18] sm:$0xff]
                %1376 = vst [vmem:[%s1368 + $0x48] sm:$0xff] %v1375
                %v1377 = vld [vmem:[%s1367 + $0x20] sm:$0xff]
                %1378 = vst [vmem:[%s1368 + $0x80] sm:$0xff] %v1377
                %v1379 = vld [vmem:[%s1367 + $0x28] sm:$0xff]
                %1380 = vst [vmem:[%s1368 + $0x88] sm:$0xff] %v1379
                %v1381 = vld [vmem:[%s1367 + $0x30] sm:$0xff]
                %1382 = vst [vmem:[%s1368 + $0xc0] sm:$0xff] %v1381
                %v1383 = vld [vmem:[%s1367 + $0x38] sm:$0xff]
                %1384 = vst [vmem:[%s1368 + $0xc8] sm:$0xff] %v1383
              $region84: #{vision_transformer.17} parent=78 // loop_footer
                %s1366 = sadd.s32 1, %s1362
              $region85: #{vision_transformer.17} parent=78 // loop_footer_branch
                %1361 = sbr.rel target = $region81
              $region86: #{vision_transformer.17} parent=78 // loop_exit
                _
            $region79: #{vision_transformer.17} parent=74 // pred_fallthru
              _
            // Predicated region
            $region87: #{vision_transformer.17} parent=74 // pred_check
              _
            $region88: #{vision_transformer.17} parent=74 // pred_check_branch
              %1386 = sbr.rel target = $region90
            $region89: #{vision_transformer.17} parent=74 // pred_region
              _
            $region90: #{vision_transformer.17} parent=74 // pred_fallthru
              _
          $region75: #{vision_transformer.17} parent=70 // pred_fallthru
            _
          %1387 = vnop
        $region71: #{vision_transformer.17} parent=58 // pred_fallthru
          _
      $region59: #{vision_transformer.17} parent=5 // pred_fallthru
        _
      %p1388 = scmp.le.s32.totalorder 2, %s11
      // Predicated region
      $region91: #{vision_transformer.17} parent=5 // pred_check
        %p1389 = pneg %p1388
      $region92: #{vision_transformer.17} parent=5 // pred_check_branch
        %1391 = sbr.rel (%p1389) target = $region94
      $region93: #{vision_transformer.17} parent=5 // pred_region
        %s1392 = ssub.s32 %s11, 2
        // Predicated region
        $region95: #{vision_transformer.17} parent=93 // pred_check
          %p1393 = pneg %p185
        $region96: #{vision_transformer.17} parent=93 // pred_check_branch
          %1395 = sbr.rel (%p1393) target = $region98
        $region97: #{vision_transformer.17} parent=93 // pred_region
          %s1396 = sand.u32 %s170, 1
          %s1397 = sand.u32 %s170, 1
          %s1398 = smul.addr %s1397, 64
          %s1399 = scalar_lea.vmem [#allocation4], %s1398
        $region98: #{vision_transformer.17} parent=93 // pred_fallthru
          _
      $region94: #{vision_transformer.17} parent=5 // pred_fallthru
        _
    $region6: #{vision_transformer.17} parent=1 // loop_footer
      %s15 = sadd.s32 1, %s11
    $region7: #{vision_transformer.17} parent=1 // loop_footer_branch
      %10 = sbr.rel target = $region3
    $region8: #{vision_transformer.17} parent=1 // loop_exit
      _

// kernel: vision_transformer.19
$region0: #{vision_transformer.19}
  #allocation0 [shape = 'u32[]', space=smem, size = 0x4, offset = 0x4, fixed_abs, tag = 'smem constant byte address 0x4 - core index']
  #allocation1 [shape = 'u32[72,128]{1,0:T(1,128)}', space=vmem, size = 0x9000, scoped, tag = 'internal scratch']
  %s0 = inlined_call_operand.vmem [shape: bf16[2,64], index: 0, kind: input, shape index: {}]
  %s1 = inlined_call_operand.vmem [shape: f32[1,64], index: 1, kind: input, shape index: {}]
  %s2 = inlined_call_operand.vmem [shape: f32[1,64], index: 2, kind: input, shape index: {}]
  %s3 = inlined_call_operand.vmem [shape: bf16[64,128], index: 3, kind: input, shape index: {}]
  %s4 = inlined_call_operand.vmem [shape: f32[1,128], index: 4, kind: input, shape index: {}]
  %s5 = inlined_call_operand.vmem [shape: bf16[128,64], index: 5, kind: input, shape index: {}]
  %s6 = inlined_call_operand.vmem [shape: f32[1,64], index: 6, kind: input, shape index: {}]
  %s7 = inlined_call_operand.vmem [shape: bf16[64,128], index: 7, kind: input, shape index: {}]
  %s8 = inlined_call_operand.vmem [shape: f32[1,128], index: 8, kind: input, shape index: {}]
  %s9 = inlined_call_operand.hbm [shape: f32[2,128], index: 9, kind: output, shape index: {}]
  %s10 = sld [smem:[#allocation0]]
  $region46: #{vision_transformer.19} parent=0
    _
  %s12 = ssub.s32 1, %s10
  %s13 = scalar_select 0, %s12, %s10
  $region1: #{vision_transformer.19} parent=0
    #allocation2 [shape = 'u8[1024]{0}', space=vmem, size = 0x400, scoped, tag = 'output window, operand 0, single buffered']
    #allocation3 [shape = 's32[1]{0}', space=sflag, size = 0x4, scoped, tag = 'scoped memory for vision_transformer.19']
    %14 = vsyncpa [#allocation3], 0
    // Predicated region
    $region2: #{vision_transformer.19} parent=1 // pred_check
      _
    $region3: #{vision_transformer.19} parent=1 // pred_check_branch
      %16 = sbr.rel (0) target = $region5
    $region4: #{vision_transformer.19} parent=1 // pred_region
      _
    $region5: #{vision_transformer.19} parent=1 // pred_fallthru
      _
    // Predicated region
    $region6: #{vision_transformer.19} parent=1 // pred_check
      _
    $region7: #{vision_transformer.19} parent=1 // pred_check_branch
      %18 = sbr.rel (0) target = $region9
    $region8: #{vision_transformer.19} parent=1 // pred_region
      _
    $region9: #{vision_transformer.19} parent=1 // pred_fallthru
      _
    // Predicated region
    $region10: #{vision_transformer.19} parent=1 // pred_check
      _
    $region11: #{vision_transformer.19} parent=1 // pred_check_branch
      %20 = sbr.rel (0) target = $region13
    $region12: #{vision_transformer.19} parent=1 // pred_region
      _
    $region13: #{vision_transformer.19} parent=1 // pred_fallthru
      _
    // Predicated region
    $region14: #{vision_transformer.19} parent=1 // pred_check
      _
    $region15: #{vision_transformer.19} parent=1 // pred_check_branch
      %22 = sbr.rel (0) target = $region17
    $region16: #{vision_transformer.19} parent=1 // pred_region
      _
    $region17: #{vision_transformer.19} parent=1 // pred_fallthru
      _
    // Predicated region
    $region18: #{vision_transformer.19} parent=1 // pred_check
      _
    $region19: #{vision_transformer.19} parent=1 // pred_check_branch
      %24 = sbr.rel (0) target = $region21
    $region20: #{vision_transformer.19} parent=1 // pred_region
      _
    $region21: #{vision_transformer.19} parent=1 // pred_fallthru
      _
    // Predicated region
    $region22: #{vision_transformer.19} parent=1 // pred_check
      _
    $region23: #{vision_transformer.19} parent=1 // pred_check_branch
      %26 = sbr.rel (0) target = $region25
    $region24: #{vision_transformer.19} parent=1 // pred_region
      _
    $region25: #{vision_transformer.19} parent=1 // pred_fallthru
      _
    // Predicated region
    $region26: #{vision_transformer.19} parent=1 // pred_check
      _
    $region27: #{vision_transformer.19} parent=1 // pred_check_branch
      %28 = sbr.rel (0) target = $region29
    $region28: #{vision_transformer.19} parent=1 // pred_region
      _
    $region29: #{vision_transformer.19} parent=1 // pred_fallthru
      _
    // Predicated region
    $region30: #{vision_transformer.19} parent=1 // pred_check
      _
    $region31: #{vision_transformer.19} parent=1 // pred_check_branch
      %30 = sbr.rel (0) target = $region33
    $region32: #{vision_transformer.19} parent=1 // pred_region
      _
    $region33: #{vision_transformer.19} parent=1 // pred_fallthru
      _
    // Predicated region
    $region34: #{vision_transformer.19} parent=1 // pred_check
      _
    $region35: #{vision_transformer.19} parent=1 // pred_check_branch
      %32 = sbr.rel (0) target = $region37
    $region36: #{vision_transformer.19} parent=1 // pred_region
      _
    $region37: #{vision_transformer.19} parent=1 // pred_fallthru
      _
    %v34 = vld [vmem:[%s0] sm:$0x1]
    %v35 = vunpack.c.l.bf16 %v34
    %vm36 = vcmask 517120
    %v37 = vsel %vm36, %v35, 0.0
    %38 = vadd.xlane.f32.xlu0 %v37
    %v39 = vpop.xlane.xlu0 %38
    %v40 = vrcp.pop 64.0
    %v41 = vmul.f32 64.0, %v40
    %v42 = vsub.f32 1.0, %v41
    %v43 = vmul.f32 %v40, %v42
    %v44 = vadd.f32 %v40, %v43
    %vm45 = vweird.f32 %v40
    %v46 = vsel %vm45, %v40, %v44
    %v47 = vmul.f32 %v39, %v46
    %v48 = vsub.f32 %v35, %v47
    %v49 = vmul.f32 %v48, %v48
    %v50 = vsel %vm36, %v49, 0.0
    %51 = vadd.xlane.f32.xlu0 %v50
    %v52 = vpop.xlane.xlu0 %51
    %v53 = vmul.f32 %v52, %v46
    %v54 = vadd.f32 %v53, 1e-05
    %v55 = vrsqrt.pop %v54
    %v56 = vmul.f32 %v55, %v54
    %v57 = vmul.f32 %v56, %v55
    %v58 = vmul.f32 0.5, %v57
    %v59 = vsub.f32 1.5, %v58
    %v60 = vmul.f32 %v55, %v59
    %vm61 = vweird.f32 %v54
    %vm62 = vweird.f32 %v55
    %vm63 = vmor %vm61, %vm62
    %v64 = vsel %vm63, %v55, %v60
    %v65 = vmul.f32 %v48, %v64
    %v66 = vld [vmem:[%s1] sm:$0x1]
    %v68 = vperm.slane %v66, 0
    %v70 = vmul.f32 %v65, %v68
    %v71 = vld [vmem:[%s2] sm:$0x1]
    %v73 = vperm.slane %v71, 0
    %v75 = vadd.f32 %v70, %v73
    %v76 = vpack.c.bf16 %v75, %v75
    %v77 = vld [vmem:[%s3] sm:$0xf]
    %v78 = vld [vmem:[%s3 + $0x4] sm:$0xf]
    %v79 = vld [vmem:[%s3 + $0x8] sm:$0xf]
    %v80 = vld [vmem:[%s3 + $0xc] sm:$0xf]
    %v81 = vld [vmem:[%s3 + $0x10] sm:$0xf]
    %v82 = vld [vmem:[%s3 + $0x14] sm:$0xf]
    %v83 = vld [vmem:[%s3 + $0x18] sm:$0xf]
    %v84 = vld [vmem:[%s3 + $0x1c] sm:$0xf]
    %v85 = vld [vmem:[%s4] sm:$0x1]
    %v87 = vperm.slane %v85, 0
    %v97 = vunpack.c.l.b16 %v77
    %v98 = vunpack.c.l.b16 %v78
    %v99 = vunpack.c.l.b16 %v79
    %v100 = vunpack.c.l.b16 %v80
    %v101 = vunpack.c.l.b16 %v81
    %v102 = vunpack.c.l.b16 %v82
    %v103 = vunpack.c.l.b16 %v83
    %v104 = vunpack.c.l.b16 %v84
    %v105 = vpack.c.b16 %v98, %v97
    %v106 = vpack.c.b16 %v100, %v99
    %v107 = vpack.c.b16 %v102, %v101
    %v108 = vpack.c.b16 %v104, %v103
    %vm113 = vcmask 523264
    %v115 = vsel %vm113, %v76, 0
    %117 = vmatpush.bf16.msra.mxu0 0
    %118 = vmatpush.bf16.msra.mxu0 0
    %119 = vmatpush.bf16.msra.mxu0 0
    %120 = vmatpush.bf16.msra.mxu0 0
    %121 = vmatpush.bf16.msra.mxu0 %v108
    %122 = vmatpush.bf16.msra.mxu0 %v107
    %123 = vmatpush.bf16.msra.mxu0 %v106
    %124 = vmatpush.bf16.msra.mxu0 %v105
    %125 = vmatmul.bf16.gmra.mxu0 %v115
    %v126 = vpop.f32.mrf.mxu0
    %v127 = vadd.f32 %v87, %v126
    %v128 = vpop.f32.mrf.mxu0
    %129 = vdwg.mxu0
    %v130 = vmul.f32 %v127, 0.5
    %v131 = vmul.f32 %v127, 0.70710677
    %vm132 = vcmp.ge.f32.partialorder %v131, 0.0
    %v133 = vsel %vm132, 1.0, -1.0
    %v134 = vand.u32 2147483647, %v131
    %v135 = vmul.f32 %v134, 0.3275911
    %v136 = vadd.f32 %v135, 1.0
    %v137 = vrcp.pop %v136
    %v138 = vmul.f32 %v136, %v137
    %v139 = vsub.f32 1.0, %v138
    %v140 = vmul.f32 %v137, %v139
    %v141 = vadd.f32 %v137, %v140
    %vm142 = vweird.f32 %v136
    %vm143 = vweird.f32 %v137
    %vm144 = vmor %vm142, %vm143
    %v145 = vsel %vm144, %v137, %v141
    %v146 = vand.u32 2147483647, %v136
    %vm147 = vcmp.eq.f32.partialorder %v146, 8.507059e+37
    %v148 = vand.u32 %v136, 2147483648
    %v149 = vor.u32 1.1754944e-38, %v148
    %v150 = vsel %vm147, %v149, %v145
    %v151 = vmul.f32 1.0, %v150
    %v152 = vmul.f32 %v151, 1.0614054
    %v153 = vadd.f32 %v152, -1.4531521
    %v154 = vmul.f32 %v153, %v151
    %v155 = vadd.f32 %v154, 1.4214138
    %v156 = vmul.f32 %v155, %v151
    %v157 = vadd.f32 %v156, -0.28449672
    %v158 = vmul.f32 %v157, %v151
    %v159 = vadd.f32 %v158, 0.2548296
    %v160 = vmul.f32 %v159, %v151
    %v161 = vsub.f32 0.0, %v134
    %v162 = vmul.f32 %v161, %v134
    %v163 = vmul.f32 %v162, 1.442695
    %v164 = vpow.pop %v163
    %v165 = vmul.f32 %v160, %v164
    %v166 = vsub.f32 1.0, %v165
    %v167 = vmul.f32 %v133, %v166
    %v168 = vadd.f32 %v167, 1.0
    %v169 = vmul.f32 %v130, %v168
    %v170 = vpack.c.bf16 %v169, %v169
    %v171 = vld [vmem:[%s5] sm:$0xf]
    %v172 = vld [vmem:[%s5 + $0x4] sm:$0xf]
    %v173 = vld [vmem:[%s5 + $0x8] sm:$0xf]
    %v174 = vld [vmem:[%s5 + $0xc] sm:$0xf]
    %v175 = vld [vmem:[%s5 + $0x10] sm:$0xf]
    %v176 = vld [vmem:[%s5 + $0x14] sm:$0xf]
    %v177 = vld [vmem:[%s5 + $0x18] sm:$0xf]
    %v178 = vld [vmem:[%s5 + $0x1c] sm:$0xf]
    %v179 = vld [vmem:[%s5 + $0x20] sm:$0xf]
    %v180 = vld [vmem:[%s5 + $0x24] sm:$0xf]
    %v181 = vld [vmem:[%s5 + $0x28] sm:$0xf]
    %v182 = vld [vmem:[%s5 + $0x2c] sm:$0xf]
    %v183 = vld [vmem:[%s5 + $0x30] sm:$0xf]
    %v184 = vld [vmem:[%s5 + $0x34] sm:$0xf]
    %v185 = vld [vmem:[%s5 + $0x38] sm:$0xf]
    %v186 = vld [vmem:[%s5 + $0x3c] sm:$0xf]
    %v187 = vld [vmem:[%s6] sm:$0x1]
    %v189 = vperm.slane %v187, 0
    %v207 = vunpack.c.l.b16 %v171
    %v208 = vunpack.c.l.b16 %v172
    %v209 = vunpack.c.l.b16 %v173
    %v210 = vunpack.c.l.b16 %v174
    %v211 = vunpack.c.l.b16 %v175
    %v212 = vunpack.c.l.b16 %v176
    %v213 = vunpack.c.l.b16 %v177
    %v214 = vunpack.c.l.b16 %v178
    %v215 = vunpack.c.l.b16 %v179
    %v216 = vunpack.c.l.b16 %v180
    %v217 = vunpack.c.l.b16 %v181
    %v218 = vunpack.c.l.b16 %v182
    %v219 = vunpack.c.l.b16 %v183
    %v220 = vunpack.c.l.b16 %v184
    %v221 = vunpack.c.l.b16 %v185
    %v222 = vunpack.c.l.b16 %v186
    %v223 = vpack.c.b16 %v208, %v207
    %v224 = vpack.c.b16 %v210, %v209
    %v225 = vpack.c.b16 %v212, %v211
    %v226 = vpack.c.b16 %v214, %v213
    %v227 = vpack.c.b16 %v216, %v215
    %v228 = vpack.c.b16 %v218, %v217
    %v229 = vpack.c.b16 %v220, %v219
    %v230 = vpack.c.b16 %v222, %v221
    %239 = vmatpush.bf16.msra.mxu0 %v230
    %240 = vmatpush.bf16.msra.mxu0 %v229
    %241 = vmatpush.bf16.msra.mxu0 %v228
    %242 = vmatpush.bf16.msra.mxu0 %v227
    %243 = vmatpush.bf16.msra.mxu0 %v226
    %244 = vmatpush.bf16.msra.mxu0 %v225
    %245 = vmatpush.bf16.msra.mxu0 %v224
    %246 = vmatpush.bf16.msra.mxu0 %v223
    %247 = vmatmul.bf16.gmra.mxu0 %v170
    %v248 = vpop.f32.mrf.mxu0
    %v249 = vadd.f32 %v189, %v248
    %v250 = vpop.f32.mrf.mxu0
    %251 = vdwg.mxu0
    %v252 = vmul.f32 %v249, 0.5
    %v253 = vmul.f32 %v249, 0.70710677
    %vm254 = vcmp.ge.f32.partialorder %v253, 0.0
    %v255 = vsel %vm254, 1.0, -1.0
    %v256 = vand.u32 2147483647, %v253
    %v257 = vmul.f32 %v256, 0.3275911
    %v258 = vadd.f32 %v257, 1.0
    %v259 = vrcp.pop %v258
    %v260 = vmul.f32 %v258, %v259
    %v261 = vsub.f32 1.0, %v260
    %v262 = vmul.f32 %v259, %v261
    %v263 = vadd.f32 %v259, %v262
    %vm264 = vweird.f32 %v258
    %vm265 = vweird.f32 %v259
    %vm266 = vmor %vm264, %vm265
    %v267 = vsel %vm266, %v259, %v263
    %v268 = vand.u32 2147483647, %v258
    %vm269 = vcmp.eq.f32.partialorder %v268, 8.507059e+37
    %v270 = vand.u32 %v258, 2147483648
    %v271 = vor.u32 1.1754944e-38, %v270
    %v272 = vsel %vm269, %v271, %v267
    %v273 = vmul.f32 1.0, %v272
    %v274 = vmul.f32 %v273, 1.0614054
    %v275 = vadd.f32 %v274, -1.4531521
    %v276 = vmul.f32 %v275, %v273
    %v277 = vadd.f32 %v276, 1.4214138
    %v278 = vmul.f32 %v277, %v273
    %v279 = vadd.f32 %v278, -0.28449672
    %v280 = vmul.f32 %v279, %v273
    %v281 = vadd.f32 %v280, 0.2548296
    %v282 = vmul.f32 %v281, %v273
    %v283 = vsub.f32 0.0, %v256
    %v284 = vmul.f32 %v283, %v256
    %v285 = vmul.f32 %v284, 1.442695
    %v286 = vpow.pop %v285
    %v287 = vmul.f32 %v282, %v286
    %v288 = vsub.f32 1.0, %v287
    %v289 = vmul.f32 %v255, %v288
    %v290 = vadd.f32 %v289, 1.0
    %v291 = vmul.f32 %v252, %v290
    %v292 = vpack.c.bf16 %v291, %v291
    %v293 = vld [vmem:[%s7] sm:$0xf]
    %v294 = vld [vmem:[%s7 + $0x4] sm:$0xf]
    %v295 = vld [vmem:[%s7 + $0x8] sm:$0xf]
    %v296 = vld [vmem:[%s7 + $0xc] sm:$0xf]
    %v297 = vld [vmem:[%s7 + $0x10] sm:$0xf]
    %v298 = vld [vmem:[%s7 + $0x14] sm:$0xf]
    %v299 = vld [vmem:[%s7 + $0x18] sm:$0xf]
    %v300 = vld [vmem:[%s7 + $0x1c] sm:$0xf]
    %v301 = vld [vmem:[%s8] sm:$0x1]
    %v303 = vperm.slane %v301, 0
    %v313 = vunpack.c.l.b16 %v293
    %v314 = vunpack.c.l.b16 %v294
    %v315 = vunpack.c.l.b16 %v295
    %v316 = vunpack.c.l.b16 %v296
    %v317 = vunpack.c.l.b16 %v297
    %v318 = vunpack.c.l.b16 %v298
    %v319 = vunpack.c.l.b16 %v299
    %v320 = vunpack.c.l.b16 %v300
    %v321 = vpack.c.b16 %v314, %v313
    %v322 = vpack.c.b16 %v316, %v315
    %v323 = vpack.c.b16 %v318, %v317
    %v324 = vpack.c.b16 %v320, %v319
    %v330 = vsel %vm113, %v292, 0
    %332 = vmatpush.bf16.msra.mxu0 0
    %333 = vmatpush.bf16.msra.mxu0 0
    %334 = vmatpush.bf16.msra.mxu0 0
    %335 = vmatpush.bf16.msra.mxu0 0
    %336 = vmatpush.bf16.msra.mxu0 %v324
    %337 = vmatpush.bf16.msra.mxu0 %v323
    %338 = vmatpush.bf16.msra.mxu0 %v322
    %339 = vmatpush.bf16.msra.mxu0 %v321
    %340 = vmatmul.bf16.gmra.mxu0 %v330
    %v341 = vpop.f32.mrf.mxu0
    %v342 = vadd.f32 %v303, %v341
    %v343 = vpop.f32.mrf.mxu0
    %344 = vdwg.mxu0
    %345 = vst [vmem:[#allocation2] sm:$0x3] %v342
    // Predicated region
    $region38: #{vision_transformer.19} parent=1 // pred_check
      _
    $region39: #{vision_transformer.19} parent=1 // pred_check_branch
      %347 = sbr.rel (0) target = $region41
    $region40: #{vision_transformer.19} parent=1 // pred_region
      %349 = vsyncadd [#allocation3], 0
      %s351 = sshll.u32 [#allocation2], 4
      %s352 = int_to_ptr.vmem [resolvable:$true] %s351
      %s353 = sshll.u32 %s9, 4
      %s354 = int_to_ptr.hbm [resolvable:$true] %s353
      %356 = dma.vmem_to_hbm [thread:$0]  %s352, 32, %s354, [#allocation3]
    $region41: #{vision_transformer.19} parent=1 // pred_fallthru
      _
    // Predicated region
    $region42: #{vision_transformer.19} parent=1 // pred_check
      _
    $region43: #{vision_transformer.19} parent=1 // pred_check_branch
      %358 = sbr.rel (0) target = $region45
    $region44: #{vision_transformer.19} parent=1 // pred_region
      %360 = dma.done [#allocation3], 32
    $region45: #{vision_transformer.19} parent=1 // pred_fallthru
      _
    %361 = vsyncpa [#allocation3], 1

</llo_original>
